<compile_context>
chip_gen: v6e
topology: v6e:2x2x1
jax: 0.10.0
libtpu: 0.0.40
codegen_flags: <defaults>
</compile_context>

<pallas_src>
import functools

import jax
import jax.numpy as jnp
from jax.experimental import pallas as pl
from jax.experimental.pallas import tpu as pltpu

LANE_CHUNK = 512      # in-kernel lane-slab size (multiple of 128)
MAX_TILE_N = 16384    # cap on lanes per grid step


def _round_up(x, m):
    return ((x + m - 1) // m) * m


def _num_tensorcores():
    """TensorCores a 'parallel' grid axis can shard over (per JAX device)."""
    try:
        kind = jax.devices()[0].device_kind.lower()
    except Exception:
        return 1
    if "v7" in kind:                    # v7x: 2 TensorCores per chip
        return 2
    if "v4" in kind or "v5p" in kind:   # megacore
        return 2
    return 1                            # v5e / v6e: single TensorCore


def _pinn_kernel(x_ref, w1_ref, wr_ref, b_ref, out_ref, *,
                 num_layers, out_rows, lane_chunk):
    # x_ref  : (d_in, tile_n)                feature-major input tile (batch on lanes)
    # w1_ref : (h_pad, d_in)                 first-layer weight
    # wr_ref : (num_layers-1, h_pad, h_pad)  remaining weights, zero padded
    # b_ref  : (num_layers, h_pad, 1)        biases, zero padded
    # out_ref: (out_rows, tile_n)            8-sublane-aligned, lane-dense output tile
    tile_n = out_ref.shape[-1]
    n_chunks = tile_n // lane_chunk

    # Hoist the small, grid-resident weight/bias loads out of the lane-chunk loop.
    w1 = w1_ref[...]
    wr = [wr_ref[l] for l in range(num_layers - 1)]
    bs = [b_ref[l] for l in range(num_layers)]

    # Walk the batch (lane) axis in static 512-lane slabs: static slices are zero-cost
    # ref views, live intermediates stay ~(h_pad, lane_chunk), DMA tile stays large.
    for c in range(n_chunks):
        lo = c * lane_chunk
        h = jnp.dot(w1, x_ref[:, lo:lo + lane_chunk],
                    preferred_element_type=jnp.float32) + bs[0]
        h = jnp.tanh(h)
        for l in range(1, num_layers):           # static Python loop -> fully unrolled
            h = jnp.dot(wr[l - 1], h,
                        preferred_element_type=jnp.float32) + bs[l]
            if l < num_layers - 1:               # Tanh on hidden layers only
                h = jnp.tanh(h)
        # Rows d_out..out_rows-1 of h are exactly zero (zero-padded weights/biases).
        out_ref[:, lo:lo + lane_chunk] = h[:out_rows, :].astype(out_ref.dtype)


def pack_params(params):
    """Pack PyTorch-layout params (W:(out,in), b:(out,)) once per parameter update.

    Zero padding is exact: tanh(0)=0 and zero weight rows/cols contribute nothing.
    """
    num_layers = len(params)
    assert num_layers >= 2, "expect at least one hidden layer"
    d_in = params[0][0].shape[1]
    d_out = params[-1][0].shape[0]
    dims = [d_in] + [w.shape[0] for (w, _) in params]       # [d_in, h1, ..., d_out]
    h_pad = max(8, _round_up(max(dims[1:]), 8))

    w1 = jnp.zeros((h_pad, d_in), jnp.float32).at[:dims[1], :].set(
        jnp.asarray(params[0][0], jnp.float32))
    w_rest = jnp.zeros((num_layers - 1, h_pad, h_pad), jnp.float32)
    for l in range(1, num_layers):
        w_rest = w_rest.at[l - 1, :dims[l + 1], :dims[l]].set(
            jnp.asarray(params[l][0], jnp.float32))
    b_all = jnp.zeros((num_layers, h_pad, 1), jnp.float32)
    for l in range(num_layers):
        b_all = b_all.at[l, :dims[l + 1], 0].set(jnp.asarray(params[l][1], jnp.float32))

    meta = dict(num_layers=num_layers, d_in=d_in, d_out=d_out, dims=dims, h_pad=h_pad)
    return (w1, w_rest, b_all, meta)


def pinn_forward(x_t, packed, *, tile_n=None, num_cores=None):
    """Forward pass of PINN_Net.  x_t: (N, d_in) f32; returns (N, d_out) f32."""
    w1, w_rest, b_all, meta = packed
    N, d_in = x_t.shape
    assert d_in == meta["d_in"], (d_in, meta["d_in"])
    num_layers, d_out = meta["num_layers"], meta["d_out"]
    dims = meta["dims"]
    out_rows = max(8, _round_up(d_out, 8))       # 8-sublane-aligned output slab

    # Generation-aware grid: one step per available TensorCore, large lane tiles.
    if num_cores is None:
        num_cores = _num_tensorcores()
    if tile_n is None:
        per_core = -(-N // num_cores)
        tile_n = min(_round_up(per_core, LANE_CHUNK), MAX_TILE_N)
    tile_n = _round_up(max(tile_n, LANE_CHUNK), LANE_CHUNK)
    n_pad = _round_up(max(N, tile_n), tile_n)
    grid = (n_pad // tile_n,)

    # Feature-major input, padded only on the batch (lane) axis — no feature-row padding.
    xT = jnp.pad(jnp.asarray(x_t, jnp.float32).T, ((0, 0), (0, n_pad - N)))

    flops = 2 * n_pad * sum(a * b for a, b in zip(dims[:-1], dims[1:]))
    transcendentals = n_pad * sum(dims[1:-1])
    bytes_accessed = 4 * (xT.size + out_rows * n_pad + w1.size + w_rest.size + b_all.size)

    kernel = functools.partial(_pinn_kernel, num_layers=num_layers,
                               out_rows=out_rows, lane_chunk=LANE_CHUNK)

    out_t = pl.pallas_call(
        kernel,
        out_shape=jax.ShapeDtypeStruct((out_rows, n_pad), jnp.float32),
        grid_spec=pltpu.PrefetchScalarGridSpec(
            num_scalar_prefetch=0,
            grid=grid,
            in_specs=[
                pl.BlockSpec((d_in, tile_n), lambda i: (0, i)),
                pl.BlockSpec(w1.shape, lambda i: (0, 0)),          # resident weights
                pl.BlockSpec(w_rest.shape, lambda i: (0, 0, 0)),
                pl.BlockSpec(b_all.shape, lambda i: (0, 0, 0)),
            ],
            out_specs=pl.BlockSpec((out_rows, tile_n), lambda i: (0, i)),
        ),
        compiler_params=pltpu.CompilerParams(
            dimension_semantics=("parallel",)),
        cost_estimate=pl.CostEstimate(
            flops=flops,
            transcendentals=transcendentals,
            bytes_accessed=bytes_accessed),
    )(xT, w1, w_rest, b_all)

    # Back to PyTorch (batch, d_out) layout; drop batch padding and alignment rows.
    return out_t[:d_out, :N].T


def init_params(layers, key):
    """PyTorch nn.Linear default init: U(-1/sqrt(fan_in), +1/sqrt(fan_in)); W is (out, in)."""
    params = []
    for i in range(len(layers) - 1):
        fan_in, fan_out = layers[i], layers[i + 1]
        key, kw, kb = jax.random.split(key, 3)
        bound = 1.0 / (fan_in ** 0.5)
        w = jax.random.uniform(kw, (fan_out, fan_in), jnp.float32, -bound, bound)
        b = jax.random.uniform(kb, (fan_out,), jnp.float32, -bound, bound)
        params.append((w, b))
    return params


def reference_forward(x, params):
    h = x
    for i, (w, b) in enumerate(params):
        h = jnp.dot(h, w.T, precision=jax.lax.Precision.HIGHEST) + b
        if i < len(params) - 1:
            h = jnp.tanh(h)
    return h


if __name__ == "__main__":
    # Burgers PINN architecture: input (x, t) -> hidden tanh layers -> scalar u.
    layers = [2, 32, 32, 32, 1]

    params = init_params(layers, jax.random.PRNGKey(0))
    packed = pack_params(params)          # hoisted: pack once per parameter update

    key = jax.random.PRNGKey(0)
    key, kx = jax.random.split(key)
    N = 2048                              # batch of collocation points
    x_t = jax.random.uniform(kx, (N, layers[0]), jnp.float32, -1.0, 1.0)

    out = jax.block_until_ready(pinn_forward(x_t, packed))
    ref = reference_forward(x_t, params)
    assert out.shape == (N, layers[-1]), out.shape
    err = float(jnp.max(jnp.abs(out - ref)))
    # Tolerance leaves headroom for MXU f32 matmul pass rounding at default precision.
    assert err < 5e-3, err

    # Ragged batch (not a tile multiple) exercises the padded-tail path.
    key, kx2 = jax.random.split(key)
    N2 = 1000
    x2 = jax.random.uniform(kx2, (N2, layers[0]), jnp.float32, -1.0, 1.0)
    out2 = jax.block_until_ready(pinn_forward(x2, packed))
    ref2 = reference_forward(x2, params)
    assert out2.shape == (N2, layers[-1]), out2.shape
    err2 = float(jnp.max(jnp.abs(out2 - ref2)))
    assert err2 < 5e-3, err2

    print("KERNEL_OK")
</pallas_src>

<mosaic_0001>
module attributes {stable_mosaic.version = 11 : i64} {
  func.func @_pinn_kernel(%arg0: i32, %arg1: memref<2x2048xf32, #tpu.memory_space<vmem>>, %arg2: memref<32x2xf32, #tpu.memory_space<vmem>>, %arg3: memref<3x32x32xf32, #tpu.memory_space<vmem>>, %arg4: memref<4x32x1xf32, #tpu.memory_space<vmem>>, %arg5: memref<8x2048xf32, #tpu.memory_space<vmem>>) attributes {dimension_semantics = [#tpu.dimension_semantics<parallel>], iteration_bounds = array<i64: 1>, scalar_prefetch = 0 : i64, scratch_operands = 0 : i64, tpu.core_type = #tpu.core_type<tc>, window_params = [{transform_indices = @transform_0, window_bounds = array<i64: 2, 2048>}, {pipeline_mode = #tpu.pipeline_mode<synchronous>, transform_indices = @transform_1, window_bounds = array<i64: 32, 2>}, {pipeline_mode = #tpu.pipeline_mode<synchronous>, transform_indices = @transform_2, window_bounds = array<i64: 3, 32, 32>}, {pipeline_mode = #tpu.pipeline_mode<synchronous>, transform_indices = @transform_3, window_bounds = array<i64: 4, 32, 1>}, {transform_indices = @transform_4, window_bounds = array<i64: 8, 2048>}]} {
    %c0 = arith.constant 0 : index
    %c0_0 = arith.constant 0 : index
    %0 = vector.load %arg2[%c0, %c0_0] : memref<32x2xf32, #tpu.memory_space<vmem>>, vector<32x2xf32>
    %c0_1 = arith.constant 0 : index
    %c0_2 = arith.constant 0 : index
    %c0_3 = arith.constant 0 : index
    %1 = vector.load %arg3[%c0_1, %c0_2, %c0_3] : memref<3x32x32xf32, #tpu.memory_space<vmem>>, vector<1x32x32xf32>
    %2 = vector.shape_cast %1 : vector<1x32x32xf32> to vector<32x32xf32>
    %c1 = arith.constant 1 : index
    %c0_4 = arith.constant 0 : index
    %c0_5 = arith.constant 0 : index
    %3 = vector.load %arg3[%c1, %c0_4, %c0_5] : memref<3x32x32xf32, #tpu.memory_space<vmem>>, vector<1x32x32xf32>
    %4 = vector.shape_cast %3 : vector<1x32x32xf32> to vector<32x32xf32>
    %c2 = arith.constant 2 : index
    %c0_6 = arith.constant 0 : index
    %c0_7 = arith.constant 0 : index
    %5 = vector.load %arg3[%c2, %c0_6, %c0_7] : memref<3x32x32xf32, #tpu.memory_space<vmem>>, vector<1x32x32xf32>
    %6 = vector.shape_cast %5 : vector<1x32x32xf32> to vector<32x32xf32>
    %c0_8 = arith.constant 0 : index
    %c0_9 = arith.constant 0 : index
    %c0_10 = arith.constant 0 : index
    %7 = vector.load %arg4[%c0_8, %c0_9, %c0_10] : memref<4x32x1xf32, #tpu.memory_space<vmem>>, vector<1x32x1xf32>
    %8 = vector.shape_cast %7 : vector<1x32x1xf32> to vector<32x1xf32>
    %c1_11 = arith.constant 1 : index
    %c0_12 = arith.constant 0 : index
    %c0_13 = arith.constant 0 : index
    %9 = vector.load %arg4[%c1_11, %c0_12, %c0_13] : memref<4x32x1xf32, #tpu.memory_space<vmem>>, vector<1x32x1xf32>
    %10 = vector.shape_cast %9 : vector<1x32x1xf32> to vector<32x1xf32>
    %c2_14 = arith.constant 2 : index
    %c0_15 = arith.constant 0 : index
    %c0_16 = arith.constant 0 : index
    %11 = vector.load %arg4[%c2_14, %c0_15, %c0_16] : memref<4x32x1xf32, #tpu.memory_space<vmem>>, vector<1x32x1xf32>
    %12 = vector.shape_cast %11 : vector<1x32x1xf32> to vector<32x1xf32>
    %c3 = arith.constant 3 : index
    %c0_17 = arith.constant 0 : index
    %c0_18 = arith.constant 0 : index
    %13 = vector.load %arg4[%c3, %c0_17, %c0_18] : memref<4x32x1xf32, #tpu.memory_space<vmem>>, vector<1x32x1xf32>
    %14 = vector.shape_cast %13 : vector<1x32x1xf32> to vector<32x1xf32>
    %c0_19 = arith.constant 0 : index
    %c0_20 = arith.constant 0 : index
    %15 = vector.load %arg1[%c0_19, %c0_20] : memref<2x2048xf32, #tpu.memory_space<vmem>>, vector<2x512xf32>
    %cst = arith.constant dense<0.000000e+00> : vector<32x512xf32>
    %16 = tpu.matmul %0, %15, %cst {dimension_numbers = #tpu.dot_dimension_numbers<[1], [0], [0], [1], [0, 0, 1, 1], [], []>} : vector<32x2xf32>, vector<2x512xf32>, vector<32x512xf32> -> vector<32x512xf32>
    %17 = vector.broadcast %8 : vector<32x1xf32> to vector<32x512xf32>
    %18 = arith.addf %16, %17 : vector<32x512xf32>
    %19 = math.tanh %18 : vector<32x512xf32>
    %cst_21 = arith.constant dense<0.000000e+00> : vector<32x512xf32>
    %20 = tpu.matmul %2, %19, %cst_21 {dimension_numbers = #tpu.dot_dimension_numbers<[1], [0], [0], [1], [0, 0, 1, 1], [], []>} : vector<32x32xf32>, vector<32x512xf32>, vector<32x512xf32> -> vector<32x512xf32>
    %21 = vector.broadcast %10 : vector<32x1xf32> to vector<32x512xf32>
    %22 = arith.addf %20, %21 : vector<32x512xf32>
    %23 = math.tanh %22 : vector<32x512xf32>
    %cst_22 = arith.constant dense<0.000000e+00> : vector<32x512xf32>
    %24 = tpu.matmul %4, %23, %cst_22 {dimension_numbers = #tpu.dot_dimension_numbers<[1], [0], [0], [1], [0, 0, 1, 1], [], []>} : vector<32x32xf32>, vector<32x512xf32>, vector<32x512xf32> -> vector<32x512xf32>
    %25 = vector.broadcast %12 : vector<32x1xf32> to vector<32x512xf32>
    %26 = arith.addf %24, %25 : vector<32x512xf32>
    %27 = math.tanh %26 : vector<32x512xf32>
    %cst_23 = arith.constant dense<0.000000e+00> : vector<32x512xf32>
    %28 = tpu.matmul %6, %27, %cst_23 {dimension_numbers = #tpu.dot_dimension_numbers<[1], [0], [0], [1], [0, 0, 1, 1], [], []>} : vector<32x32xf32>, vector<32x512xf32>, vector<32x512xf32> -> vector<32x512xf32>
    %29 = vector.broadcast %14 : vector<32x1xf32> to vector<32x512xf32>
    %30 = arith.addf %28, %29 : vector<32x512xf32>
    %31 = vector.extract_strided_slice %30 {offsets = [0, 0], sizes = [8, 512], strides = [1, 1]} : vector<32x512xf32> to vector<8x512xf32>
    %c0_24 = arith.constant 0 : index
    %c0_25 = arith.constant 0 : index
    %32 = vector.load %arg5[%c0_24, %c0_25] : memref<8x2048xf32, #tpu.memory_space<vmem>>, vector<8x512xf32>
    tpu.vector_store %arg5[%c0_24, %c0_25], %31 {strides = array<i32>} : memref<8x2048xf32, #tpu.memory_space<vmem>>, vector<8x512xf32>,
    %c0_26 = arith.constant 0 : index
    %c512 = arith.constant 512 : index
    %33 = vector.load %arg1[%c0_26, %c512] : memref<2x2048xf32, #tpu.memory_space<vmem>>, vector<2x512xf32>
    %cst_27 = arith.constant dense<0.000000e+00> : vector<32x512xf32>
    %34 = tpu.matmul %0, %33, %cst_27 {dimension_numbers = #tpu.dot_dimension_numbers<[1], [0], [0], [1], [0, 0, 1, 1], [], []>} : vector<32x2xf32>, vector<2x512xf32>, vector<32x512xf32> -> vector<32x512xf32>
    %35 = vector.broadcast %8 : vector<32x1xf32> to vector<32x512xf32>
    %36 = arith.addf %34, %35 : vector<32x512xf32>
    %37 = math.tanh %36 : vector<32x512xf32>
    %cst_28 = arith.constant dense<0.000000e+00> : vector<32x512xf32>
    %38 = tpu.matmul %2, %37, %cst_28 {dimension_numbers = #tpu.dot_dimension_numbers<[1], [0], [0], [1], [0, 0, 1, 1], [], []>} : vector<32x32xf32>, vector<32x512xf32>, vector<32x512xf32> -> vector<32x512xf32>
    %39 = vector.broadcast %10 : vector<32x1xf32> to vector<32x512xf32>
    %40 = arith.addf %38, %39 : vector<32x512xf32>
    %41 = math.tanh %40 : vector<32x512xf32>
    %cst_29 = arith.constant dense<0.000000e+00> : vector<32x512xf32>
    %42 = tpu.matmul %4, %41, %cst_29 {dimension_numbers = #tpu.dot_dimension_numbers<[1], [0], [0], [1], [0, 0, 1, 1], [], []>} : vector<32x32xf32>, vector<32x512xf32>, vector<32x512xf32> -> vector<32x512xf32>
    %43 = vector.broadcast %12 : vector<32x1xf32> to vector<32x512xf32>
    %44 = arith.addf %42, %43 : vector<32x512xf32>
    %45 = math.tanh %44 : vector<32x512xf32>
    %cst_30 = arith.constant dense<0.000000e+00> : vector<32x512xf32>
    %46 = tpu.matmul %6, %45, %cst_30 {dimension_numbers = #tpu.dot_dimension_numbers<[1], [0], [0], [1], [0, 0, 1, 1], [], []>} : vector<32x32xf32>, vector<32x512xf32>, vector<32x512xf32> -> vector<32x512xf32>
    %47 = vector.broadcast %14 : vector<32x1xf32> to vector<32x512xf32>
    %48 = arith.addf %46, %47 : vector<32x512xf32>
    %49 = vector.extract_strided_slice %48 {offsets = [0, 0], sizes = [8, 512], strides = [1, 1]} : vector<32x512xf32> to vector<8x512xf32>
    %c0_31 = arith.constant 0 : index
    %c512_32 = arith.constant 512 : index
    %50 = vector.load %arg5[%c0_31, %c512_32] : memref<8x2048xf32, #tpu.memory_space<vmem>>, vector<8x512xf32>
    tpu.vector_store %arg5[%c0_31, %c512_32], %49 {strides = array<i32>} : memref<8x2048xf32, #tpu.memory_space<vmem>>, vector<8x512xf32>,
    %c0_33 = arith.constant 0 : index
    %c1024 = arith.constant 1024 : index
    %51 = vector.load %arg1[%c0_33, %c1024] : memref<2x2048xf32, #tpu.memory_space<vmem>>, vector<2x512xf32>
    %cst_34 = arith.constant dense<0.000000e+00> : vector<32x512xf32>
    %52 = tpu.matmul %0, %51, %cst_34 {dimension_numbers = #tpu.dot_dimension_numbers<[1], [0], [0], [1], [0, 0, 1, 1], [], []>} : vector<32x2xf32>, vector<2x512xf32>, vector<32x512xf32> -> vector<32x512xf32>
    %53 = vector.broadcast %8 : vector<32x1xf32> to vector<32x512xf32>
    %54 = arith.addf %52, %53 : vector<32x512xf32>
    %55 = math.tanh %54 : vector<32x512xf32>
    %cst_35 = arith.constant dense<0.000000e+00> : vector<32x512xf32>
    %56 = tpu.matmul %2, %55, %cst_35 {dimension_numbers = #tpu.dot_dimension_numbers<[1], [0], [0], [1], [0, 0, 1, 1], [], []>} : vector<32x32xf32>, vector<32x512xf32>, vector<32x512xf32> -> vector<32x512xf32>
    %57 = vector.broadcast %10 : vector<32x1xf32> to vector<32x512xf32>
    %58 = arith.addf %56, %57 : vector<32x512xf32>
    %59 = math.tanh %58 : vector<32x512xf32>
    %cst_36 = arith.constant dense<0.000000e+00> : vector<32x512xf32>
    %60 = tpu.matmul %4, %59, %cst_36 {dimension_numbers = #tpu.dot_dimension_numbers<[1], [0], [0], [1], [0, 0, 1, 1], [], []>} : vector<32x32xf32>, vector<32x512xf32>, vector<32x512xf32> -> vector<32x512xf32>
    %61 = vector.broadcast %12 : vector<32x1xf32> to vector<32x512xf32>
    %62 = arith.addf %60, %61 : vector<32x512xf32>
    %63 = math.tanh %62 : vector<32x512xf32>
    %cst_37 = arith.constant dense<0.000000e+00> : vector<32x512xf32>
    %64 = tpu.matmul %6, %63, %cst_37 {dimension_numbers = #tpu.dot_dimension_numbers<[1], [0], [0], [1], [0, 0, 1, 1], [], []>} : vector<32x32xf32>, vector<32x512xf32>, vector<32x512xf32> -> vector<32x512xf32>
    %65 = vector.broadcast %14 : vector<32x1xf32> to vector<32x512xf32>
    %66 = arith.addf %64, %65 : vector<32x512xf32>
    %67 = vector.extract_strided_slice %66 {offsets = [0, 0], sizes = [8, 512], strides = [1, 1]} : vector<32x512xf32> to vector<8x512xf32>
    %c0_38 = arith.constant 0 : index
    %c1024_39 = arith.constant 1024 : index
    %68 = vector.load %arg5[%c0_38, %c1024_39] : memref<8x2048xf32, #tpu.memory_space<vmem>>, vector<8x512xf32>
    tpu.vector_store %arg5[%c0_38, %c1024_39], %67 {strides = array<i32>} : memref<8x2048xf32, #tpu.memory_space<vmem>>, vector<8x512xf32>,
    %c0_40 = arith.constant 0 : index
    %c1536 = arith.constant 1536 : index
    %69 = vector.load %arg1[%c0_40, %c1536] : memref<2x2048xf32, #tpu.memory_space<vmem>>, vector<2x512xf32>
    %cst_41 = arith.constant dense<0.000000e+00> : vector<32x512xf32>
    %70 = tpu.matmul %0, %69, %cst_41 {dimension_numbers = #tpu.dot_dimension_numbers<[1], [0], [0], [1], [0, 0, 1, 1], [], []>} : vector<32x2xf32>, vector<2x512xf32>, vector<32x512xf32> -> vector<32x512xf32>
    %71 = vector.broadcast %8 : vector<32x1xf32> to vector<32x512xf32>
    %72 = arith.addf %70, %71 : vector<32x512xf32>
    %73 = math.tanh %72 : vector<32x512xf32>
    %cst_42 = arith.constant dense<0.000000e+00> : vector<32x512xf32>
    %74 = tpu.matmul %2, %73, %cst_42 {dimension_numbers = #tpu.dot_dimension_numbers<[1], [0], [0], [1], [0, 0, 1, 1], [], []>} : vector<32x32xf32>, vector<32x512xf32>, vector<32x512xf32> -> vector<32x512xf32>
    %75 = vector.broadcast %10 : vector<32x1xf32> to vector<32x512xf32>
    %76 = arith.addf %74, %75 : vector<32x512xf32>
    %77 = math.tanh %76 : vector<32x512xf32>
    %cst_43 = arith.constant dense<0.000000e+00> : vector<32x512xf32>
    %78 = tpu.matmul %4, %77, %cst_43 {dimension_numbers = #tpu.dot_dimension_numbers<[1], [0], [0], [1], [0, 0, 1, 1], [], []>} : vector<32x32xf32>, vector<32x512xf32>, vector<32x512xf32> -> vector<32x512xf32>
    %79 = vector.broadcast %12 : vector<32x1xf32> to vector<32x512xf32>
    %80 = arith.addf %78, %79 : vector<32x512xf32>
    %81 = math.tanh %80 : vector<32x512xf32>
    %cst_44 = arith.constant dense<0.000000e+00> : vector<32x512xf32>
    %82 = tpu.matmul %6, %81, %cst_44 {dimension_numbers = #tpu.dot_dimension_numbers<[1], [0], [0], [1], [0, 0, 1, 1], [], []>} : vector<32x32xf32>, vector<32x512xf32>, vector<32x512xf32> -> vector<32x512xf32>
    %83 = vector.broadcast %14 : vector<32x1xf32> to vector<32x512xf32>
    %84 = arith.addf %82, %83 : vector<32x512xf32>
    %85 = vector.extract_strided_slice %84 {offsets = [0, 0], sizes = [8, 512], strides = [1, 1]} : vector<32x512xf32> to vector<8x512xf32>
    %c0_45 = arith.constant 0 : index
    %c1536_46 = arith.constant 1536 : index
    %86 = vector.load %arg5[%c0_45, %c1536_46] : memref<8x2048xf32, #tpu.memory_space<vmem>>, vector<8x512xf32>
    tpu.vector_store %arg5[%c0_45, %c1536_46], %85 {strides = array<i32>} : memref<8x2048xf32, #tpu.memory_space<vmem>>, vector<8x512xf32>,
    return
  }
  func.func @transform_0(%arg0: i32) -> (i32, i32) {
    %c0_i32 = arith.constant 0 : i32
    %c0_i32_0 = arith.constant 0 : i32
    return %c0_i32, %arg0 : i32, i32
  }
  func.func @transform_1(%arg0: i32) -> (i32, i32) {
    %c0_i32 = arith.constant 0 : i32
    %c0_i32_0 = arith.constant 0 : i32
    %c0_i32_1 = arith.constant 0 : i32
    return %c0_i32, %c0_i32_0 : i32, i32
  }
  func.func @transform_2(%arg0: i32) -> (i32, i32, i32) {
    %c0_i32 = arith.constant 0 : i32
    %c0_i32_0 = arith.constant 0 : i32
    %c0_i32_1 = arith.constant 0 : i32
    %c0_i32_2 = arith.constant 0 : i32
    return %c0_i32, %c0_i32_0, %c0_i32_1 : i32, i32, i32
  }
  func.func @transform_3(%arg0: i32) -> (i32, i32, i32) {
    %c0_i32 = arith.constant 0 : i32
    %c0_i32_0 = arith.constant 0 : i32
    %c0_i32_1 = arith.constant 0 : i32
    %c0_i32_2 = arith.constant 0 : i32
    return %c0_i32, %c0_i32_0, %c0_i32_1 : i32, i32, i32
  }
  func.func @transform_4(%arg0: i32) -> (i32, i32) {
    %c0_i32 = arith.constant 0 : i32
    %c0_i32_0 = arith.constant 0 : i32
    return %c0_i32, %arg0 : i32, i32
  }
}

</mosaic_0001>

<llo_original>
// kernel: tpu_custom_call.1
$region0: #{tpu_custom_call.1}
  #allocation0 [shape = 'u32[]', space=smem, size = 0x4, offset = 0x4, fixed_abs, tag = 'smem constant byte address 0x4 - core index']
  #allocation1 [shape = 'u32[144,128]{1,0:T(1,128)}', space=vmem, size = 0x12000, scoped, tag = 'internal scratch']
  %s0 = inlined_call_operand.vmem [shape: f32[2,2048], index: 0, kind: input, shape index: {}]
  %s1 = inlined_call_operand.vmem [shape: f32[32,2], index: 1, kind: input, shape index: {}]
  %s2 = inlined_call_operand.vmem [shape: f32[3,32,32], index: 2, kind: input, shape index: {}]
  %s3 = inlined_call_operand.vmem [shape: f32[4,32,1], index: 3, kind: input, shape index: {}]
  %s4 = inlined_call_operand.hbm [shape: f32[8,2048], index: 4, kind: output, shape index: {}]
  %s5 = sld [smem:[#allocation0]]
  $region26: #{tpu_custom_call.1} parent=0
    _
  %s7 = ssub.s32 1, %s5
  %s8 = scalar_select 0, %s7, %s5
  $region1: #{tpu_custom_call.1} parent=0
    #allocation2 [shape = 'u8[65536]{0}', space=vmem, size = 0x10000, scoped, tag = 'output window, operand 0, single buffered']
    #allocation3 [shape = 's32[1]{0}', space=sflag, size = 0x4, scoped, tag = 'scoped memory for tpu_custom_call.1']
    %9 = vsyncpa [#allocation3], 0
    // Predicated region
    $region2: #{tpu_custom_call.1} parent=1 // pred_check
      _
    $region3: #{tpu_custom_call.1} parent=1 // pred_check_branch
      %11 = sbr.rel (0) target = $region5
    $region4: #{tpu_custom_call.1} parent=1 // pred_region
      _
    $region5: #{tpu_custom_call.1} parent=1 // pred_fallthru
      _
    // Predicated region
    $region6: #{tpu_custom_call.1} parent=1 // pred_check
      _
    $region7: #{tpu_custom_call.1} parent=1 // pred_check_branch
      %13 = sbr.rel (0) target = $region9
    $region8: #{tpu_custom_call.1} parent=1 // pred_region
      _
    $region9: #{tpu_custom_call.1} parent=1 // pred_fallthru
      _
    // Predicated region
    $region10: #{tpu_custom_call.1} parent=1 // pred_check
      _
    $region11: #{tpu_custom_call.1} parent=1 // pred_check_branch
      %15 = sbr.rel (0) target = $region13
    $region12: #{tpu_custom_call.1} parent=1 // pred_region
      _
    $region13: #{tpu_custom_call.1} parent=1 // pred_fallthru
      _
    // Predicated region
    $region14: #{tpu_custom_call.1} parent=1 // pred_check
      _
    $region15: #{tpu_custom_call.1} parent=1 // pred_check_branch
      %17 = sbr.rel (0) target = $region17
    $region16: #{tpu_custom_call.1} parent=1 // pred_region
      _
    $region17: #{tpu_custom_call.1} parent=1 // pred_fallthru
      _
    %v18 = vld [vmem:[%s1] sm:$0xff]
    %v19 = vld [vmem:[%s1 + $0x8] sm:$0xff]
    %v20 = vld [vmem:[%s1 + $0x10] sm:$0xff]
    %v21 = vld [vmem:[%s1 + $0x18] sm:$0xff]
    %v22 = vld [vmem:[%s2] sm:$0xff]
    %v23 = vld [vmem:[%s2 + $0x8] sm:$0xff]
    %v24 = vld [vmem:[%s2 + $0x10] sm:$0xff]
    %v25 = vld [vmem:[%s2 + $0x18] sm:$0xff]
    %s26 = scalar_lea.vmem %s2, 32
    %v27 = vld [vmem:[%s26] sm:$0xff]
    %v28 = vld [vmem:[%s26 + $0x8] sm:$0xff]
    %v29 = vld [vmem:[%s26 + $0x10] sm:$0xff]
    %v30 = vld [vmem:[%s26 + $0x18] sm:$0xff]
    %s31 = scalar_lea.vmem %s2, 64
    %v32 = vld [vmem:[%s31] sm:$0xff]
    %v33 = vld [vmem:[%s31 + $0x8] sm:$0xff]
    %v34 = vld [vmem:[%s31 + $0x10] sm:$0xff]
    %v35 = vld [vmem:[%s31 + $0x18] sm:$0xff]
    %v36 = vld [vmem:[%s3] sm:$0xff]
    %v37 = vld [vmem:[%s3 + $0x8] sm:$0xff]
    %v38 = vld [vmem:[%s3 + $0x10] sm:$0xff]
    %v39 = vld [vmem:[%s3 + $0x18] sm:$0xff]
    %s40 = scalar_lea.vmem %s3, 32
    %v41 = vld [vmem:[%s40] sm:$0xff]
    %v42 = vld [vmem:[%s40 + $0x8] sm:$0xff]
    %v43 = vld [vmem:[%s40 + $0x10] sm:$0xff]
    %v44 = vld [vmem:[%s40 + $0x18] sm:$0xff]
    %s45 = scalar_lea.vmem %s3, 64
    %v46 = vld [vmem:[%s45] sm:$0xff]
    %v47 = vld [vmem:[%s45 + $0x8] sm:$0xff]
    %v48 = vld [vmem:[%s45 + $0x10] sm:$0xff]
    %v49 = vld [vmem:[%s45 + $0x18] sm:$0xff]
    %s50 = scalar_lea.vmem %s3, 96
    %v51 = vld [vmem:[%s50] sm:$0xff]
    %v52 = vld [vmem:[%s50 + $0x8] sm:$0xff]
    %v53 = vld [vmem:[%s50 + $0x10] sm:$0xff]
    %v54 = vld [vmem:[%s50 + $0x18] sm:$0xff]
    %v55 = vld [vmem:[%s0] sm:$0xff]
    %57 = vset.pattern.permute.xlu0 0
    %58 = vperm.xlu0 %57, %v36
    %v59 = vpop.permute.xlu0 %58
    %62 = vset.pattern.permute.xlu0 0
    %63 = vperm.xlu0 %62, %v37
    %v64 = vpop.permute.xlu0 %63
    %67 = vset.pattern.permute.xlu0 0
    %68 = vperm.xlu0 %67, %v38
    %v69 = vpop.permute.xlu0 %68
    %72 = vset.pattern.permute.xlu0 0
    %73 = vperm.xlu0 %72, %v39
    %v74 = vpop.permute.xlu0 %73
    %v77 = vcombine.high %v55, %v55
    %v79 = vunpack.c.l.s4 1983009808
    %v80 = vunpack.c.0.s8 %v79
    %v81 = vlaneseq
    %v82 = vshrl.u32 %v81, 7
    %v83 = vsub.s32 %v80, %v82
    %v84 = vrot.slane %v55, %v83
    %v86 = vunpack.c.l.s4 1983009808
    %v87 = vunpack.c.0.s8 %v86
    %v88 = vlaneseq
    %v89 = vshrl.u32 %v88, 7
    %v90 = vsub.s32 %v87, %v89
    %v91 = vrot.slane %v77, %v90
    %v92 = vcombine.high %v84, %v84
    %v93 = vcombine.high %v91, %v91
    %vm94 = vcmask 15360
    %v96 = vsel %vm94, %v18, 0
    %v99 = vsel %vm94, %v19, 0
    %v102 = vsel %vm94, %v20, 0
    %v105 = vsel %vm94, %v21, 0
    %vm107 = vcmask 1041408
    %v108 = vsel %vm107, %v84, 0
    %v110 = vsel %vm107, %v92, 0
    %v112 = vsel %vm107, %v91, 0
    %v114 = vsel %vm107, %v93, 0
    %116 = vmatprep.subr.mxu0 0.0
    %117 = vmatpush1.msra.mxu0 0.0
    %118 = vmatprep.subr.mxu0 0.0
    %119 = vmatpush1.msra.mxu0 0.0
    %120 = vmatprep.subr.mxu0 0.0
    %121 = vmatpush1.msra.mxu0 0.0
    %122 = vmatprep.subr.mxu0 0.0
    %123 = vmatpush1.msra.mxu0 0.0
    %124 = vmatprep.subr.mxu0 0.0
    %125 = vmatpush1.msra.mxu0 0.0
    %126 = vmatprep.subr.mxu0 0.0
    %127 = vmatpush1.msra.mxu0 0.0
    %128 = vmatprep.subr.mxu0 0.0
    %129 = vmatpush1.msra.mxu0 0.0
    %130 = vmatprep.subr.mxu0 0.0
    %131 = vmatpush1.msra.mxu0 0.0
    %132 = vmatprep.subr.mxu0 0.0
    %133 = vmatpush1.msra.mxu0 0.0
    %134 = vmatprep.subr.mxu0 0.0
    %135 = vmatpush1.msra.mxu0 0.0
    %136 = vmatprep.subr.mxu0 0.0
    %137 = vmatpush1.msra.mxu0 0.0
    %138 = vmatprep.subr.mxu0 0.0
    %139 = vmatpush1.msra.mxu0 0.0
    %140 = vmatprep.subr.mxu0 0.0
    %141 = vmatpush1.msra.mxu0 0.0
    %142 = vmatprep.subr.mxu0 0.0
    %143 = vmatpush1.msra.mxu0 0.0
    %144 = vmatprep.subr.mxu0 0.0
    %145 = vmatpush1.msra.mxu0 0.0
    %146 = vmatprep.subr.mxu0 %v110
    %147 = vmatpush1.msra.mxu0 %v108
    %148 = vmatprep.subr.mxu0 0.0
    %149 = vmatpush2.msra.mxu0 0.0
    %150 = vmatprep.subr.mxu0 0.0
    %151 = vmatpush2.msra.mxu0 0.0
    %152 = vmatprep.subr.mxu0 0.0
    %153 = vmatpush2.msra.mxu0 0.0
    %154 = vmatprep.subr.mxu0 0.0
    %155 = vmatpush2.msra.mxu0 0.0
    %156 = vmatprep.subr.mxu0 0.0
    %157 = vmatpush2.msra.mxu0 0.0
    %158 = vmatprep.subr.mxu0 0.0
    %159 = vmatpush2.msra.mxu0 0.0
    %160 = vmatprep.subr.mxu0 0.0
    %161 = vmatpush2.msra.mxu0 0.0
    %162 = vmatprep.subr.mxu0 0.0
    %163 = vmatpush2.msra.mxu0 0.0
    %164 = vmatprep.subr.mxu0 0.0
    %165 = vmatpush2.msra.mxu0 0.0
    %166 = vmatprep.subr.mxu0 0.0
    %167 = vmatpush2.msra.mxu0 0.0
    %168 = vmatprep.subr.mxu0 0.0
    %169 = vmatpush2.msra.mxu0 0.0
    %170 = vmatprep.subr.mxu0 0.0
    %171 = vmatpush2.msra.mxu0 0.0
    %172 = vmatprep.subr.mxu0 0.0
    %173 = vmatpush2.msra.mxu0 0.0
    %174 = vmatprep.subr.mxu0 0.0
    %175 = vmatpush2.msra.mxu0 0.0
    %176 = vmatprep.subr.mxu0 0.0
    %177 = vmatpush2.msra.mxu0 0.0
    %178 = vmatprep.subr.mxu0 0.0
    %179 = vmatpush2.msra.mxu0 0.0
    %180 = vmatprep.mubr.f32.mxu0 0.0
    %181 = vmatmul.mubr.f32.gmra.mxu0 %v96
    %v182 = vpop.f32.mrf.mxu0
    %v183 = vadd.f32 %v59, %v182
    %v184 = vpop.f32.mrf.mxu0
    %v185 = vadd.f32 %v59, %v184
    %186 = vmatprep.mubr.f32.mxu0 0.0
    %187 = vmatmul.mubr.f32.gmra.mxu0 %v99
    %v188 = vpop.f32.mrf.mxu0
    %v189 = vadd.f32 %v64, %v188
    %v190 = vpop.f32.mrf.mxu0
    %v191 = vadd.f32 %v64, %v190
    %192 = vmatprep.mubr.f32.mxu0 0.0
    %193 = vmatmul.mubr.f32.gmra.mxu0 %v102
    %v194 = vpop.f32.mrf.mxu0
    %v195 = vadd.f32 %v69, %v194
    %v196 = vpop.f32.mrf.mxu0
    %v197 = vadd.f32 %v69, %v196
    %198 = vmatprep.mubr.f32.mxu0 0.0
    %199 = vmatmul.mubr.f32.gmra.mxu0 %v105
    %v200 = vpop.f32.mrf.mxu0
    %v201 = vadd.f32 %v74, %v200
    %v202 = vpop.f32.mrf.mxu0
    %v203 = vadd.f32 %v74, %v202
    %204 = vdwg.mxu0
    %205 = vmatprep.subr.mxu0 0.0
    %206 = vmatpush1.msra.mxu0 0.0
    %207 = vmatprep.subr.mxu0 0.0
    %208 = vmatpush1.msra.mxu0 0.0
    %209 = vmatprep.subr.mxu0 0.0
    %210 = vmatpush1.msra.mxu0 0.0
    %211 = vmatprep.subr.mxu0 0.0
    %212 = vmatpush1.msra.mxu0 0.0
    %213 = vmatprep.subr.mxu0 0.0
    %214 = vmatpush1.msra.mxu0 0.0
    %215 = vmatprep.subr.mxu0 0.0
    %216 = vmatpush1.msra.mxu0 0.0
    %217 = vmatprep.subr.mxu0 0.0
    %218 = vmatpush1.msra.mxu0 0.0
    %219 = vmatprep.subr.mxu0 0.0
    %220 = vmatpush1.msra.mxu0 0.0
    %221 = vmatprep.subr.mxu0 0.0
    %222 = vmatpush1.msra.mxu0 0.0
    %223 = vmatprep.subr.mxu0 0.0
    %224 = vmatpush1.msra.mxu0 0.0
    %225 = vmatprep.subr.mxu0 0.0
    %226 = vmatpush1.msra.mxu0 0.0
    %227 = vmatprep.subr.mxu0 0.0
    %228 = vmatpush1.msra.mxu0 0.0
    %229 = vmatprep.subr.mxu0 0.0
    %230 = vmatpush1.msra.mxu0 0.0
    %231 = vmatprep.subr.mxu0 0.0
    %232 = vmatpush1.msra.mxu0 0.0
    %233 = vmatprep.subr.mxu0 0.0
    %234 = vmatpush1.msra.mxu0 0.0
    %235 = vmatprep.subr.mxu0 %v114
    %236 = vmatpush1.msra.mxu0 %v112
    %237 = vmatprep.subr.mxu0 0.0
    %238 = vmatpush2.msra.mxu0 0.0
    %239 = vmatprep.subr.mxu0 0.0
    %240 = vmatpush2.msra.mxu0 0.0
    %241 = vmatprep.subr.mxu0 0.0
    %242 = vmatpush2.msra.mxu0 0.0
    %243 = vmatprep.subr.mxu0 0.0
    %244 = vmatpush2.msra.mxu0 0.0
    %245 = vmatprep.subr.mxu0 0.0
    %246 = vmatpush2.msra.mxu0 0.0
    %247 = vmatprep.subr.mxu0 0.0
    %248 = vmatpush2.msra.mxu0 0.0
    %249 = vmatprep.subr.mxu0 0.0
    %250 = vmatpush2.msra.mxu0 0.0
    %251 = vmatprep.subr.mxu0 0.0
    %252 = vmatpush2.msra.mxu0 0.0
    %253 = vmatprep.subr.mxu0 0.0
    %254 = vmatpush2.msra.mxu0 0.0
    %255 = vmatprep.subr.mxu0 0.0
    %256 = vmatpush2.msra.mxu0 0.0
    %257 = vmatprep.subr.mxu0 0.0
    %258 = vmatpush2.msra.mxu0 0.0
    %259 = vmatprep.subr.mxu0 0.0
    %260 = vmatpush2.msra.mxu0 0.0
    %261 = vmatprep.subr.mxu0 0.0
    %262 = vmatpush2.msra.mxu0 0.0
    %263 = vmatprep.subr.mxu0 0.0
    %264 = vmatpush2.msra.mxu0 0.0
    %265 = vmatprep.subr.mxu0 0.0
    %266 = vmatpush2.msra.mxu0 0.0
    %267 = vmatprep.subr.mxu0 0.0
    %268 = vmatpush2.msra.mxu0 0.0
    %269 = vmatprep.mubr.f32.mxu0 0.0
    %270 = vmatmul.mubr.f32.gmra.mxu0 %v96
    %v271 = vpop.f32.mrf.mxu0
    %v272 = vadd.f32 %v59, %v271
    %v273 = vpop.f32.mrf.mxu0
    %v274 = vadd.f32 %v59, %v273
    %275 = vmatprep.mubr.f32.mxu0 0.0
    %276 = vmatmul.mubr.f32.gmra.mxu0 %v99
    %v277 = vpop.f32.mrf.mxu0
    %v278 = vadd.f32 %v64, %v277
    %v279 = vpop.f32.mrf.mxu0
    %v280 = vadd.f32 %v64, %v279
    %281 = vmatprep.mubr.f32.mxu0 0.0
    %282 = vmatmul.mubr.f32.gmra.mxu0 %v102
    %v283 = vpop.f32.mrf.mxu0
    %v284 = vadd.f32 %v69, %v283
    %v285 = vpop.f32.mrf.mxu0
    %v286 = vadd.f32 %v69, %v285
    %287 = vmatprep.mubr.f32.mxu0 0.0
    %288 = vmatmul.mubr.f32.gmra.mxu0 %v105
    %v289 = vpop.f32.mrf.mxu0
    %v290 = vadd.f32 %v74, %v289
    %v291 = vpop.f32.mrf.mxu0
    %v292 = vadd.f32 %v74, %v291
    %293 = vdwg.mxu0
    %v294 = vtanh.pop %v183
    %v295 = vtanh.pop %v185
    %v296 = vtanh.pop %v272
    %v297 = vtanh.pop %v274
    %v298 = vtanh.pop %v189
    %v299 = vtanh.pop %v191
    %v300 = vtanh.pop %v278
    %v301 = vtanh.pop %v280
    %v302 = vtanh.pop %v195
    %v303 = vtanh.pop %v197
    %v304 = vtanh.pop %v284
    %v305 = vtanh.pop %v286
    %v306 = vtanh.pop %v201
    %v307 = vtanh.pop %v203
    %v308 = vtanh.pop %v290
    %v309 = vtanh.pop %v292
    %311 = vset.pattern.permute.xlu0 0
    %312 = vperm.xlu0 %311, %v41
    %v313 = vpop.permute.xlu0 %312
    %316 = vset.pattern.permute.xlu0 0
    %317 = vperm.xlu0 %316, %v42
    %v318 = vpop.permute.xlu0 %317
    %321 = vset.pattern.permute.xlu0 0
    %322 = vperm.xlu0 %321, %v43
    %v323 = vpop.permute.xlu0 %322
    %326 = vset.pattern.permute.xlu0 0
    %327 = vperm.xlu0 %326, %v44
    %v328 = vpop.permute.xlu0 %327
    %vm330 = vcmask 261120
    %v332 = vsel %vm330, %v22, 0
    %v335 = vsel %vm330, %v23, 0
    %v338 = vsel %vm330, %v24, 0
    %v341 = vsel %vm330, %v25, 0
    %343 = vmatprep.subr.mxu0 0.0
    %344 = vmatpush1.msra.mxu0 0.0
    %345 = vmatprep.subr.mxu0 0.0
    %346 = vmatpush1.msra.mxu0 0.0
    %347 = vmatprep.subr.mxu0 0.0
    %348 = vmatpush1.msra.mxu0 0.0
    %349 = vmatprep.subr.mxu0 0.0
    %350 = vmatpush1.msra.mxu0 0.0
    %351 = vmatprep.subr.mxu0 0.0
    %352 = vmatpush1.msra.mxu0 0.0
    %353 = vmatprep.subr.mxu0 0.0
    %354 = vmatpush1.msra.mxu0 0.0
    %355 = vmatprep.subr.mxu0 0.0
    %356 = vmatpush1.msra.mxu0 0.0
    %357 = vmatprep.subr.mxu0 0.0
    %358 = vmatpush1.msra.mxu0 0.0
    %359 = vmatprep.subr.mxu0 0.0
    %360 = vmatpush1.msra.mxu0 0.0
    %361 = vmatprep.subr.mxu0 0.0
    %362 = vmatpush1.msra.mxu0 0.0
    %363 = vmatprep.subr.mxu0 0.0
    %364 = vmatpush1.msra.mxu0 0.0
    %365 = vmatprep.subr.mxu0 0.0
    %366 = vmatpush1.msra.mxu0 0.0
    %367 = vmatprep.subr.mxu0 %v307
    %368 = vmatpush1.msra.mxu0 %v306
    %369 = vmatprep.subr.mxu0 %v303
    %370 = vmatpush1.msra.mxu0 %v302
    %371 = vmatprep.subr.mxu0 %v299
    %372 = vmatpush1.msra.mxu0 %v298
    %373 = vmatprep.subr.mxu0 %v295
    %374 = vmatpush1.msra.mxu0 %v294
    %375 = vmatprep.subr.mxu0 0.0
    %376 = vmatpush2.msra.mxu0 0.0
    %377 = vmatprep.subr.mxu0 0.0
    %378 = vmatpush2.msra.mxu0 0.0
    %379 = vmatprep.subr.mxu0 0.0
    %380 = vmatpush2.msra.mxu0 0.0
    %381 = vmatprep.subr.mxu0 0.0
    %382 = vmatpush2.msra.mxu0 0.0
    %383 = vmatprep.subr.mxu0 0.0
    %384 = vmatpush2.msra.mxu0 0.0
    %385 = vmatprep.subr.mxu0 0.0
    %386 = vmatpush2.msra.mxu0 0.0
    %387 = vmatprep.subr.mxu0 0.0
    %388 = vmatpush2.msra.mxu0 0.0
    %389 = vmatprep.subr.mxu0 0.0
    %390 = vmatpush2.msra.mxu0 0.0
    %391 = vmatprep.subr.mxu0 0.0
    %392 = vmatpush2.msra.mxu0 0.0
    %393 = vmatprep.subr.mxu0 0.0
    %394 = vmatpush2.msra.mxu0 0.0
    %395 = vmatprep.subr.mxu0 0.0
    %396 = vmatpush2.msra.mxu0 0.0
    %397 = vmatprep.subr.mxu0 0.0
    %398 = vmatpush2.msra.mxu0 0.0
    %399 = vmatprep.subr.mxu0 0.0
    %400 = vmatpush2.msra.mxu0 0.0
    %401 = vmatprep.subr.mxu0 0.0
    %402 = vmatpush2.msra.mxu0 0.0
    %403 = vmatprep.subr.mxu0 0.0
    %404 = vmatpush2.msra.mxu0 0.0
    %405 = vmatprep.subr.mxu0 0.0
    %406 = vmatpush2.msra.mxu0 0.0
    %407 = vmatprep.mubr.f32.mxu0 0.0
    %408 = vmatmul.mubr.f32.gmra.mxu0 %v332
    %v409 = vpop.f32.mrf.mxu0
    %v410 = vadd.f32 %v313, %v409
    %v411 = vpop.f32.mrf.mxu0
    %v412 = vadd.f32 %v313, %v411
    %413 = vmatprep.mubr.f32.mxu0 0.0
    %414 = vmatmul.mubr.f32.gmra.mxu0 %v335
    %v415 = vpop.f32.mrf.mxu0
    %v416 = vadd.f32 %v318, %v415
    %v417 = vpop.f32.mrf.mxu0
    %v418 = vadd.f32 %v318, %v417
    %419 = vmatprep.mubr.f32.mxu0 0.0
    %420 = vmatmul.mubr.f32.gmra.mxu0 %v338
    %v421 = vpop.f32.mrf.mxu0
    %v422 = vadd.f32 %v323, %v421
    %v423 = vpop.f32.mrf.mxu0
    %v424 = vadd.f32 %v323, %v423
    %425 = vmatprep.mubr.f32.mxu0 0.0
    %426 = vmatmul.mubr.f32.gmra.mxu0 %v341
    %v427 = vpop.f32.mrf.mxu0
    %v428 = vadd.f32 %v328, %v427
    %v429 = vpop.f32.mrf.mxu0
    %v430 = vadd.f32 %v328, %v429
    %431 = vdwg.mxu0
    %432 = vmatprep.subr.mxu0 0.0
    %433 = vmatpush1.msra.mxu0 0.0
    %434 = vmatprep.subr.mxu0 0.0
    %435 = vmatpush1.msra.mxu0 0.0
    %436 = vmatprep.subr.mxu0 0.0
    %437 = vmatpush1.msra.mxu0 0.0
    %438 = vmatprep.subr.mxu0 0.0
    %439 = vmatpush1.msra.mxu0 0.0
    %440 = vmatprep.subr.mxu0 0.0
    %441 = vmatpush1.msra.mxu0 0.0
    %442 = vmatprep.subr.mxu0 0.0
    %443 = vmatpush1.msra.mxu0 0.0
    %444 = vmatprep.subr.mxu0 0.0
    %445 = vmatpush1.msra.mxu0 0.0
    %446 = vmatprep.subr.mxu0 0.0
    %447 = vmatpush1.msra.mxu0 0.0
    %448 = vmatprep.subr.mxu0 0.0
    %449 = vmatpush1.msra.mxu0 0.0
    %450 = vmatprep.subr.mxu0 0.0
    %451 = vmatpush1.msra.mxu0 0.0
    %452 = vmatprep.subr.mxu0 0.0
    %453 = vmatpush1.msra.mxu0 0.0
    %454 = vmatprep.subr.mxu0 0.0
    %455 = vmatpush1.msra.mxu0 0.0
    %456 = vmatprep.subr.mxu0 %v309
    %457 = vmatpush1.msra.mxu0 %v308
    %458 = vmatprep.subr.mxu0 %v305
    %459 = vmatpush1.msra.mxu0 %v304
    %460 = vmatprep.subr.mxu0 %v301
    %461 = vmatpush1.msra.mxu0 %v300
    %462 = vmatprep.subr.mxu0 %v297
    %463 = vmatpush1.msra.mxu0 %v296
    %464 = vmatprep.subr.mxu0 0.0
    %465 = vmatpush2.msra.mxu0 0.0
    %466 = vmatprep.subr.mxu0 0.0
    %467 = vmatpush2.msra.mxu0 0.0
    %468 = vmatprep.subr.mxu0 0.0
    %469 = vmatpush2.msra.mxu0 0.0
    %470 = vmatprep.subr.mxu0 0.0
    %471 = vmatpush2.msra.mxu0 0.0
    %472 = vmatprep.subr.mxu0 0.0
    %473 = vmatpush2.msra.mxu0 0.0
    %474 = vmatprep.subr.mxu0 0.0
    %475 = vmatpush2.msra.mxu0 0.0
    %476 = vmatprep.subr.mxu0 0.0
    %477 = vmatpush2.msra.mxu0 0.0
    %478 = vmatprep.subr.mxu0 0.0
    %479 = vmatpush2.msra.mxu0 0.0
    %480 = vmatprep.subr.mxu0 0.0
    %481 = vmatpush2.msra.mxu0 0.0
    %482 = vmatprep.subr.mxu0 0.0
    %483 = vmatpush2.msra.mxu0 0.0
    %484 = vmatprep.subr.mxu0 0.0
    %485 = vmatpush2.msra.mxu0 0.0
    %486 = vmatprep.subr.mxu0 0.0
    %487 = vmatpush2.msra.mxu0 0.0
    %488 = vmatprep.subr.mxu0 0.0
    %489 = vmatpush2.msra.mxu0 0.0
    %490 = vmatprep.subr.mxu0 0.0
    %491 = vmatpush2.msra.mxu0 0.0
    %492 = vmatprep.subr.mxu0 0.0
    %493 = vmatpush2.msra.mxu0 0.0
    %494 = vmatprep.subr.mxu0 0.0
    %495 = vmatpush2.msra.mxu0 0.0
    %496 = vmatprep.mubr.f32.mxu0 0.0
    %497 = vmatmul.mubr.f32.gmra.mxu0 %v332
    %v498 = vpop.f32.mrf.mxu0
    %v499 = vadd.f32 %v313, %v498
    %v500 = vpop.f32.mrf.mxu0
    %v501 = vadd.f32 %v313, %v500
    %502 = vmatprep.mubr.f32.mxu0 0.0
    %503 = vmatmul.mubr.f32.gmra.mxu0 %v335
    %v504 = vpop.f32.mrf.mxu0
    %v505 = vadd.f32 %v318, %v504
    %v506 = vpop.f32.mrf.mxu0
    %v507 = vadd.f32 %v318, %v506
    %508 = vmatprep.mubr.f32.mxu0 0.0
    %509 = vmatmul.mubr.f32.gmra.mxu0 %v338
    %v510 = vpop.f32.mrf.mxu0
    %v511 = vadd.f32 %v323, %v510
    %v512 = vpop.f32.mrf.mxu0
    %v513 = vadd.f32 %v323, %v512
    %514 = vmatprep.mubr.f32.mxu0 0.0
    %515 = vmatmul.mubr.f32.gmra.mxu0 %v341
    %v516 = vpop.f32.mrf.mxu0
    %v517 = vadd.f32 %v328, %v516
    %v518 = vpop.f32.mrf.mxu0
    %v519 = vadd.f32 %v328, %v518
    %520 = vdwg.mxu0
    %v521 = vtanh.pop %v410
    %v522 = vtanh.pop %v412
    %v523 = vtanh.pop %v499
    %v524 = vtanh.pop %v501
    %v525 = vtanh.pop %v416
    %v526 = vtanh.pop %v418
    %v527 = vtanh.pop %v505
    %v528 = vtanh.pop %v507
    %v529 = vtanh.pop %v422
    %v530 = vtanh.pop %v424
    %v531 = vtanh.pop %v511
    %v532 = vtanh.pop %v513
    %v533 = vtanh.pop %v428
    %v534 = vtanh.pop %v430
    %v535 = vtanh.pop %v517
    %v536 = vtanh.pop %v519
    %538 = vset.pattern.permute.xlu0 0
    %539 = vperm.xlu0 %538, %v46
    %v540 = vpop.permute.xlu0 %539
    %543 = vset.pattern.permute.xlu0 0
    %544 = vperm.xlu0 %543, %v47
    %v545 = vpop.permute.xlu0 %544
    %548 = vset.pattern.permute.xlu0 0
    %549 = vperm.xlu0 %548, %v48
    %v550 = vpop.permute.xlu0 %549
    %553 = vset.pattern.permute.xlu0 0
    %554 = vperm.xlu0 %553, %v49
    %v555 = vpop.permute.xlu0 %554
    %v558 = vsel %vm330, %v27, 0
    %v561 = vsel %vm330, %v28, 0
    %v564 = vsel %vm330, %v29, 0
    %v567 = vsel %vm330, %v30, 0
    %569 = vmatprep.subr.mxu0 0.0
    %570 = vmatpush1.msra.mxu0 0.0
    %571 = vmatprep.subr.mxu0 0.0
    %572 = vmatpush1.msra.mxu0 0.0
    %573 = vmatprep.subr.mxu0 0.0
    %574 = vmatpush1.msra.mxu0 0.0
    %575 = vmatprep.subr.mxu0 0.0
    %576 = vmatpush1.msra.mxu0 0.0
    %577 = vmatprep.subr.mxu0 0.0
    %578 = vmatpush1.msra.mxu0 0.0
    %579 = vmatprep.subr.mxu0 0.0
    %580 = vmatpush1.msra.mxu0 0.0
    %581 = vmatprep.subr.mxu0 0.0
    %582 = vmatpush1.msra.mxu0 0.0
    %583 = vmatprep.subr.mxu0 0.0
    %584 = vmatpush1.msra.mxu0 0.0
    %585 = vmatprep.subr.mxu0 0.0
    %586 = vmatpush1.msra.mxu0 0.0
    %587 = vmatprep.subr.mxu0 0.0
    %588 = vmatpush1.msra.mxu0 0.0
    %589 = vmatprep.subr.mxu0 0.0
    %590 = vmatpush1.msra.mxu0 0.0
    %591 = vmatprep.subr.mxu0 0.0
    %592 = vmatpush1.msra.mxu0 0.0
    %593 = vmatprep.subr.mxu0 %v534
    %594 = vmatpush1.msra.mxu0 %v533
    %595 = vmatprep.subr.mxu0 %v530
    %596 = vmatpush1.msra.mxu0 %v529
    %597 = vmatprep.subr.mxu0 %v526
    %598 = vmatpush1.msra.mxu0 %v525
    %599 = vmatprep.subr.mxu0 %v522
    %600 = vmatpush1.msra.mxu0 %v521
    %601 = vmatprep.subr.mxu0 0.0
    %602 = vmatpush2.msra.mxu0 0.0
    %603 = vmatprep.subr.mxu0 0.0
    %604 = vmatpush2.msra.mxu0 0.0
    %605 = vmatprep.subr.mxu0 0.0
    %606 = vmatpush2.msra.mxu0 0.0
    %607 = vmatprep.subr.mxu0 0.0
    %608 = vmatpush2.msra.mxu0 0.0
    %609 = vmatprep.subr.mxu0 0.0
    %610 = vmatpush2.msra.mxu0 0.0
    %611 = vmatprep.subr.mxu0 0.0
    %612 = vmatpush2.msra.mxu0 0.0
    %613 = vmatprep.subr.mxu0 0.0
    %614 = vmatpush2.msra.mxu0 0.0
    %615 = vmatprep.subr.mxu0 0.0
    %616 = vmatpush2.msra.mxu0 0.0
    %617 = vmatprep.subr.mxu0 0.0
    %618 = vmatpush2.msra.mxu0 0.0
    %619 = vmatprep.subr.mxu0 0.0
    %620 = vmatpush2.msra.mxu0 0.0
    %621 = vmatprep.subr.mxu0 0.0
    %622 = vmatpush2.msra.mxu0 0.0
    %623 = vmatprep.subr.mxu0 0.0
    %624 = vmatpush2.msra.mxu0 0.0
    %625 = vmatprep.subr.mxu0 0.0
    %626 = vmatpush2.msra.mxu0 0.0
    %627 = vmatprep.subr.mxu0 0.0
    %628 = vmatpush2.msra.mxu0 0.0
    %629 = vmatprep.subr.mxu0 0.0
    %630 = vmatpush2.msra.mxu0 0.0
    %631 = vmatprep.subr.mxu0 0.0
    %632 = vmatpush2.msra.mxu0 0.0
    %633 = vmatprep.mubr.f32.mxu0 0.0
    %634 = vmatmul.mubr.f32.gmra.mxu0 %v558
    %v635 = vpop.f32.mrf.mxu0
    %v636 = vadd.f32 %v540, %v635
    %v637 = vpop.f32.mrf.mxu0
    %v638 = vadd.f32 %v540, %v637
    %639 = vmatprep.mubr.f32.mxu0 0.0
    %640 = vmatmul.mubr.f32.gmra.mxu0 %v561
    %v641 = vpop.f32.mrf.mxu0
    %v642 = vadd.f32 %v545, %v641
    %v643 = vpop.f32.mrf.mxu0
    %v644 = vadd.f32 %v545, %v643
    %645 = vmatprep.mubr.f32.mxu0 0.0
    %646 = vmatmul.mubr.f32.gmra.mxu0 %v564
    %v647 = vpop.f32.mrf.mxu0
    %v648 = vadd.f32 %v550, %v647
    %v649 = vpop.f32.mrf.mxu0
    %v650 = vadd.f32 %v550, %v649
    %651 = vmatprep.mubr.f32.mxu0 0.0
    %652 = vmatmul.mubr.f32.gmra.mxu0 %v567
    %v653 = vpop.f32.mrf.mxu0
    %v654 = vadd.f32 %v555, %v653
    %v655 = vpop.f32.mrf.mxu0
    %v656 = vadd.f32 %v555, %v655
    %657 = vdwg.mxu0
    %658 = vmatprep.subr.mxu0 0.0
    %659 = vmatpush1.msra.mxu0 0.0
    %660 = vmatprep.subr.mxu0 0.0
    %661 = vmatpush1.msra.mxu0 0.0
    %662 = vmatprep.subr.mxu0 0.0
    %663 = vmatpush1.msra.mxu0 0.0
    %664 = vmatprep.subr.mxu0 0.0
    %665 = vmatpush1.msra.mxu0 0.0
    %666 = vmatprep.subr.mxu0 0.0
    %667 = vmatpush1.msra.mxu0 0.0
    %668 = vmatprep.subr.mxu0 0.0
    %669 = vmatpush1.msra.mxu0 0.0
    %670 = vmatprep.subr.mxu0 0.0
    %671 = vmatpush1.msra.mxu0 0.0
    %672 = vmatprep.subr.mxu0 0.0
    %673 = vmatpush1.msra.mxu0 0.0
    %674 = vmatprep.subr.mxu0 0.0
    %675 = vmatpush1.msra.mxu0 0.0
    %676 = vmatprep.subr.mxu0 0.0
    %677 = vmatpush1.msra.mxu0 0.0
    %678 = vmatprep.subr.mxu0 0.0
    %679 = vmatpush1.msra.mxu0 0.0
    %680 = vmatprep.subr.mxu0 0.0
    %681 = vmatpush1.msra.mxu0 0.0
    %682 = vmatprep.subr.mxu0 %v536
    %683 = vmatpush1.msra.mxu0 %v535
    %684 = vmatprep.subr.mxu0 %v532
    %685 = vmatpush1.msra.mxu0 %v531
    %686 = vmatprep.subr.mxu0 %v528
    %687 = vmatpush1.msra.mxu0 %v527
    %688 = vmatprep.subr.mxu0 %v524
    %689 = vmatpush1.msra.mxu0 %v523
    %690 = vmatprep.subr.mxu0 0.0
    %691 = vmatpush2.msra.mxu0 0.0
    %692 = vmatprep.subr.mxu0 0.0
    %693 = vmatpush2.msra.mxu0 0.0
    %694 = vmatprep.subr.mxu0 0.0
    %695 = vmatpush2.msra.mxu0 0.0
    %696 = vmatprep.subr.mxu0 0.0
    %697 = vmatpush2.msra.mxu0 0.0
    %698 = vmatprep.subr.mxu0 0.0
    %699 = vmatpush2.msra.mxu0 0.0
    %700 = vmatprep.subr.mxu0 0.0
    %701 = vmatpush2.msra.mxu0 0.0
    %702 = vmatprep.subr.mxu0 0.0
    %703 = vmatpush2.msra.mxu0 0.0
    %704 = vmatprep.subr.mxu0 0.0
    %705 = vmatpush2.msra.mxu0 0.0
    %706 = vmatprep.subr.mxu0 0.0
    %707 = vmatpush2.msra.mxu0 0.0
    %708 = vmatprep.subr.mxu0 0.0
    %709 = vmatpush2.msra.mxu0 0.0
    %710 = vmatprep.subr.mxu0 0.0
    %711 = vmatpush2.msra.mxu0 0.0
    %712 = vmatprep.subr.mxu0 0.0
    %713 = vmatpush2.msra.mxu0 0.0
    %714 = vmatprep.subr.mxu0 0.0
    %715 = vmatpush2.msra.mxu0 0.0
    %716 = vmatprep.subr.mxu0 0.0
    %717 = vmatpush2.msra.mxu0 0.0
    %718 = vmatprep.subr.mxu0 0.0
    %719 = vmatpush2.msra.mxu0 0.0
    %720 = vmatprep.subr.mxu0 0.0
    %721 = vmatpush2.msra.mxu0 0.0
    %722 = vmatprep.mubr.f32.mxu0 0.0
    %723 = vmatmul.mubr.f32.gmra.mxu0 %v558
    %v724 = vpop.f32.mrf.mxu0
    %v725 = vadd.f32 %v540, %v724
    %v726 = vpop.f32.mrf.mxu0
    %v727 = vadd.f32 %v540, %v726
    %728 = vmatprep.mubr.f32.mxu0 0.0
    %729 = vmatmul.mubr.f32.gmra.mxu0 %v561
    %v730 = vpop.f32.mrf.mxu0
    %v731 = vadd.f32 %v545, %v730
    %v732 = vpop.f32.mrf.mxu0
    %v733 = vadd.f32 %v545, %v732
    %734 = vmatprep.mubr.f32.mxu0 0.0
    %735 = vmatmul.mubr.f32.gmra.mxu0 %v564
    %v736 = vpop.f32.mrf.mxu0
    %v737 = vadd.f32 %v550, %v736
    %v738 = vpop.f32.mrf.mxu0
    %v739 = vadd.f32 %v550, %v738
    %740 = vmatprep.mubr.f32.mxu0 0.0
    %741 = vmatmul.mubr.f32.gmra.mxu0 %v567
    %v742 = vpop.f32.mrf.mxu0
    %v743 = vadd.f32 %v555, %v742
    %v744 = vpop.f32.mrf.mxu0
    %v745 = vadd.f32 %v555, %v744
    %746 = vdwg.mxu0
    %v747 = vtanh.pop %v636
    %v748 = vtanh.pop %v638
    %v749 = vtanh.pop %v725
    %v750 = vtanh.pop %v727
    %v751 = vtanh.pop %v642
    %v752 = vtanh.pop %v644
    %v753 = vtanh.pop %v731
    %v754 = vtanh.pop %v733
    %v755 = vtanh.pop %v648
    %v756 = vtanh.pop %v650
    %v757 = vtanh.pop %v737
    %v758 = vtanh.pop %v739
    %v759 = vtanh.pop %v654
    %v760 = vtanh.pop %v656
    %v761 = vtanh.pop %v743
    %v762 = vtanh.pop %v745
    %764 = vset.pattern.permute.xlu0 0
    %765 = vperm.xlu0 %764, %v51
    %v766 = vpop.permute.xlu0 %765
    %769 = vset.pattern.permute.xlu0 0
    %770 = vperm.xlu0 %769, %v52
    %v771 = vpop.permute.xlu0 %770
    %773 = vset.pattern.permute.xlu0 0
    %774 = vperm.xlu0 %773, %v53
    %v775 = vpop.permute.xlu0 %774
    %777 = vset.pattern.permute.xlu0 0
    %778 = vperm.xlu0 %777, %v54
    %v779 = vpop.permute.xlu0 %778
    %v781 = vsel %vm330, %v32, 0
    %v784 = vsel %vm330, %v33, 0
    %v787 = vsel %vm330, %v34, 0
    %v790 = vsel %vm330, %v35, 0
    %792 = vmatprep.subr.mxu0 0.0
    %793 = vmatpush1.msra.mxu0 0.0
    %794 = vmatprep.subr.mxu0 0.0
    %795 = vmatpush1.msra.mxu0 0.0
    %796 = vmatprep.subr.mxu0 0.0
    %797 = vmatpush1.msra.mxu0 0.0
    %798 = vmatprep.subr.mxu0 0.0
    %799 = vmatpush1.msra.mxu0 0.0
    %800 = vmatprep.subr.mxu0 0.0
    %801 = vmatpush1.msra.mxu0 0.0
    %802 = vmatprep.subr.mxu0 0.0
    %803 = vmatpush1.msra.mxu0 0.0
    %804 = vmatprep.subr.mxu0 0.0
    %805 = vmatpush1.msra.mxu0 0.0
    %806 = vmatprep.subr.mxu0 0.0
    %807 = vmatpush1.msra.mxu0 0.0
    %808 = vmatprep.subr.mxu0 0.0
    %809 = vmatpush1.msra.mxu0 0.0
    %810 = vmatprep.subr.mxu0 0.0
    %811 = vmatpush1.msra.mxu0 0.0
    %812 = vmatprep.subr.mxu0 0.0
    %813 = vmatpush1.msra.mxu0 0.0
    %814 = vmatprep.subr.mxu0 0.0
    %815 = vmatpush1.msra.mxu0 0.0
    %816 = vmatprep.subr.mxu0 %v760
    %817 = vmatpush1.msra.mxu0 %v759
    %818 = vmatprep.subr.mxu0 %v756
    %819 = vmatpush1.msra.mxu0 %v755
    %820 = vmatprep.subr.mxu0 %v752
    %821 = vmatpush1.msra.mxu0 %v751
    %822 = vmatprep.subr.mxu0 %v748
    %823 = vmatpush1.msra.mxu0 %v747
    %824 = vmatprep.subr.mxu0 0.0
    %825 = vmatpush2.msra.mxu0 0.0
    %826 = vmatprep.subr.mxu0 0.0
    %827 = vmatpush2.msra.mxu0 0.0
    %828 = vmatprep.subr.mxu0 0.0
    %829 = vmatpush2.msra.mxu0 0.0
    %830 = vmatprep.subr.mxu0 0.0
    %831 = vmatpush2.msra.mxu0 0.0
    %832 = vmatprep.subr.mxu0 0.0
    %833 = vmatpush2.msra.mxu0 0.0
    %834 = vmatprep.subr.mxu0 0.0
    %835 = vmatpush2.msra.mxu0 0.0
    %836 = vmatprep.subr.mxu0 0.0
    %837 = vmatpush2.msra.mxu0 0.0
    %838 = vmatprep.subr.mxu0 0.0
    %839 = vmatpush2.msra.mxu0 0.0
    %840 = vmatprep.subr.mxu0 0.0
    %841 = vmatpush2.msra.mxu0 0.0
    %842 = vmatprep.subr.mxu0 0.0
    %843 = vmatpush2.msra.mxu0 0.0
    %844 = vmatprep.subr.mxu0 0.0
    %845 = vmatpush2.msra.mxu0 0.0
    %846 = vmatprep.subr.mxu0 0.0
    %847 = vmatpush2.msra.mxu0 0.0
    %848 = vmatprep.subr.mxu0 0.0
    %849 = vmatpush2.msra.mxu0 0.0
    %850 = vmatprep.subr.mxu0 0.0
    %851 = vmatpush2.msra.mxu0 0.0
    %852 = vmatprep.subr.mxu0 0.0
    %853 = vmatpush2.msra.mxu0 0.0
    %854 = vmatprep.subr.mxu0 0.0
    %855 = vmatpush2.msra.mxu0 0.0
    %856 = vmatprep.mubr.f32.mxu0 0.0
    %857 = vmatmul.mubr.f32.gmra.mxu0 %v781
    %v858 = vpop.f32.mrf.mxu0
    %v859 = vadd.f32 %v766, %v858
    %v860 = vpop.f32.mrf.mxu0
    %v861 = vadd.f32 %v766, %v860
    %862 = vmatprep.mubr.f32.mxu0 0.0
    %863 = vmatmul.mubr.f32.gmra.mxu0 %v784
    %v864 = vpop.f32.mrf.mxu0
    %v865 = vpop.f32.mrf.mxu0
    %866 = vmatprep.mubr.f32.mxu0 0.0
    %867 = vmatmul.mubr.f32.gmra.mxu0 %v787
    %v868 = vpop.f32.mrf.mxu0
    %v869 = vpop.f32.mrf.mxu0
    %870 = vmatprep.mubr.f32.mxu0 0.0
    %871 = vmatmul.mubr.f32.gmra.mxu0 %v790
    %v872 = vpop.f32.mrf.mxu0
    %v873 = vpop.f32.mrf.mxu0
    %874 = vdwg.mxu0
    %875 = vmatprep.subr.mxu0 0.0
    %876 = vmatpush1.msra.mxu0 0.0
    %877 = vmatprep.subr.mxu0 0.0
    %878 = vmatpush1.msra.mxu0 0.0
    %879 = vmatprep.subr.mxu0 0.0
    %880 = vmatpush1.msra.mxu0 0.0
    %881 = vmatprep.subr.mxu0 0.0
    %882 = vmatpush1.msra.mxu0 0.0
    %883 = vmatprep.subr.mxu0 0.0
    %884 = vmatpush1.msra.mxu0 0.0
    %885 = vmatprep.subr.mxu0 0.0
    %886 = vmatpush1.msra.mxu0 0.0
    %887 = vmatprep.subr.mxu0 0.0
    %888 = vmatpush1.msra.mxu0 0.0
    %889 = vmatprep.subr.mxu0 0.0
    %890 = vmatpush1.msra.mxu0 0.0
    %891 = vmatprep.subr.mxu0 0.0
    %892 = vmatpush1.msra.mxu0 0.0
    %893 = vmatprep.subr.mxu0 0.0
    %894 = vmatpush1.msra.mxu0 0.0
    %895 = vmatprep.subr.mxu0 0.0
    %896 = vmatpush1.msra.mxu0 0.0
    %897 = vmatprep.subr.mxu0 0.0
    %898 = vmatpush1.msra.mxu0 0.0
    %899 = vmatprep.subr.mxu0 %v762
    %900 = vmatpush1.msra.mxu0 %v761
    %901 = vmatprep.subr.mxu0 %v758
    %902 = vmatpush1.msra.mxu0 %v757
    %903 = vmatprep.subr.mxu0 %v754
    %904 = vmatpush1.msra.mxu0 %v753
    %905 = vmatprep.subr.mxu0 %v750
    %906 = vmatpush1.msra.mxu0 %v749
    %907 = vmatprep.subr.mxu0 0.0
    %908 = vmatpush2.msra.mxu0 0.0
    %909 = vmatprep.subr.mxu0 0.0
    %910 = vmatpush2.msra.mxu0 0.0
    %911 = vmatprep.subr.mxu0 0.0
    %912 = vmatpush2.msra.mxu0 0.0
    %913 = vmatprep.subr.mxu0 0.0
    %914 = vmatpush2.msra.mxu0 0.0
    %915 = vmatprep.subr.mxu0 0.0
    %916 = vmatpush2.msra.mxu0 0.0
    %917 = vmatprep.subr.mxu0 0.0
    %918 = vmatpush2.msra.mxu0 0.0
    %919 = vmatprep.subr.mxu0 0.0
    %920 = vmatpush2.msra.mxu0 0.0
    %921 = vmatprep.subr.mxu0 0.0
    %922 = vmatpush2.msra.mxu0 0.0
    %923 = vmatprep.subr.mxu0 0.0
    %924 = vmatpush2.msra.mxu0 0.0
    %925 = vmatprep.subr.mxu0 0.0
    %926 = vmatpush2.msra.mxu0 0.0
    %927 = vmatprep.subr.mxu0 0.0
    %928 = vmatpush2.msra.mxu0 0.0
    %929 = vmatprep.subr.mxu0 0.0
    %930 = vmatpush2.msra.mxu0 0.0
    %931 = vmatprep.subr.mxu0 0.0
    %932 = vmatpush2.msra.mxu0 0.0
    %933 = vmatprep.subr.mxu0 0.0
    %934 = vmatpush2.msra.mxu0 0.0
    %935 = vmatprep.subr.mxu0 0.0
    %936 = vmatpush2.msra.mxu0 0.0
    %937 = vmatprep.subr.mxu0 0.0
    %938 = vmatpush2.msra.mxu0 0.0
    %939 = vmatprep.mubr.f32.mxu0 0.0
    %940 = vmatmul.mubr.f32.gmra.mxu0 %v781
    %v941 = vpop.f32.mrf.mxu0
    %v942 = vadd.f32 %v766, %v941
    %v943 = vpop.f32.mrf.mxu0
    %v944 = vadd.f32 %v766, %v943
    %945 = vmatprep.mubr.f32.mxu0 0.0
    %946 = vmatmul.mubr.f32.gmra.mxu0 %v784
    %v947 = vpop.f32.mrf.mxu0
    %v948 = vpop.f32.mrf.mxu0
    %949 = vmatprep.mubr.f32.mxu0 0.0
    %950 = vmatmul.mubr.f32.gmra.mxu0 %v787
    %v951 = vpop.f32.mrf.mxu0
    %v952 = vpop.f32.mrf.mxu0
    %953 = vmatprep.mubr.f32.mxu0 0.0
    %954 = vmatmul.mubr.f32.gmra.mxu0 %v790
    %v955 = vpop.f32.mrf.mxu0
    %v956 = vpop.f32.mrf.mxu0
    %957 = vdwg.mxu0
    %958 = vst [vmem:[#allocation2] sm:$0xff] %v859
    %959 = vst [vmem:[#allocation2 + $0x8] sm:$0xff] %v861
    %960 = vst [vmem:[#allocation2 + $0x10] sm:$0xff] %v942
    %961 = vst [vmem:[#allocation2 + $0x18] sm:$0xff] %v944
    %v962 = vld [vmem:[%s0 + $0x8] sm:$0xff]
    %v964 = vcombine.high %v962, %v962
    %v966 = vunpack.c.l.s4 1983009808
    %v967 = vunpack.c.0.s8 %v966
    %v968 = vlaneseq
    %v969 = vshrl.u32 %v968, 7
    %v970 = vsub.s32 %v967, %v969
    %v971 = vrot.slane %v962, %v970
    %v973 = vunpack.c.l.s4 1983009808
    %v974 = vunpack.c.0.s8 %v973
    %v975 = vlaneseq
    %v976 = vshrl.u32 %v975, 7
    %v977 = vsub.s32 %v974, %v976
    %v978 = vrot.slane %v964, %v977
    %v979 = vcombine.high %v971, %v971
    %v980 = vcombine.high %v978, %v978
    %v981 = vsel %vm107, %v971, 0
    %v983 = vsel %vm107, %v979, 0
    %v985 = vsel %vm107, %v978, 0
    %v987 = vsel %vm107, %v980, 0
    %989 = vmatprep.subr.mxu0 0.0
    %990 = vmatpush1.msra.mxu0 0.0
    %991 = vmatprep.subr.mxu0 0.0
    %992 = vmatpush1.msra.mxu0 0.0
    %993 = vmatprep.subr.mxu0 0.0
    %994 = vmatpush1.msra.mxu0 0.0
    %995 = vmatprep.subr.mxu0 0.0
    %996 = vmatpush1.msra.mxu0 0.0
    %997 = vmatprep.subr.mxu0 0.0
    %998 = vmatpush1.msra.mxu0 0.0
    %999 = vmatprep.subr.mxu0 0.0
    %1000 = vmatpush1.msra.mxu0 0.0
    %1001 = vmatprep.subr.mxu0 0.0
    %1002 = vmatpush1.msra.mxu0 0.0
    %1003 = vmatprep.subr.mxu0 0.0
    %1004 = vmatpush1.msra.mxu0 0.0
    %1005 = vmatprep.subr.mxu0 0.0
    %1006 = vmatpush1.msra.mxu0 0.0
    %1007 = vmatprep.subr.mxu0 0.0
    %1008 = vmatpush1.msra.mxu0 0.0
    %1009 = vmatprep.subr.mxu0 0.0
    %1010 = vmatpush1.msra.mxu0 0.0
    %1011 = vmatprep.subr.mxu0 0.0
    %1012 = vmatpush1.msra.mxu0 0.0
    %1013 = vmatprep.subr.mxu0 0.0
    %1014 = vmatpush1.msra.mxu0 0.0
    %1015 = vmatprep.subr.mxu0 0.0
    %1016 = vmatpush1.msra.mxu0 0.0
    %1017 = vmatprep.subr.mxu0 0.0
    %1018 = vmatpush1.msra.mxu0 0.0
    %1019 = vmatprep.subr.mxu0 %v983
    %1020 = vmatpush1.msra.mxu0 %v981
    %1021 = vmatprep.subr.mxu0 0.0
    %1022 = vmatpush2.msra.mxu0 0.0
    %1023 = vmatprep.subr.mxu0 0.0
    %1024 = vmatpush2.msra.mxu0 0.0
    %1025 = vmatprep.subr.mxu0 0.0
    %1026 = vmatpush2.msra.mxu0 0.0
    %1027 = vmatprep.subr.mxu0 0.0
    %1028 = vmatpush2.msra.mxu0 0.0
    %1029 = vmatprep.subr.mxu0 0.0
    %1030 = vmatpush2.msra.mxu0 0.0
    %1031 = vmatprep.subr.mxu0 0.0
    %1032 = vmatpush2.msra.mxu0 0.0
    %1033 = vmatprep.subr.mxu0 0.0
    %1034 = vmatpush2.msra.mxu0 0.0
    %1035 = vmatprep.subr.mxu0 0.0
    %1036 = vmatpush2.msra.mxu0 0.0
    %1037 = vmatprep.subr.mxu0 0.0
    %1038 = vmatpush2.msra.mxu0 0.0
    %1039 = vmatprep.subr.mxu0 0.0
    %1040 = vmatpush2.msra.mxu0 0.0
    %1041 = vmatprep.subr.mxu0 0.0
    %1042 = vmatpush2.msra.mxu0 0.0
    %1043 = vmatprep.subr.mxu0 0.0
    %1044 = vmatpush2.msra.mxu0 0.0
    %1045 = vmatprep.subr.mxu0 0.0
    %1046 = vmatpush2.msra.mxu0 0.0
    %1047 = vmatprep.subr.mxu0 0.0
    %1048 = vmatpush2.msra.mxu0 0.0
    %1049 = vmatprep.subr.mxu0 0.0
    %1050 = vmatpush2.msra.mxu0 0.0
    %1051 = vmatprep.subr.mxu0 0.0
    %1052 = vmatpush2.msra.mxu0 0.0
    %1053 = vmatprep.mubr.f32.mxu0 0.0
    %1054 = vmatmul.mubr.f32.gmra.mxu0 %v96
    %v1055 = vpop.f32.mrf.mxu0
    %v1056 = vadd.f32 %v59, %v1055
    %v1057 = vpop.f32.mrf.mxu0
    %v1058 = vadd.f32 %v59, %v1057
    %1059 = vmatprep.mubr.f32.mxu0 0.0
    %1060 = vmatmul.mubr.f32.gmra.mxu0 %v99
    %v1061 = vpop.f32.mrf.mxu0
    %v1062 = vadd.f32 %v64, %v1061
    %v1063 = vpop.f32.mrf.mxu0
    %v1064 = vadd.f32 %v64, %v1063
    %1065 = vmatprep.mubr.f32.mxu0 0.0
    %1066 = vmatmul.mubr.f32.gmra.mxu0 %v102
    %v1067 = vpop.f32.mrf.mxu0
    %v1068 = vadd.f32 %v69, %v1067
    %v1069 = vpop.f32.mrf.mxu0
    %v1070 = vadd.f32 %v69, %v1069
    %1071 = vmatprep.mubr.f32.mxu0 0.0
    %1072 = vmatmul.mubr.f32.gmra.mxu0 %v105
    %v1073 = vpop.f32.mrf.mxu0
    %v1074 = vadd.f32 %v74, %v1073
    %v1075 = vpop.f32.mrf.mxu0
    %v1076 = vadd.f32 %v74, %v1075
    %1077 = vdwg.mxu0
    %1078 = vmatprep.subr.mxu0 0.0
    %1079 = vmatpush1.msra.mxu0 0.0
    %1080 = vmatprep.subr.mxu0 0.0
    %1081 = vmatpush1.msra.mxu0 0.0
    %1082 = vmatprep.subr.mxu0 0.0
    %1083 = vmatpush1.msra.mxu0 0.0
    %1084 = vmatprep.subr.mxu0 0.0
    %1085 = vmatpush1.msra.mxu0 0.0
    %1086 = vmatprep.subr.mxu0 0.0
    %1087 = vmatpush1.msra.mxu0 0.0
    %1088 = vmatprep.subr.mxu0 0.0
    %1089 = vmatpush1.msra.mxu0 0.0
    %1090 = vmatprep.subr.mxu0 0.0
    %1091 = vmatpush1.msra.mxu0 0.0
    %1092 = vmatprep.subr.mxu0 0.0
    %1093 = vmatpush1.msra.mxu0 0.0
    %1094 = vmatprep.subr.mxu0 0.0
    %1095 = vmatpush1.msra.mxu0 0.0
    %1096 = vmatprep.subr.mxu0 0.0
    %1097 = vmatpush1.msra.mxu0 0.0
    %1098 = vmatprep.subr.mxu0 0.0
    %1099 = vmatpush1.msra.mxu0 0.0
    %1100 = vmatprep.subr.mxu0 0.0
    %1101 = vmatpush1.msra.mxu0 0.0
    %1102 = vmatprep.subr.mxu0 0.0
    %1103 = vmatpush1.msra.mxu0 0.0
    %1104 = vmatprep.subr.mxu0 0.0
    %1105 = vmatpush1.msra.mxu0 0.0
    %1106 = vmatprep.subr.mxu0 0.0
    %1107 = vmatpush1.msra.mxu0 0.0
    %1108 = vmatprep.subr.mxu0 %v987
    %1109 = vmatpush1.msra.mxu0 %v985
    %1110 = vmatprep.subr.mxu0 0.0
    %1111 = vmatpush2.msra.mxu0 0.0
    %1112 = vmatprep.subr.mxu0 0.0
    %1113 = vmatpush2.msra.mxu0 0.0
    %1114 = vmatprep.subr.mxu0 0.0
    %1115 = vmatpush2.msra.mxu0 0.0
    %1116 = vmatprep.subr.mxu0 0.0
    %1117 = vmatpush2.msra.mxu0 0.0
    %1118 = vmatprep.subr.mxu0 0.0
    %1119 = vmatpush2.msra.mxu0 0.0
    %1120 = vmatprep.subr.mxu0 0.0
    %1121 = vmatpush2.msra.mxu0 0.0
    %1122 = vmatprep.subr.mxu0 0.0
    %1123 = vmatpush2.msra.mxu0 0.0
    %1124 = vmatprep.subr.mxu0 0.0
    %1125 = vmatpush2.msra.mxu0 0.0
    %1126 = vmatprep.subr.mxu0 0.0
    %1127 = vmatpush2.msra.mxu0 0.0
    %1128 = vmatprep.subr.mxu0 0.0
    %1129 = vmatpush2.msra.mxu0 0.0
    %1130 = vmatprep.subr.mxu0 0.0
    %1131 = vmatpush2.msra.mxu0 0.0
    %1132 = vmatprep.subr.mxu0 0.0
    %1133 = vmatpush2.msra.mxu0 0.0
    %1134 = vmatprep.subr.mxu0 0.0
    %1135 = vmatpush2.msra.mxu0 0.0
    %1136 = vmatprep.subr.mxu0 0.0
    %1137 = vmatpush2.msra.mxu0 0.0
    %1138 = vmatprep.subr.mxu0 0.0
    %1139 = vmatpush2.msra.mxu0 0.0
    %1140 = vmatprep.subr.mxu0 0.0
    %1141 = vmatpush2.msra.mxu0 0.0
    %1142 = vmatprep.mubr.f32.mxu0 0.0
    %1143 = vmatmul.mubr.f32.gmra.mxu0 %v96
    %v1144 = vpop.f32.mrf.mxu0
    %v1145 = vadd.f32 %v59, %v1144
    %v1146 = vpop.f32.mrf.mxu0
    %v1147 = vadd.f32 %v59, %v1146
    %1148 = vmatprep.mubr.f32.mxu0 0.0
    %1149 = vmatmul.mubr.f32.gmra.mxu0 %v99
    %v1150 = vpop.f32.mrf.mxu0
    %v1151 = vadd.f32 %v64, %v1150
    %v1152 = vpop.f32.mrf.mxu0
    %v1153 = vadd.f32 %v64, %v1152
    %1154 = vmatprep.mubr.f32.mxu0 0.0
    %1155 = vmatmul.mubr.f32.gmra.mxu0 %v102
    %v1156 = vpop.f32.mrf.mxu0
    %v1157 = vadd.f32 %v69, %v1156
    %v1158 = vpop.f32.mrf.mxu0
    %v1159 = vadd.f32 %v69, %v1158
    %1160 = vmatprep.mubr.f32.mxu0 0.0
    %1161 = vmatmul.mubr.f32.gmra.mxu0 %v105
    %v1162 = vpop.f32.mrf.mxu0
    %v1163 = vadd.f32 %v74, %v1162
    %v1164 = vpop.f32.mrf.mxu0
    %v1165 = vadd.f32 %v74, %v1164
    %1166 = vdwg.mxu0
    %v1167 = vtanh.pop %v1056
    %v1168 = vtanh.pop %v1058
    %v1169 = vtanh.pop %v1145
    %v1170 = vtanh.pop %v1147
    %v1171 = vtanh.pop %v1062
    %v1172 = vtanh.pop %v1064
    %v1173 = vtanh.pop %v1151
    %v1174 = vtanh.pop %v1153
    %v1175 = vtanh.pop %v1068
    %v1176 = vtanh.pop %v1070
    %v1177 = vtanh.pop %v1157
    %v1178 = vtanh.pop %v1159
    %v1179 = vtanh.pop %v1074
    %v1180 = vtanh.pop %v1076
    %v1181 = vtanh.pop %v1163
    %v1182 = vtanh.pop %v1165
    %1183 = vmatprep.subr.mxu0 0.0
    %1184 = vmatpush1.msra.mxu0 0.0
    %1185 = vmatprep.subr.mxu0 0.0
    %1186 = vmatpush1.msra.mxu0 0.0
    %1187 = vmatprep.subr.mxu0 0.0
    %1188 = vmatpush1.msra.mxu0 0.0
    %1189 = vmatprep.subr.mxu0 0.0
    %1190 = vmatpush1.msra.mxu0 0.0
    %1191 = vmatprep.subr.mxu0 0.0
    %1192 = vmatpush1.msra.mxu0 0.0
    %1193 = vmatprep.subr.mxu0 0.0
    %1194 = vmatpush1.msra.mxu0 0.0
    %1195 = vmatprep.subr.mxu0 0.0
    %1196 = vmatpush1.msra.mxu0 0.0
    %1197 = vmatprep.subr.mxu0 0.0
    %1198 = vmatpush1.msra.mxu0 0.0
    %1199 = vmatprep.subr.mxu0 0.0
    %1200 = vmatpush1.msra.mxu0 0.0
    %1201 = vmatprep.subr.mxu0 0.0
    %1202 = vmatpush1.msra.mxu0 0.0
    %1203 = vmatprep.subr.mxu0 0.0
    %1204 = vmatpush1.msra.mxu0 0.0
    %1205 = vmatprep.subr.mxu0 0.0
    %1206 = vmatpush1.msra.mxu0 0.0
    %1207 = vmatprep.subr.mxu0 %v1180
    %1208 = vmatpush1.msra.mxu0 %v1179
    %1209 = vmatprep.subr.mxu0 %v1176
    %1210 = vmatpush1.msra.mxu0 %v1175
    %1211 = vmatprep.subr.mxu0 %v1172
    %1212 = vmatpush1.msra.mxu0 %v1171
    %1213 = vmatprep.subr.mxu0 %v1168
    %1214 = vmatpush1.msra.mxu0 %v1167
    %1215 = vmatprep.subr.mxu0 0.0
    %1216 = vmatpush2.msra.mxu0 0.0
    %1217 = vmatprep.subr.mxu0 0.0
    %1218 = vmatpush2.msra.mxu0 0.0
    %1219 = vmatprep.subr.mxu0 0.0
    %1220 = vmatpush2.msra.mxu0 0.0
    %1221 = vmatprep.subr.mxu0 0.0
    %1222 = vmatpush2.msra.mxu0 0.0
    %1223 = vmatprep.subr.mxu0 0.0
    %1224 = vmatpush2.msra.mxu0 0.0
    %1225 = vmatprep.subr.mxu0 0.0
    %1226 = vmatpush2.msra.mxu0 0.0
    %1227 = vmatprep.subr.mxu0 0.0
    %1228 = vmatpush2.msra.mxu0 0.0
    %1229 = vmatprep.subr.mxu0 0.0
    %1230 = vmatpush2.msra.mxu0 0.0
    %1231 = vmatprep.subr.mxu0 0.0
    %1232 = vmatpush2.msra.mxu0 0.0
    %1233 = vmatprep.subr.mxu0 0.0
    %1234 = vmatpush2.msra.mxu0 0.0
    %1235 = vmatprep.subr.mxu0 0.0
    %1236 = vmatpush2.msra.mxu0 0.0
    %1237 = vmatprep.subr.mxu0 0.0
    %1238 = vmatpush2.msra.mxu0 0.0
    %1239 = vmatprep.subr.mxu0 0.0
    %1240 = vmatpush2.msra.mxu0 0.0
    %1241 = vmatprep.subr.mxu0 0.0
    %1242 = vmatpush2.msra.mxu0 0.0
    %1243 = vmatprep.subr.mxu0 0.0
    %1244 = vmatpush2.msra.mxu0 0.0
    %1245 = vmatprep.subr.mxu0 0.0
    %1246 = vmatpush2.msra.mxu0 0.0
    %1247 = vmatprep.mubr.f32.mxu0 0.0
    %1248 = vmatmul.mubr.f32.gmra.mxu0 %v332
    %v1249 = vpop.f32.mrf.mxu0
    %v1250 = vadd.f32 %v313, %v1249
    %v1251 = vpop.f32.mrf.mxu0
    %v1252 = vadd.f32 %v313, %v1251
    %1253 = vmatprep.mubr.f32.mxu0 0.0
    %1254 = vmatmul.mubr.f32.gmra.mxu0 %v335
    %v1255 = vpop.f32.mrf.mxu0
    %v1256 = vadd.f32 %v318, %v1255
    %v1257 = vpop.f32.mrf.mxu0
    %v1258 = vadd.f32 %v318, %v1257
    %1259 = vmatprep.mubr.f32.mxu0 0.0
    %1260 = vmatmul.mubr.f32.gmra.mxu0 %v338
    %v1261 = vpop.f32.mrf.mxu0
    %v1262 = vadd.f32 %v323, %v1261
    %v1263 = vpop.f32.mrf.mxu0
    %v1264 = vadd.f32 %v323, %v1263
    %1265 = vmatprep.mubr.f32.mxu0 0.0
    %1266 = vmatmul.mubr.f32.gmra.mxu0 %v341
    %v1267 = vpop.f32.mrf.mxu0
    %v1268 = vadd.f32 %v328, %v1267
    %v1269 = vpop.f32.mrf.mxu0
    %v1270 = vadd.f32 %v328, %v1269
    %1271 = vdwg.mxu0
    %1272 = vmatprep.subr.mxu0 0.0
    %1273 = vmatpush1.msra.mxu0 0.0
    %1274 = vmatprep.subr.mxu0 0.0
    %1275 = vmatpush1.msra.mxu0 0.0
    %1276 = vmatprep.subr.mxu0 0.0
    %1277 = vmatpush1.msra.mxu0 0.0
    %1278 = vmatprep.subr.mxu0 0.0
    %1279 = vmatpush1.msra.mxu0 0.0
    %1280 = vmatprep.subr.mxu0 0.0
    %1281 = vmatpush1.msra.mxu0 0.0
    %1282 = vmatprep.subr.mxu0 0.0
    %1283 = vmatpush1.msra.mxu0 0.0
    %1284 = vmatprep.subr.mxu0 0.0
    %1285 = vmatpush1.msra.mxu0 0.0
    %1286 = vmatprep.subr.mxu0 0.0
    %1287 = vmatpush1.msra.mxu0 0.0
    %1288 = vmatprep.subr.mxu0 0.0
    %1289 = vmatpush1.msra.mxu0 0.0
    %1290 = vmatprep.subr.mxu0 0.0
    %1291 = vmatpush1.msra.mxu0 0.0
    %1292 = vmatprep.subr.mxu0 0.0
    %1293 = vmatpush1.msra.mxu0 0.0
    %1294 = vmatprep.subr.mxu0 0.0
    %1295 = vmatpush1.msra.mxu0 0.0
    %1296 = vmatprep.subr.mxu0 %v1182
    %1297 = vmatpush1.msra.mxu0 %v1181
    %1298 = vmatprep.subr.mxu0 %v1178
    %1299 = vmatpush1.msra.mxu0 %v1177
    %1300 = vmatprep.subr.mxu0 %v1174
    %1301 = vmatpush1.msra.mxu0 %v1173
    %1302 = vmatprep.subr.mxu0 %v1170
    %1303 = vmatpush1.msra.mxu0 %v1169
    %1304 = vmatprep.subr.mxu0 0.0
    %1305 = vmatpush2.msra.mxu0 0.0
    %1306 = vmatprep.subr.mxu0 0.0
    %1307 = vmatpush2.msra.mxu0 0.0
    %1308 = vmatprep.subr.mxu0 0.0
    %1309 = vmatpush2.msra.mxu0 0.0
    %1310 = vmatprep.subr.mxu0 0.0
    %1311 = vmatpush2.msra.mxu0 0.0
    %1312 = vmatprep.subr.mxu0 0.0
    %1313 = vmatpush2.msra.mxu0 0.0
    %1314 = vmatprep.subr.mxu0 0.0
    %1315 = vmatpush2.msra.mxu0 0.0
    %1316 = vmatprep.subr.mxu0 0.0
    %1317 = vmatpush2.msra.mxu0 0.0
    %1318 = vmatprep.subr.mxu0 0.0
    %1319 = vmatpush2.msra.mxu0 0.0
    %1320 = vmatprep.subr.mxu0 0.0
    %1321 = vmatpush2.msra.mxu0 0.0
    %1322 = vmatprep.subr.mxu0 0.0
    %1323 = vmatpush2.msra.mxu0 0.0
    %1324 = vmatprep.subr.mxu0 0.0
    %1325 = vmatpush2.msra.mxu0 0.0
    %1326 = vmatprep.subr.mxu0 0.0
    %1327 = vmatpush2.msra.mxu0 0.0
    %1328 = vmatprep.subr.mxu0 0.0
    %1329 = vmatpush2.msra.mxu0 0.0
    %1330 = vmatprep.subr.mxu0 0.0
    %1331 = vmatpush2.msra.mxu0 0.0
    %1332 = vmatprep.subr.mxu0 0.0
    %1333 = vmatpush2.msra.mxu0 0.0
    %1334 = vmatprep.subr.mxu0 0.0
    %1335 = vmatpush2.msra.mxu0 0.0
    %1336 = vmatprep.mubr.f32.mxu0 0.0
    %1337 = vmatmul.mubr.f32.gmra.mxu0 %v332
    %v1338 = vpop.f32.mrf.mxu0
    %v1339 = vadd.f32 %v313, %v1338
    %v1340 = vpop.f32.mrf.mxu0
    %v1341 = vadd.f32 %v313, %v1340
    %1342 = vmatprep.mubr.f32.mxu0 0.0
    %1343 = vmatmul.mubr.f32.gmra.mxu0 %v335
    %v1344 = vpop.f32.mrf.mxu0
    %v1345 = vadd.f32 %v318, %v1344
    %v1346 = vpop.f32.mrf.mxu0
    %v1347 = vadd.f32 %v318, %v1346
    %1348 = vmatprep.mubr.f32.mxu0 0.0
    %1349 = vmatmul.mubr.f32.gmra.mxu0 %v338
    %v1350 = vpop.f32.mrf.mxu0
    %v1351 = vadd.f32 %v323, %v1350
    %v1352 = vpop.f32.mrf.mxu0
    %v1353 = vadd.f32 %v323, %v1352
    %1354 = vmatprep.mubr.f32.mxu0 0.0
    %1355 = vmatmul.mubr.f32.gmra.mxu0 %v341
    %v1356 = vpop.f32.mrf.mxu0
    %v1357 = vadd.f32 %v328, %v1356
    %v1358 = vpop.f32.mrf.mxu0
    %v1359 = vadd.f32 %v328, %v1358
    %1360 = vdwg.mxu0
    %v1361 = vtanh.pop %v1250
    %v1362 = vtanh.pop %v1252
    %v1363 = vtanh.pop %v1339
    %v1364 = vtanh.pop %v1341
    %v1365 = vtanh.pop %v1256
    %v1366 = vtanh.pop %v1258
    %v1367 = vtanh.pop %v1345
    %v1368 = vtanh.pop %v1347
    %v1369 = vtanh.pop %v1262
    %v1370 = vtanh.pop %v1264
    %v1371 = vtanh.pop %v1351
    %v1372 = vtanh.pop %v1353
    %v1373 = vtanh.pop %v1268
    %v1374 = vtanh.pop %v1270
    %v1375 = vtanh.pop %v1357
    %v1376 = vtanh.pop %v1359
    %1377 = vmatprep.subr.mxu0 0.0
    %1378 = vmatpush1.msra.mxu0 0.0
    %1379 = vmatprep.subr.mxu0 0.0
    %1380 = vmatpush1.msra.mxu0 0.0
    %1381 = vmatprep.subr.mxu0 0.0
    %1382 = vmatpush1.msra.mxu0 0.0
    %1383 = vmatprep.subr.mxu0 0.0
    %1384 = vmatpush1.msra.mxu0 0.0
    %1385 = vmatprep.subr.mxu0 0.0
    %1386 = vmatpush1.msra.mxu0 0.0
    %1387 = vmatprep.subr.mxu0 0.0
    %1388 = vmatpush1.msra.mxu0 0.0
    %1389 = vmatprep.subr.mxu0 0.0
    %1390 = vmatpush1.msra.mxu0 0.0
    %1391 = vmatprep.subr.mxu0 0.0
    %1392 = vmatpush1.msra.mxu0 0.0
    %1393 = vmatprep.subr.mxu0 0.0
    %1394 = vmatpush1.msra.mxu0 0.0
    %1395 = vmatprep.subr.mxu0 0.0
    %1396 = vmatpush1.msra.mxu0 0.0
    %1397 = vmatprep.subr.mxu0 0.0
    %1398 = vmatpush1.msra.mxu0 0.0
    %1399 = vmatprep.subr.mxu0 0.0
    %1400 = vmatpush1.msra.mxu0 0.0
    %1401 = vmatprep.subr.mxu0 %v1374
    %1402 = vmatpush1.msra.mxu0 %v1373
    %1403 = vmatprep.subr.mxu0 %v1370
    %1404 = vmatpush1.msra.mxu0 %v1369
    %1405 = vmatprep.subr.mxu0 %v1366
    %1406 = vmatpush1.msra.mxu0 %v1365
    %1407 = vmatprep.subr.mxu0 %v1362
    %1408 = vmatpush1.msra.mxu0 %v1361
    %1409 = vmatprep.subr.mxu0 0.0
    %1410 = vmatpush2.msra.mxu0 0.0
    %1411 = vmatprep.subr.mxu0 0.0
    %1412 = vmatpush2.msra.mxu0 0.0
    %1413 = vmatprep.subr.mxu0 0.0
    %1414 = vmatpush2.msra.mxu0 0.0
    %1415 = vmatprep.subr.mxu0 0.0
    %1416 = vmatpush2.msra.mxu0 0.0
    %1417 = vmatprep.subr.mxu0 0.0
    %1418 = vmatpush2.msra.mxu0 0.0
    %1419 = vmatprep.subr.mxu0 0.0
    %1420 = vmatpush2.msra.mxu0 0.0
    %1421 = vmatprep.subr.mxu0 0.0
    %1422 = vmatpush2.msra.mxu0 0.0
    %1423 = vmatprep.subr.mxu0 0.0
    %1424 = vmatpush2.msra.mxu0 0.0
    %1425 = vmatprep.subr.mxu0 0.0
    %1426 = vmatpush2.msra.mxu0 0.0
    %1427 = vmatprep.subr.mxu0 0.0
    %1428 = vmatpush2.msra.mxu0 0.0
    %1429 = vmatprep.subr.mxu0 0.0
    %1430 = vmatpush2.msra.mxu0 0.0
    %1431 = vmatprep.subr.mxu0 0.0
    %1432 = vmatpush2.msra.mxu0 0.0
    %1433 = vmatprep.subr.mxu0 0.0
    %1434 = vmatpush2.msra.mxu0 0.0
    %1435 = vmatprep.subr.mxu0 0.0
    %1436 = vmatpush2.msra.mxu0 0.0
    %1437 = vmatprep.subr.mxu0 0.0
    %1438 = vmatpush2.msra.mxu0 0.0
    %1439 = vmatprep.subr.mxu0 0.0
    %1440 = vmatpush2.msra.mxu0 0.0
    %1441 = vmatprep.mubr.f32.mxu0 0.0
    %1442 = vmatmul.mubr.f32.gmra.mxu0 %v558
    %v1443 = vpop.f32.mrf.mxu0
    %v1444 = vadd.f32 %v540, %v1443
    %v1445 = vpop.f32.mrf.mxu0
    %v1446 = vadd.f32 %v540, %v1445
    %1447 = vmatprep.mubr.f32.mxu0 0.0
    %1448 = vmatmul.mubr.f32.gmra.mxu0 %v561
    %v1449 = vpop.f32.mrf.mxu0
    %v1450 = vadd.f32 %v545, %v1449
    %v1451 = vpop.f32.mrf.mxu0
    %v1452 = vadd.f32 %v545, %v1451
    %1453 = vmatprep.mubr.f32.mxu0 0.0
    %1454 = vmatmul.mubr.f32.gmra.mxu0 %v564
    %v1455 = vpop.f32.mrf.mxu0
    %v1456 = vadd.f32 %v550, %v1455
    %v1457 = vpop.f32.mrf.mxu0
    %v1458 = vadd.f32 %v550, %v1457
    %1459 = vmatprep.mubr.f32.mxu0 0.0
    %1460 = vmatmul.mubr.f32.gmra.mxu0 %v567
    %v1461 = vpop.f32.mrf.mxu0
    %v1462 = vadd.f32 %v555, %v1461
    %v1463 = vpop.f32.mrf.mxu0
    %v1464 = vadd.f32 %v555, %v1463
    %1465 = vdwg.mxu0
    %1466 = vmatprep.subr.mxu0 0.0
    %1467 = vmatpush1.msra.mxu0 0.0
    %1468 = vmatprep.subr.mxu0 0.0
    %1469 = vmatpush1.msra.mxu0 0.0
    %1470 = vmatprep.subr.mxu0 0.0
    %1471 = vmatpush1.msra.mxu0 0.0
    %1472 = vmatprep.subr.mxu0 0.0
    %1473 = vmatpush1.msra.mxu0 0.0
    %1474 = vmatprep.subr.mxu0 0.0
    %1475 = vmatpush1.msra.mxu0 0.0
    %1476 = vmatprep.subr.mxu0 0.0
    %1477 = vmatpush1.msra.mxu0 0.0
    %1478 = vmatprep.subr.mxu0 0.0
    %1479 = vmatpush1.msra.mxu0 0.0
    %1480 = vmatprep.subr.mxu0 0.0
    %1481 = vmatpush1.msra.mxu0 0.0
    %1482 = vmatprep.subr.mxu0 0.0
    %1483 = vmatpush1.msra.mxu0 0.0
    %1484 = vmatprep.subr.mxu0 0.0
    %1485 = vmatpush1.msra.mxu0 0.0
    %1486 = vmatprep.subr.mxu0 0.0
    %1487 = vmatpush1.msra.mxu0 0.0
    %1488 = vmatprep.subr.mxu0 0.0
    %1489 = vmatpush1.msra.mxu0 0.0
    %1490 = vmatprep.subr.mxu0 %v1376
    %1491 = vmatpush1.msra.mxu0 %v1375
    %1492 = vmatprep.subr.mxu0 %v1372
    %1493 = vmatpush1.msra.mxu0 %v1371
    %1494 = vmatprep.subr.mxu0 %v1368
    %1495 = vmatpush1.msra.mxu0 %v1367
    %1496 = vmatprep.subr.mxu0 %v1364
    %1497 = vmatpush1.msra.mxu0 %v1363
    %1498 = vmatprep.subr.mxu0 0.0
    %1499 = vmatpush2.msra.mxu0 0.0
    %1500 = vmatprep.subr.mxu0 0.0
    %1501 = vmatpush2.msra.mxu0 0.0
    %1502 = vmatprep.subr.mxu0 0.0
    %1503 = vmatpush2.msra.mxu0 0.0
    %1504 = vmatprep.subr.mxu0 0.0
    %1505 = vmatpush2.msra.mxu0 0.0
    %1506 = vmatprep.subr.mxu0 0.0
    %1507 = vmatpush2.msra.mxu0 0.0
    %1508 = vmatprep.subr.mxu0 0.0
    %1509 = vmatpush2.msra.mxu0 0.0
    %1510 = vmatprep.subr.mxu0 0.0
    %1511 = vmatpush2.msra.mxu0 0.0
    %1512 = vmatprep.subr.mxu0 0.0
    %1513 = vmatpush2.msra.mxu0 0.0
    %1514 = vmatprep.subr.mxu0 0.0
    %1515 = vmatpush2.msra.mxu0 0.0
    %1516 = vmatprep.subr.mxu0 0.0
    %1517 = vmatpush2.msra.mxu0 0.0
    %1518 = vmatprep.subr.mxu0 0.0
    %1519 = vmatpush2.msra.mxu0 0.0
    %1520 = vmatprep.subr.mxu0 0.0
    %1521 = vmatpush2.msra.mxu0 0.0
    %1522 = vmatprep.subr.mxu0 0.0
    %1523 = vmatpush2.msra.mxu0 0.0
    %1524 = vmatprep.subr.mxu0 0.0
    %1525 = vmatpush2.msra.mxu0 0.0
    %1526 = vmatprep.subr.mxu0 0.0
    %1527 = vmatpush2.msra.mxu0 0.0
    %1528 = vmatprep.subr.mxu0 0.0
    %1529 = vmatpush2.msra.mxu0 0.0
    %1530 = vmatprep.mubr.f32.mxu0 0.0
    %1531 = vmatmul.mubr.f32.gmra.mxu0 %v558
    %v1532 = vpop.f32.mrf.mxu0
    %v1533 = vadd.f32 %v540, %v1532
    %v1534 = vpop.f32.mrf.mxu0
    %v1535 = vadd.f32 %v540, %v1534
    %1536 = vmatprep.mubr.f32.mxu0 0.0
    %1537 = vmatmul.mubr.f32.gmra.mxu0 %v561
    %v1538 = vpop.f32.mrf.mxu0
    %v1539 = vadd.f32 %v545, %v1538
    %v1540 = vpop.f32.mrf.mxu0
    %v1541 = vadd.f32 %v545, %v1540
    %1542 = vmatprep.mubr.f32.mxu0 0.0
    %1543 = vmatmul.mubr.f32.gmra.mxu0 %v564
    %v1544 = vpop.f32.mrf.mxu0
    %v1545 = vadd.f32 %v550, %v1544
    %v1546 = vpop.f32.mrf.mxu0
    %v1547 = vadd.f32 %v550, %v1546
    %1548 = vmatprep.mubr.f32.mxu0 0.0
    %1549 = vmatmul.mubr.f32.gmra.mxu0 %v567
    %v1550 = vpop.f32.mrf.mxu0
    %v1551 = vadd.f32 %v555, %v1550
    %v1552 = vpop.f32.mrf.mxu0
    %v1553 = vadd.f32 %v555, %v1552
    %1554 = vdwg.mxu0
    %v1555 = vtanh.pop %v1444
    %v1556 = vtanh.pop %v1446
    %v1557 = vtanh.pop %v1533
    %v1558 = vtanh.pop %v1535
    %v1559 = vtanh.pop %v1450
    %v1560 = vtanh.pop %v1452
    %v1561 = vtanh.pop %v1539
    %v1562 = vtanh.pop %v1541
    %v1563 = vtanh.pop %v1456
    %v1564 = vtanh.pop %v1458
    %v1565 = vtanh.pop %v1545
    %v1566 = vtanh.pop %v1547
    %v1567 = vtanh.pop %v1462
    %v1568 = vtanh.pop %v1464
    %v1569 = vtanh.pop %v1551
    %v1570 = vtanh.pop %v1553
    %1571 = vmatprep.subr.mxu0 0.0
    %1572 = vmatpush1.msra.mxu0 0.0
    %1573 = vmatprep.subr.mxu0 0.0
    %1574 = vmatpush1.msra.mxu0 0.0
    %1575 = vmatprep.subr.mxu0 0.0
    %1576 = vmatpush1.msra.mxu0 0.0
    %1577 = vmatprep.subr.mxu0 0.0
    %1578 = vmatpush1.msra.mxu0 0.0
    %1579 = vmatprep.subr.mxu0 0.0
    %1580 = vmatpush1.msra.mxu0 0.0
    %1581 = vmatprep.subr.mxu0 0.0
    %1582 = vmatpush1.msra.mxu0 0.0
    %1583 = vmatprep.subr.mxu0 0.0
    %1584 = vmatpush1.msra.mxu0 0.0
    %1585 = vmatprep.subr.mxu0 0.0
    %1586 = vmatpush1.msra.mxu0 0.0
    %1587 = vmatprep.subr.mxu0 0.0
    %1588 = vmatpush1.msra.mxu0 0.0
    %1589 = vmatprep.subr.mxu0 0.0
    %1590 = vmatpush1.msra.mxu0 0.0
    %1591 = vmatprep.subr.mxu0 0.0
    %1592 = vmatpush1.msra.mxu0 0.0
    %1593 = vmatprep.subr.mxu0 0.0
    %1594 = vmatpush1.msra.mxu0 0.0
    %1595 = vmatprep.subr.mxu0 %v1568
    %1596 = vmatpush1.msra.mxu0 %v1567
    %1597 = vmatprep.subr.mxu0 %v1564
    %1598 = vmatpush1.msra.mxu0 %v1563
    %1599 = vmatprep.subr.mxu0 %v1560
    %1600 = vmatpush1.msra.mxu0 %v1559
    %1601 = vmatprep.subr.mxu0 %v1556
    %1602 = vmatpush1.msra.mxu0 %v1555
    %1603 = vmatprep.subr.mxu0 0.0
    %1604 = vmatpush2.msra.mxu0 0.0
    %1605 = vmatprep.subr.mxu0 0.0
    %1606 = vmatpush2.msra.mxu0 0.0
    %1607 = vmatprep.subr.mxu0 0.0
    %1608 = vmatpush2.msra.mxu0 0.0
    %1609 = vmatprep.subr.mxu0 0.0
    %1610 = vmatpush2.msra.mxu0 0.0
    %1611 = vmatprep.subr.mxu0 0.0
    %1612 = vmatpush2.msra.mxu0 0.0
    %1613 = vmatprep.subr.mxu0 0.0
    %1614 = vmatpush2.msra.mxu0 0.0
    %1615 = vmatprep.subr.mxu0 0.0
    %1616 = vmatpush2.msra.mxu0 0.0
    %1617 = vmatprep.subr.mxu0 0.0
    %1618 = vmatpush2.msra.mxu0 0.0
    %1619 = vmatprep.subr.mxu0 0.0
    %1620 = vmatpush2.msra.mxu0 0.0
    %1621 = vmatprep.subr.mxu0 0.0
    %1622 = vmatpush2.msra.mxu0 0.0
    %1623 = vmatprep.subr.mxu0 0.0
    %1624 = vmatpush2.msra.mxu0 0.0
    %1625 = vmatprep.subr.mxu0 0.0
    %1626 = vmatpush2.msra.mxu0 0.0
    %1627 = vmatprep.subr.mxu0 0.0
    %1628 = vmatpush2.msra.mxu0 0.0
    %1629 = vmatprep.subr.mxu0 0.0
    %1630 = vmatpush2.msra.mxu0 0.0
    %1631 = vmatprep.subr.mxu0 0.0
    %1632 = vmatpush2.msra.mxu0 0.0
    %1633 = vmatprep.subr.mxu0 0.0
    %1634 = vmatpush2.msra.mxu0 0.0
    %1635 = vmatprep.mubr.f32.mxu0 0.0
    %1636 = vmatmul.mubr.f32.gmra.mxu0 %v781
    %v1637 = vpop.f32.mrf.mxu0
    %v1638 = vadd.f32 %v766, %v1637
    %v1639 = vpop.f32.mrf.mxu0
    %v1640 = vadd.f32 %v766, %v1639
    %1641 = vmatprep.mubr.f32.mxu0 0.0
    %1642 = vmatmul.mubr.f32.gmra.mxu0 %v784
    %v1643 = vpop.f32.mrf.mxu0
    %v1644 = vpop.f32.mrf.mxu0
    %1645 = vmatprep.mubr.f32.mxu0 0.0
    %1646 = vmatmul.mubr.f32.gmra.mxu0 %v787
    %v1647 = vpop.f32.mrf.mxu0
    %v1648 = vpop.f32.mrf.mxu0
    %1649 = vmatprep.mubr.f32.mxu0 0.0
    %1650 = vmatmul.mubr.f32.gmra.mxu0 %v790
    %v1651 = vpop.f32.mrf.mxu0
    %v1652 = vpop.f32.mrf.mxu0
    %1653 = vdwg.mxu0
    %1654 = vmatprep.subr.mxu0 0.0
    %1655 = vmatpush1.msra.mxu0 0.0
    %1656 = vmatprep.subr.mxu0 0.0
    %1657 = vmatpush1.msra.mxu0 0.0
    %1658 = vmatprep.subr.mxu0 0.0
    %1659 = vmatpush1.msra.mxu0 0.0
    %1660 = vmatprep.subr.mxu0 0.0
    %1661 = vmatpush1.msra.mxu0 0.0
    %1662 = vmatprep.subr.mxu0 0.0
    %1663 = vmatpush1.msra.mxu0 0.0
    %1664 = vmatprep.subr.mxu0 0.0
    %1665 = vmatpush1.msra.mxu0 0.0
    %1666 = vmatprep.subr.mxu0 0.0
    %1667 = vmatpush1.msra.mxu0 0.0
    %1668 = vmatprep.subr.mxu0 0.0
    %1669 = vmatpush1.msra.mxu0 0.0
    %1670 = vmatprep.subr.mxu0 0.0
    %1671 = vmatpush1.msra.mxu0 0.0
    %1672 = vmatprep.subr.mxu0 0.0
    %1673 = vmatpush1.msra.mxu0 0.0
    %1674 = vmatprep.subr.mxu0 0.0
    %1675 = vmatpush1.msra.mxu0 0.0
    %1676 = vmatprep.subr.mxu0 0.0
    %1677 = vmatpush1.msra.mxu0 0.0
    %1678 = vmatprep.subr.mxu0 %v1570
    %1679 = vmatpush1.msra.mxu0 %v1569
    %1680 = vmatprep.subr.mxu0 %v1566
    %1681 = vmatpush1.msra.mxu0 %v1565
    %1682 = vmatprep.subr.mxu0 %v1562
    %1683 = vmatpush1.msra.mxu0 %v1561
    %1684 = vmatprep.subr.mxu0 %v1558
    %1685 = vmatpush1.msra.mxu0 %v1557
    %1686 = vmatprep.subr.mxu0 0.0
    %1687 = vmatpush2.msra.mxu0 0.0
    %1688 = vmatprep.subr.mxu0 0.0
    %1689 = vmatpush2.msra.mxu0 0.0
    %1690 = vmatprep.subr.mxu0 0.0
    %1691 = vmatpush2.msra.mxu0 0.0
    %1692 = vmatprep.subr.mxu0 0.0
    %1693 = vmatpush2.msra.mxu0 0.0
    %1694 = vmatprep.subr.mxu0 0.0
    %1695 = vmatpush2.msra.mxu0 0.0
    %1696 = vmatprep.subr.mxu0 0.0
    %1697 = vmatpush2.msra.mxu0 0.0
    %1698 = vmatprep.subr.mxu0 0.0
    %1699 = vmatpush2.msra.mxu0 0.0
    %1700 = vmatprep.subr.mxu0 0.0
    %1701 = vmatpush2.msra.mxu0 0.0
    %1702 = vmatprep.subr.mxu0 0.0
    %1703 = vmatpush2.msra.mxu0 0.0
    %1704 = vmatprep.subr.mxu0 0.0
    %1705 = vmatpush2.msra.mxu0 0.0
    %1706 = vmatprep.subr.mxu0 0.0
    %1707 = vmatpush2.msra.mxu0 0.0
    %1708 = vmatprep.subr.mxu0 0.0
    %1709 = vmatpush2.msra.mxu0 0.0
    %1710 = vmatprep.subr.mxu0 0.0
    %1711 = vmatpush2.msra.mxu0 0.0
    %1712 = vmatprep.subr.mxu0 0.0
    %1713 = vmatpush2.msra.mxu0 0.0
    %1714 = vmatprep.subr.mxu0 0.0
    %1715 = vmatpush2.msra.mxu0 0.0
    %1716 = vmatprep.subr.mxu0 0.0
    %1717 = vmatpush2.msra.mxu0 0.0
    %1718 = vmatprep.mubr.f32.mxu0 0.0
    %1719 = vmatmul.mubr.f32.gmra.mxu0 %v781
    %v1720 = vpop.f32.mrf.mxu0
    %v1721 = vadd.f32 %v766, %v1720
    %v1722 = vpop.f32.mrf.mxu0
    %v1723 = vadd.f32 %v766, %v1722
    %1724 = vmatprep.mubr.f32.mxu0 0.0
    %1725 = vmatmul.mubr.f32.gmra.mxu0 %v784
    %v1726 = vpop.f32.mrf.mxu0
    %v1727 = vpop.f32.mrf.mxu0
    %1728 = vmatprep.mubr.f32.mxu0 0.0
    %1729 = vmatmul.mubr.f32.gmra.mxu0 %v787
    %v1730 = vpop.f32.mrf.mxu0
    %v1731 = vpop.f32.mrf.mxu0
    %1732 = vmatprep.mubr.f32.mxu0 0.0
    %1733 = vmatmul.mubr.f32.gmra.mxu0 %v790
    %v1734 = vpop.f32.mrf.mxu0
    %v1735 = vpop.f32.mrf.mxu0
    %1736 = vdwg.mxu0
    %1737 = vst [vmem:[#allocation2 + $0x20] sm:$0xff] %v1638
    %1738 = vst [vmem:[#allocation2 + $0x28] sm:$0xff] %v1640
    %1739 = vst [vmem:[#allocation2 + $0x30] sm:$0xff] %v1721
    %1740 = vst [vmem:[#allocation2 + $0x38] sm:$0xff] %v1723
    %v1741 = vld [vmem:[%s0 + $0x10] sm:$0xff]
    %v1743 = vcombine.high %v1741, %v1741
    %v1745 = vunpack.c.l.s4 1983009808
    %v1746 = vunpack.c.0.s8 %v1745
    %v1747 = vlaneseq
    %v1748 = vshrl.u32 %v1747, 7
    %v1749 = vsub.s32 %v1746, %v1748
    %v1750 = vrot.slane %v1741, %v1749
    %v1752 = vunpack.c.l.s4 1983009808
    %v1753 = vunpack.c.0.s8 %v1752
    %v1754 = vlaneseq
    %v1755 = vshrl.u32 %v1754, 7
    %v1756 = vsub.s32 %v1753, %v1755
    %v1757 = vrot.slane %v1743, %v1756
    %v1758 = vcombine.high %v1750, %v1750
    %v1759 = vcombine.high %v1757, %v1757
    %v1760 = vsel %vm107, %v1750, 0
    %v1762 = vsel %vm107, %v1758, 0
    %v1764 = vsel %vm107, %v1757, 0
    %v1766 = vsel %vm107, %v1759, 0
    %1768 = vmatprep.subr.mxu0 0.0
    %1769 = vmatpush1.msra.mxu0 0.0
    %1770 = vmatprep.subr.mxu0 0.0
    %1771 = vmatpush1.msra.mxu0 0.0
    %1772 = vmatprep.subr.mxu0 0.0
    %1773 = vmatpush1.msra.mxu0 0.0
    %1774 = vmatprep.subr.mxu0 0.0
    %1775 = vmatpush1.msra.mxu0 0.0
    %1776 = vmatprep.subr.mxu0 0.0
    %1777 = vmatpush1.msra.mxu0 0.0
    %1778 = vmatprep.subr.mxu0 0.0
    %1779 = vmatpush1.msra.mxu0 0.0
    %1780 = vmatprep.subr.mxu0 0.0
    %1781 = vmatpush1.msra.mxu0 0.0
    %1782 = vmatprep.subr.mxu0 0.0
    %1783 = vmatpush1.msra.mxu0 0.0
    %1784 = vmatprep.subr.mxu0 0.0
    %1785 = vmatpush1.msra.mxu0 0.0
    %1786 = vmatprep.subr.mxu0 0.0
    %1787 = vmatpush1.msra.mxu0 0.0
    %1788 = vmatprep.subr.mxu0 0.0
    %1789 = vmatpush1.msra.mxu0 0.0
    %1790 = vmatprep.subr.mxu0 0.0
    %1791 = vmatpush1.msra.mxu0 0.0
    %1792 = vmatprep.subr.mxu0 0.0
    %1793 = vmatpush1.msra.mxu0 0.0
    %1794 = vmatprep.subr.mxu0 0.0
    %1795 = vmatpush1.msra.mxu0 0.0
    %1796 = vmatprep.subr.mxu0 0.0
    %1797 = vmatpush1.msra.mxu0 0.0
    %1798 = vmatprep.subr.mxu0 %v1762
    %1799 = vmatpush1.msra.mxu0 %v1760
    %1800 = vmatprep.subr.mxu0 0.0
    %1801 = vmatpush2.msra.mxu0 0.0
    %1802 = vmatprep.subr.mxu0 0.0
    %1803 = vmatpush2.msra.mxu0 0.0
    %1804 = vmatprep.subr.mxu0 0.0
    %1805 = vmatpush2.msra.mxu0 0.0
    %1806 = vmatprep.subr.mxu0 0.0
    %1807 = vmatpush2.msra.mxu0 0.0
    %1808 = vmatprep.subr.mxu0 0.0
    %1809 = vmatpush2.msra.mxu0 0.0
    %1810 = vmatprep.subr.mxu0 0.0
    %1811 = vmatpush2.msra.mxu0 0.0
    %1812 = vmatprep.subr.mxu0 0.0
    %1813 = vmatpush2.msra.mxu0 0.0
    %1814 = vmatprep.subr.mxu0 0.0
    %1815 = vmatpush2.msra.mxu0 0.0
    %1816 = vmatprep.subr.mxu0 0.0
    %1817 = vmatpush2.msra.mxu0 0.0
    %1818 = vmatprep.subr.mxu0 0.0
    %1819 = vmatpush2.msra.mxu0 0.0
    %1820 = vmatprep.subr.mxu0 0.0
    %1821 = vmatpush2.msra.mxu0 0.0
    %1822 = vmatprep.subr.mxu0 0.0
    %1823 = vmatpush2.msra.mxu0 0.0
    %1824 = vmatprep.subr.mxu0 0.0
    %1825 = vmatpush2.msra.mxu0 0.0
    %1826 = vmatprep.subr.mxu0 0.0
    %1827 = vmatpush2.msra.mxu0 0.0
    %1828 = vmatprep.subr.mxu0 0.0
    %1829 = vmatpush2.msra.mxu0 0.0
    %1830 = vmatprep.subr.mxu0 0.0
    %1831 = vmatpush2.msra.mxu0 0.0
    %1832 = vmatprep.mubr.f32.mxu0 0.0
    %1833 = vmatmul.mubr.f32.gmra.mxu0 %v96
    %v1834 = vpop.f32.mrf.mxu0
    %v1835 = vadd.f32 %v59, %v1834
    %v1836 = vpop.f32.mrf.mxu0
    %v1837 = vadd.f32 %v59, %v1836
    %1838 = vmatprep.mubr.f32.mxu0 0.0
    %1839 = vmatmul.mubr.f32.gmra.mxu0 %v99
    %v1840 = vpop.f32.mrf.mxu0
    %v1841 = vadd.f32 %v64, %v1840
    %v1842 = vpop.f32.mrf.mxu0
    %v1843 = vadd.f32 %v64, %v1842
    %1844 = vmatprep.mubr.f32.mxu0 0.0
    %1845 = vmatmul.mubr.f32.gmra.mxu0 %v102
    %v1846 = vpop.f32.mrf.mxu0
    %v1847 = vadd.f32 %v69, %v1846
    %v1848 = vpop.f32.mrf.mxu0
    %v1849 = vadd.f32 %v69, %v1848
    %1850 = vmatprep.mubr.f32.mxu0 0.0
    %1851 = vmatmul.mubr.f32.gmra.mxu0 %v105
    %v1852 = vpop.f32.mrf.mxu0
    %v1853 = vadd.f32 %v74, %v1852
    %v1854 = vpop.f32.mrf.mxu0
    %v1855 = vadd.f32 %v74, %v1854
    %1856 = vdwg.mxu0
    %1857 = vmatprep.subr.mxu0 0.0
    %1858 = vmatpush1.msra.mxu0 0.0
    %1859 = vmatprep.subr.mxu0 0.0
    %1860 = vmatpush1.msra.mxu0 0.0
    %1861 = vmatprep.subr.mxu0 0.0
    %1862 = vmatpush1.msra.mxu0 0.0
    %1863 = vmatprep.subr.mxu0 0.0
    %1864 = vmatpush1.msra.mxu0 0.0
    %1865 = vmatprep.subr.mxu0 0.0
    %1866 = vmatpush1.msra.mxu0 0.0
    %1867 = vmatprep.subr.mxu0 0.0
    %1868 = vmatpush1.msra.mxu0 0.0
    %1869 = vmatprep.subr.mxu0 0.0
    %1870 = vmatpush1.msra.mxu0 0.0
    %1871 = vmatprep.subr.mxu0 0.0
    %1872 = vmatpush1.msra.mxu0 0.0
    %1873 = vmatprep.subr.mxu0 0.0
    %1874 = vmatpush1.msra.mxu0 0.0
    %1875 = vmatprep.subr.mxu0 0.0
    %1876 = vmatpush1.msra.mxu0 0.0
    %1877 = vmatprep.subr.mxu0 0.0
    %1878 = vmatpush1.msra.mxu0 0.0
    %1879 = vmatprep.subr.mxu0 0.0
    %1880 = vmatpush1.msra.mxu0 0.0
    %1881 = vmatprep.subr.mxu0 0.0
    %1882 = vmatpush1.msra.mxu0 0.0
    %1883 = vmatprep.subr.mxu0 0.0
    %1884 = vmatpush1.msra.mxu0 0.0
    %1885 = vmatprep.subr.mxu0 0.0
    %1886 = vmatpush1.msra.mxu0 0.0
    %1887 = vmatprep.subr.mxu0 %v1766
    %1888 = vmatpush1.msra.mxu0 %v1764
    %1889 = vmatprep.subr.mxu0 0.0
    %1890 = vmatpush2.msra.mxu0 0.0
    %1891 = vmatprep.subr.mxu0 0.0
    %1892 = vmatpush2.msra.mxu0 0.0
    %1893 = vmatprep.subr.mxu0 0.0
    %1894 = vmatpush2.msra.mxu0 0.0
    %1895 = vmatprep.subr.mxu0 0.0
    %1896 = vmatpush2.msra.mxu0 0.0
    %1897 = vmatprep.subr.mxu0 0.0
    %1898 = vmatpush2.msra.mxu0 0.0
    %1899 = vmatprep.subr.mxu0 0.0
    %1900 = vmatpush2.msra.mxu0 0.0
    %1901 = vmatprep.subr.mxu0 0.0
    %1902 = vmatpush2.msra.mxu0 0.0
    %1903 = vmatprep.subr.mxu0 0.0
    %1904 = vmatpush2.msra.mxu0 0.0
    %1905 = vmatprep.subr.mxu0 0.0
    %1906 = vmatpush2.msra.mxu0 0.0
    %1907 = vmatprep.subr.mxu0 0.0
    %1908 = vmatpush2.msra.mxu0 0.0
    %1909 = vmatprep.subr.mxu0 0.0
    %1910 = vmatpush2.msra.mxu0 0.0
    %1911 = vmatprep.subr.mxu0 0.0
    %1912 = vmatpush2.msra.mxu0 0.0
    %1913 = vmatprep.subr.mxu0 0.0
    %1914 = vmatpush2.msra.mxu0 0.0
    %1915 = vmatprep.subr.mxu0 0.0
    %1916 = vmatpush2.msra.mxu0 0.0
    %1917 = vmatprep.subr.mxu0 0.0
    %1918 = vmatpush2.msra.mxu0 0.0
    %1919 = vmatprep.subr.mxu0 0.0
    %1920 = vmatpush2.msra.mxu0 0.0
    %1921 = vmatprep.mubr.f32.mxu0 0.0
    %1922 = vmatmul.mubr.f32.gmra.mxu0 %v96
    %v1923 = vpop.f32.mrf.mxu0
    %v1924 = vadd.f32 %v59, %v1923
    %v1925 = vpop.f32.mrf.mxu0
    %v1926 = vadd.f32 %v59, %v1925
    %1927 = vmatprep.mubr.f32.mxu0 0.0
    %1928 = vmatmul.mubr.f32.gmra.mxu0 %v99
    %v1929 = vpop.f32.mrf.mxu0
    %v1930 = vadd.f32 %v64, %v1929
    %v1931 = vpop.f32.mrf.mxu0
    %v1932 = vadd.f32 %v64, %v1931
    %1933 = vmatprep.mubr.f32.mxu0 0.0
    %1934 = vmatmul.mubr.f32.gmra.mxu0 %v102
    %v1935 = vpop.f32.mrf.mxu0
    %v1936 = vadd.f32 %v69, %v1935
    %v1937 = vpop.f32.mrf.mxu0
    %v1938 = vadd.f32 %v69, %v1937
    %1939 = vmatprep.mubr.f32.mxu0 0.0
    %1940 = vmatmul.mubr.f32.gmra.mxu0 %v105
    %v1941 = vpop.f32.mrf.mxu0
    %v1942 = vadd.f32 %v74, %v1941
    %v1943 = vpop.f32.mrf.mxu0
    %v1944 = vadd.f32 %v74, %v1943
    %1945 = vdwg.mxu0
    %v1946 = vtanh.pop %v1835
    %v1947 = vtanh.pop %v1837
    %v1948 = vtanh.pop %v1924
    %v1949 = vtanh.pop %v1926
    %v1950 = vtanh.pop %v1841
    %v1951 = vtanh.pop %v1843
    %v1952 = vtanh.pop %v1930
    %v1953 = vtanh.pop %v1932
    %v1954 = vtanh.pop %v1847
    %v1955 = vtanh.pop %v1849
    %v1956 = vtanh.pop %v1936
    %v1957 = vtanh.pop %v1938
    %v1958 = vtanh.pop %v1853
    %v1959 = vtanh.pop %v1855
    %v1960 = vtanh.pop %v1942
    %v1961 = vtanh.pop %v1944
    %1962 = vmatprep.subr.mxu0 0.0
    %1963 = vmatpush1.msra.mxu0 0.0
    %1964 = vmatprep.subr.mxu0 0.0
    %1965 = vmatpush1.msra.mxu0 0.0
    %1966 = vmatprep.subr.mxu0 0.0
    %1967 = vmatpush1.msra.mxu0 0.0
    %1968 = vmatprep.subr.mxu0 0.0
    %1969 = vmatpush1.msra.mxu0 0.0
    %1970 = vmatprep.subr.mxu0 0.0
    %1971 = vmatpush1.msra.mxu0 0.0
    %1972 = vmatprep.subr.mxu0 0.0
    %1973 = vmatpush1.msra.mxu0 0.0
    %1974 = vmatprep.subr.mxu0 0.0
    %1975 = vmatpush1.msra.mxu0 0.0
    %1976 = vmatprep.subr.mxu0 0.0
    %1977 = vmatpush1.msra.mxu0 0.0
    %1978 = vmatprep.subr.mxu0 0.0
    %1979 = vmatpush1.msra.mxu0 0.0
    %1980 = vmatprep.subr.mxu0 0.0
    %1981 = vmatpush1.msra.mxu0 0.0
    %1982 = vmatprep.subr.mxu0 0.0
    %1983 = vmatpush1.msra.mxu0 0.0
    %1984 = vmatprep.subr.mxu0 0.0
    %1985 = vmatpush1.msra.mxu0 0.0
    %1986 = vmatprep.subr.mxu0 %v1959
    %1987 = vmatpush1.msra.mxu0 %v1958
    %1988 = vmatprep.subr.mxu0 %v1955
    %1989 = vmatpush1.msra.mxu0 %v1954
    %1990 = vmatprep.subr.mxu0 %v1951
    %1991 = vmatpush1.msra.mxu0 %v1950
    %1992 = vmatprep.subr.mxu0 %v1947
    %1993 = vmatpush1.msra.mxu0 %v1946
    %1994 = vmatprep.subr.mxu0 0.0
    %1995 = vmatpush2.msra.mxu0 0.0
    %1996 = vmatprep.subr.mxu0 0.0
    %1997 = vmatpush2.msra.mxu0 0.0
    %1998 = vmatprep.subr.mxu0 0.0
    %1999 = vmatpush2.msra.mxu0 0.0
    %2000 = vmatprep.subr.mxu0 0.0
    %2001 = vmatpush2.msra.mxu0 0.0
    %2002 = vmatprep.subr.mxu0 0.0
    %2003 = vmatpush2.msra.mxu0 0.0
    %2004 = vmatprep.subr.mxu0 0.0
    %2005 = vmatpush2.msra.mxu0 0.0
    %2006 = vmatprep.subr.mxu0 0.0
    %2007 = vmatpush2.msra.mxu0 0.0
    %2008 = vmatprep.subr.mxu0 0.0
    %2009 = vmatpush2.msra.mxu0 0.0
    %2010 = vmatprep.subr.mxu0 0.0
    %2011 = vmatpush2.msra.mxu0 0.0
    %2012 = vmatprep.subr.mxu0 0.0
    %2013 = vmatpush2.msra.mxu0 0.0
    %2014 = vmatprep.subr.mxu0 0.0
    %2015 = vmatpush2.msra.mxu0 0.0
    %2016 = vmatprep.subr.mxu0 0.0
    %2017 = vmatpush2.msra.mxu0 0.0
    %2018 = vmatprep.subr.mxu0 0.0
    %2019 = vmatpush2.msra.mxu0 0.0
    %2020 = vmatprep.subr.mxu0 0.0
    %2021 = vmatpush2.msra.mxu0 0.0
    %2022 = vmatprep.subr.mxu0 0.0
    %2023 = vmatpush2.msra.mxu0 0.0
    %2024 = vmatprep.subr.mxu0 0.0
    %2025 = vmatpush2.msra.mxu0 0.0
    %2026 = vmatprep.mubr.f32.mxu0 0.0
    %2027 = vmatmul.mubr.f32.gmra.mxu0 %v332
    %v2028 = vpop.f32.mrf.mxu0
    %v2029 = vadd.f32 %v313, %v2028
    %v2030 = vpop.f32.mrf.mxu0
    %v2031 = vadd.f32 %v313, %v2030
    %2032 = vmatprep.mubr.f32.mxu0 0.0
    %2033 = vmatmul.mubr.f32.gmra.mxu0 %v335
    %v2034 = vpop.f32.mrf.mxu0
    %v2035 = vadd.f32 %v318, %v2034
    %v2036 = vpop.f32.mrf.mxu0
    %v2037 = vadd.f32 %v318, %v2036
    %2038 = vmatprep.mubr.f32.mxu0 0.0
    %2039 = vmatmul.mubr.f32.gmra.mxu0 %v338
    %v2040 = vpop.f32.mrf.mxu0
    %v2041 = vadd.f32 %v323, %v2040
    %v2042 = vpop.f32.mrf.mxu0
    %v2043 = vadd.f32 %v323, %v2042
    %2044 = vmatprep.mubr.f32.mxu0 0.0
    %2045 = vmatmul.mubr.f32.gmra.mxu0 %v341
    %v2046 = vpop.f32.mrf.mxu0
    %v2047 = vadd.f32 %v328, %v2046
    %v2048 = vpop.f32.mrf.mxu0
    %v2049 = vadd.f32 %v328, %v2048
    %2050 = vdwg.mxu0
    %2051 = vmatprep.subr.mxu0 0.0
    %2052 = vmatpush1.msra.mxu0 0.0
    %2053 = vmatprep.subr.mxu0 0.0
    %2054 = vmatpush1.msra.mxu0 0.0
    %2055 = vmatprep.subr.mxu0 0.0
    %2056 = vmatpush1.msra.mxu0 0.0
    %2057 = vmatprep.subr.mxu0 0.0
    %2058 = vmatpush1.msra.mxu0 0.0
    %2059 = vmatprep.subr.mxu0 0.0
    %2060 = vmatpush1.msra.mxu0 0.0
    %2061 = vmatprep.subr.mxu0 0.0
    %2062 = vmatpush1.msra.mxu0 0.0
    %2063 = vmatprep.subr.mxu0 0.0
    %2064 = vmatpush1.msra.mxu0 0.0
    %2065 = vmatprep.subr.mxu0 0.0
    %2066 = vmatpush1.msra.mxu0 0.0
    %2067 = vmatprep.subr.mxu0 0.0
    %2068 = vmatpush1.msra.mxu0 0.0
    %2069 = vmatprep.subr.mxu0 0.0
    %2070 = vmatpush1.msra.mxu0 0.0
    %2071 = vmatprep.subr.mxu0 0.0
    %2072 = vmatpush1.msra.mxu0 0.0
    %2073 = vmatprep.subr.mxu0 0.0
    %2074 = vmatpush1.msra.mxu0 0.0
    %2075 = vmatprep.subr.mxu0 %v1961
    %2076 = vmatpush1.msra.mxu0 %v1960
    %2077 = vmatprep.subr.mxu0 %v1957
    %2078 = vmatpush1.msra.mxu0 %v1956
    %2079 = vmatprep.subr.mxu0 %v1953
    %2080 = vmatpush1.msra.mxu0 %v1952
    %2081 = vmatprep.subr.mxu0 %v1949
    %2082 = vmatpush1.msra.mxu0 %v1948
    %2083 = vmatprep.subr.mxu0 0.0
    %2084 = vmatpush2.msra.mxu0 0.0
    %2085 = vmatprep.subr.mxu0 0.0
    %2086 = vmatpush2.msra.mxu0 0.0
    %2087 = vmatprep.subr.mxu0 0.0
    %2088 = vmatpush2.msra.mxu0 0.0
    %2089 = vmatprep.subr.mxu0 0.0
    %2090 = vmatpush2.msra.mxu0 0.0
    %2091 = vmatprep.subr.mxu0 0.0
    %2092 = vmatpush2.msra.mxu0 0.0
    %2093 = vmatprep.subr.mxu0 0.0
    %2094 = vmatpush2.msra.mxu0 0.0
    %2095 = vmatprep.subr.mxu0 0.0
    %2096 = vmatpush2.msra.mxu0 0.0
    %2097 = vmatprep.subr.mxu0 0.0
    %2098 = vmatpush2.msra.mxu0 0.0
    %2099 = vmatprep.subr.mxu0 0.0
    %2100 = vmatpush2.msra.mxu0 0.0
    %2101 = vmatprep.subr.mxu0 0.0
    %2102 = vmatpush2.msra.mxu0 0.0
    %2103 = vmatprep.subr.mxu0 0.0
    %2104 = vmatpush2.msra.mxu0 0.0
    %2105 = vmatprep.subr.mxu0 0.0
    %2106 = vmatpush2.msra.mxu0 0.0
    %2107 = vmatprep.subr.mxu0 0.0
    %2108 = vmatpush2.msra.mxu0 0.0
    %2109 = vmatprep.subr.mxu0 0.0
    %2110 = vmatpush2.msra.mxu0 0.0
    %2111 = vmatprep.subr.mxu0 0.0
    %2112 = vmatpush2.msra.mxu0 0.0
    %2113 = vmatprep.subr.mxu0 0.0
    %2114 = vmatpush2.msra.mxu0 0.0
    %2115 = vmatprep.mubr.f32.mxu0 0.0
    %2116 = vmatmul.mubr.f32.gmra.mxu0 %v332
    %v2117 = vpop.f32.mrf.mxu0
    %v2118 = vadd.f32 %v313, %v2117
    %v2119 = vpop.f32.mrf.mxu0
    %v2120 = vadd.f32 %v313, %v2119
    %2121 = vmatprep.mubr.f32.mxu0 0.0
    %2122 = vmatmul.mubr.f32.gmra.mxu0 %v335
    %v2123 = vpop.f32.mrf.mxu0
    %v2124 = vadd.f32 %v318, %v2123
    %v2125 = vpop.f32.mrf.mxu0
    %v2126 = vadd.f32 %v318, %v2125
    %2127 = vmatprep.mubr.f32.mxu0 0.0
    %2128 = vmatmul.mubr.f32.gmra.mxu0 %v338
    %v2129 = vpop.f32.mrf.mxu0
    %v2130 = vadd.f32 %v323, %v2129
    %v2131 = vpop.f32.mrf.mxu0
    %v2132 = vadd.f32 %v323, %v2131
    %2133 = vmatprep.mubr.f32.mxu0 0.0
    %2134 = vmatmul.mubr.f32.gmra.mxu0 %v341
    %v2135 = vpop.f32.mrf.mxu0
    %v2136 = vadd.f32 %v328, %v2135
    %v2137 = vpop.f32.mrf.mxu0
    %v2138 = vadd.f32 %v328, %v2137
    %2139 = vdwg.mxu0
    %v2140 = vtanh.pop %v2029
    %v2141 = vtanh.pop %v2031
    %v2142 = vtanh.pop %v2118
    %v2143 = vtanh.pop %v2120
    %v2144 = vtanh.pop %v2035
    %v2145 = vtanh.pop %v2037
    %v2146 = vtanh.pop %v2124
    %v2147 = vtanh.pop %v2126
    %v2148 = vtanh.pop %v2041
    %v2149 = vtanh.pop %v2043
    %v2150 = vtanh.pop %v2130
    %v2151 = vtanh.pop %v2132
    %v2152 = vtanh.pop %v2047
    %v2153 = vtanh.pop %v2049
    %v2154 = vtanh.pop %v2136
    %v2155 = vtanh.pop %v2138
    %2156 = vmatprep.subr.mxu0 0.0
    %2157 = vmatpush1.msra.mxu0 0.0
    %2158 = vmatprep.subr.mxu0 0.0
    %2159 = vmatpush1.msra.mxu0 0.0
    %2160 = vmatprep.subr.mxu0 0.0
    %2161 = vmatpush1.msra.mxu0 0.0
    %2162 = vmatprep.subr.mxu0 0.0
    %2163 = vmatpush1.msra.mxu0 0.0
    %2164 = vmatprep.subr.mxu0 0.0
    %2165 = vmatpush1.msra.mxu0 0.0
    %2166 = vmatprep.subr.mxu0 0.0
    %2167 = vmatpush1.msra.mxu0 0.0
    %2168 = vmatprep.subr.mxu0 0.0
    %2169 = vmatpush1.msra.mxu0 0.0
    %2170 = vmatprep.subr.mxu0 0.0
    %2171 = vmatpush1.msra.mxu0 0.0
    %2172 = vmatprep.subr.mxu0 0.0
    %2173 = vmatpush1.msra.mxu0 0.0
    %2174 = vmatprep.subr.mxu0 0.0
    %2175 = vmatpush1.msra.mxu0 0.0
    %2176 = vmatprep.subr.mxu0 0.0
    %2177 = vmatpush1.msra.mxu0 0.0
    %2178 = vmatprep.subr.mxu0 0.0
    %2179 = vmatpush1.msra.mxu0 0.0
    %2180 = vmatprep.subr.mxu0 %v2153
    %2181 = vmatpush1.msra.mxu0 %v2152
    %2182 = vmatprep.subr.mxu0 %v2149
    %2183 = vmatpush1.msra.mxu0 %v2148
    %2184 = vmatprep.subr.mxu0 %v2145
    %2185 = vmatpush1.msra.mxu0 %v2144
    %2186 = vmatprep.subr.mxu0 %v2141
    %2187 = vmatpush1.msra.mxu0 %v2140
    %2188 = vmatprep.subr.mxu0 0.0
    %2189 = vmatpush2.msra.mxu0 0.0
    %2190 = vmatprep.subr.mxu0 0.0
    %2191 = vmatpush2.msra.mxu0 0.0
    %2192 = vmatprep.subr.mxu0 0.0
    %2193 = vmatpush2.msra.mxu0 0.0
    %2194 = vmatprep.subr.mxu0 0.0
    %2195 = vmatpush2.msra.mxu0 0.0
    %2196 = vmatprep.subr.mxu0 0.0
    %2197 = vmatpush2.msra.mxu0 0.0
    %2198 = vmatprep.subr.mxu0 0.0
    %2199 = vmatpush2.msra.mxu0 0.0
    %2200 = vmatprep.subr.mxu0 0.0
    %2201 = vmatpush2.msra.mxu0 0.0
    %2202 = vmatprep.subr.mxu0 0.0
    %2203 = vmatpush2.msra.mxu0 0.0
    %2204 = vmatprep.subr.mxu0 0.0
    %2205 = vmatpush2.msra.mxu0 0.0
    %2206 = vmatprep.subr.mxu0 0.0
    %2207 = vmatpush2.msra.mxu0 0.0
    %2208 = vmatprep.subr.mxu0 0.0
    %2209 = vmatpush2.msra.mxu0 0.0
    %2210 = vmatprep.subr.mxu0 0.0
    %2211 = vmatpush2.msra.mxu0 0.0
    %2212 = vmatprep.subr.mxu0 0.0
    %2213 = vmatpush2.msra.mxu0 0.0
    %2214 = vmatprep.subr.mxu0 0.0
    %2215 = vmatpush2.msra.mxu0 0.0
    %2216 = vmatprep.subr.mxu0 0.0
    %2217 = vmatpush2.msra.mxu0 0.0
    %2218 = vmatprep.subr.mxu0 0.0
    %2219 = vmatpush2.msra.mxu0 0.0
    %2220 = vmatprep.mubr.f32.mxu0 0.0
    %2221 = vmatmul.mubr.f32.gmra.mxu0 %v558
    %v2222 = vpop.f32.mrf.mxu0
    %v2223 = vadd.f32 %v540, %v2222
    %v2224 = vpop.f32.mrf.mxu0
    %v2225 = vadd.f32 %v540, %v2224
    %2226 = vmatprep.mubr.f32.mxu0 0.0
    %2227 = vmatmul.mubr.f32.gmra.mxu0 %v561
    %v2228 = vpop.f32.mrf.mxu0
    %v2229 = vadd.f32 %v545, %v2228
    %v2230 = vpop.f32.mrf.mxu0
    %v2231 = vadd.f32 %v545, %v2230
    %2232 = vmatprep.mubr.f32.mxu0 0.0
    %2233 = vmatmul.mubr.f32.gmra.mxu0 %v564
    %v2234 = vpop.f32.mrf.mxu0
    %v2235 = vadd.f32 %v550, %v2234
    %v2236 = vpop.f32.mrf.mxu0
    %v2237 = vadd.f32 %v550, %v2236
    %2238 = vmatprep.mubr.f32.mxu0 0.0
    %2239 = vmatmul.mubr.f32.gmra.mxu0 %v567
    %v2240 = vpop.f32.mrf.mxu0
    %v2241 = vadd.f32 %v555, %v2240
    %v2242 = vpop.f32.mrf.mxu0
    %v2243 = vadd.f32 %v555, %v2242
    %2244 = vdwg.mxu0
    %2245 = vmatprep.subr.mxu0 0.0
    %2246 = vmatpush1.msra.mxu0 0.0
    %2247 = vmatprep.subr.mxu0 0.0
    %2248 = vmatpush1.msra.mxu0 0.0
    %2249 = vmatprep.subr.mxu0 0.0
    %2250 = vmatpush1.msra.mxu0 0.0
    %2251 = vmatprep.subr.mxu0 0.0
    %2252 = vmatpush1.msra.mxu0 0.0
    %2253 = vmatprep.subr.mxu0 0.0
    %2254 = vmatpush1.msra.mxu0 0.0
    %2255 = vmatprep.subr.mxu0 0.0
    %2256 = vmatpush1.msra.mxu0 0.0
    %2257 = vmatprep.subr.mxu0 0.0
    %2258 = vmatpush1.msra.mxu0 0.0
    %2259 = vmatprep.subr.mxu0 0.0
    %2260 = vmatpush1.msra.mxu0 0.0
    %2261 = vmatprep.subr.mxu0 0.0
    %2262 = vmatpush1.msra.mxu0 0.0
    %2263 = vmatprep.subr.mxu0 0.0
    %2264 = vmatpush1.msra.mxu0 0.0
    %2265 = vmatprep.subr.mxu0 0.0
    %2266 = vmatpush1.msra.mxu0 0.0
    %2267 = vmatprep.subr.mxu0 0.0
    %2268 = vmatpush1.msra.mxu0 0.0
    %2269 = vmatprep.subr.mxu0 %v2155
    %2270 = vmatpush1.msra.mxu0 %v2154
    %2271 = vmatprep.subr.mxu0 %v2151
    %2272 = vmatpush1.msra.mxu0 %v2150
    %2273 = vmatprep.subr.mxu0 %v2147
    %2274 = vmatpush1.msra.mxu0 %v2146
    %2275 = vmatprep.subr.mxu0 %v2143
    %2276 = vmatpush1.msra.mxu0 %v2142
    %2277 = vmatprep.subr.mxu0 0.0
    %2278 = vmatpush2.msra.mxu0 0.0
    %2279 = vmatprep.subr.mxu0 0.0
    %2280 = vmatpush2.msra.mxu0 0.0
    %2281 = vmatprep.subr.mxu0 0.0
    %2282 = vmatpush2.msra.mxu0 0.0
    %2283 = vmatprep.subr.mxu0 0.0
    %2284 = vmatpush2.msra.mxu0 0.0
    %2285 = vmatprep.subr.mxu0 0.0
    %2286 = vmatpush2.msra.mxu0 0.0
    %2287 = vmatprep.subr.mxu0 0.0
    %2288 = vmatpush2.msra.mxu0 0.0
    %2289 = vmatprep.subr.mxu0 0.0
    %2290 = vmatpush2.msra.mxu0 0.0
    %2291 = vmatprep.subr.mxu0 0.0
    %2292 = vmatpush2.msra.mxu0 0.0
    %2293 = vmatprep.subr.mxu0 0.0
    %2294 = vmatpush2.msra.mxu0 0.0
    %2295 = vmatprep.subr.mxu0 0.0
    %2296 = vmatpush2.msra.mxu0 0.0
    %2297 = vmatprep.subr.mxu0 0.0
    %2298 = vmatpush2.msra.mxu0 0.0
    %2299 = vmatprep.subr.mxu0 0.0
    %2300 = vmatpush2.msra.mxu0 0.0
    %2301 = vmatprep.subr.mxu0 0.0
    %2302 = vmatpush2.msra.mxu0 0.0
    %2303 = vmatprep.subr.mxu0 0.0
    %2304 = vmatpush2.msra.mxu0 0.0
    %2305 = vmatprep.subr.mxu0 0.0
    %2306 = vmatpush2.msra.mxu0 0.0
    %2307 = vmatprep.subr.mxu0 0.0
    %2308 = vmatpush2.msra.mxu0 0.0
    %2309 = vmatprep.mubr.f32.mxu0 0.0
    %2310 = vmatmul.mubr.f32.gmra.mxu0 %v558
    %v2311 = vpop.f32.mrf.mxu0
    %v2312 = vadd.f32 %v540, %v2311
    %v2313 = vpop.f32.mrf.mxu0
    %v2314 = vadd.f32 %v540, %v2313
    %2315 = vmatprep.mubr.f32.mxu0 0.0
    %2316 = vmatmul.mubr.f32.gmra.mxu0 %v561
    %v2317 = vpop.f32.mrf.mxu0
    %v2318 = vadd.f32 %v545, %v2317
    %v2319 = vpop.f32.mrf.mxu0
    %v2320 = vadd.f32 %v545, %v2319
    %2321 = vmatprep.mubr.f32.mxu0 0.0
    %2322 = vmatmul.mubr.f32.gmra.mxu0 %v564
    %v2323 = vpop.f32.mrf.mxu0
    %v2324 = vadd.f32 %v550, %v2323
    %v2325 = vpop.f32.mrf.mxu0
    %v2326 = vadd.f32 %v550, %v2325
    %2327 = vmatprep.mubr.f32.mxu0 0.0
    %2328 = vmatmul.mubr.f32.gmra.mxu0 %v567
    %v2329 = vpop.f32.mrf.mxu0
    %v2330 = vadd.f32 %v555, %v2329
    %v2331 = vpop.f32.mrf.mxu0
    %v2332 = vadd.f32 %v555, %v2331
    %2333 = vdwg.mxu0
    %v2334 = vtanh.pop %v2223
    %v2335 = vtanh.pop %v2225
    %v2336 = vtanh.pop %v2312
    %v2337 = vtanh.pop %v2314
    %v2338 = vtanh.pop %v2229
    %v2339 = vtanh.pop %v2231
    %v2340 = vtanh.pop %v2318
    %v2341 = vtanh.pop %v2320
    %v2342 = vtanh.pop %v2235
    %v2343 = vtanh.pop %v2237
    %v2344 = vtanh.pop %v2324
    %v2345 = vtanh.pop %v2326
    %v2346 = vtanh.pop %v2241
    %v2347 = vtanh.pop %v2243
    %v2348 = vtanh.pop %v2330
    %v2349 = vtanh.pop %v2332
    %2350 = vmatprep.subr.mxu0 0.0
    %2351 = vmatpush1.msra.mxu0 0.0
    %2352 = vmatprep.subr.mxu0 0.0
    %2353 = vmatpush1.msra.mxu0 0.0
    %2354 = vmatprep.subr.mxu0 0.0
    %2355 = vmatpush1.msra.mxu0 0.0
    %2356 = vmatprep.subr.mxu0 0.0
    %2357 = vmatpush1.msra.mxu0 0.0
    %2358 = vmatprep.subr.mxu0 0.0
    %2359 = vmatpush1.msra.mxu0 0.0
    %2360 = vmatprep.subr.mxu0 0.0
    %2361 = vmatpush1.msra.mxu0 0.0
    %2362 = vmatprep.subr.mxu0 0.0
    %2363 = vmatpush1.msra.mxu0 0.0
    %2364 = vmatprep.subr.mxu0 0.0
    %2365 = vmatpush1.msra.mxu0 0.0
    %2366 = vmatprep.subr.mxu0 0.0
    %2367 = vmatpush1.msra.mxu0 0.0
    %2368 = vmatprep.subr.mxu0 0.0
    %2369 = vmatpush1.msra.mxu0 0.0
    %2370 = vmatprep.subr.mxu0 0.0
    %2371 = vmatpush1.msra.mxu0 0.0
    %2372 = vmatprep.subr.mxu0 0.0
    %2373 = vmatpush1.msra.mxu0 0.0
    %2374 = vmatprep.subr.mxu0 %v2347
    %2375 = vmatpush1.msra.mxu0 %v2346
    %2376 = vmatprep.subr.mxu0 %v2343
    %2377 = vmatpush1.msra.mxu0 %v2342
    %2378 = vmatprep.subr.mxu0 %v2339
    %2379 = vmatpush1.msra.mxu0 %v2338
    %2380 = vmatprep.subr.mxu0 %v2335
    %2381 = vmatpush1.msra.mxu0 %v2334
    %2382 = vmatprep.subr.mxu0 0.0
    %2383 = vmatpush2.msra.mxu0 0.0
    %2384 = vmatprep.subr.mxu0 0.0
    %2385 = vmatpush2.msra.mxu0 0.0
    %2386 = vmatprep.subr.mxu0 0.0
    %2387 = vmatpush2.msra.mxu0 0.0
    %2388 = vmatprep.subr.mxu0 0.0
    %2389 = vmatpush2.msra.mxu0 0.0
    %2390 = vmatprep.subr.mxu0 0.0
    %2391 = vmatpush2.msra.mxu0 0.0
    %2392 = vmatprep.subr.mxu0 0.0
    %2393 = vmatpush2.msra.mxu0 0.0
    %2394 = vmatprep.subr.mxu0 0.0
    %2395 = vmatpush2.msra.mxu0 0.0
    %2396 = vmatprep.subr.mxu0 0.0
    %2397 = vmatpush2.msra.mxu0 0.0
    %2398 = vmatprep.subr.mxu0 0.0
    %2399 = vmatpush2.msra.mxu0 0.0
    %2400 = vmatprep.subr.mxu0 0.0
    %2401 = vmatpush2.msra.mxu0 0.0
    %2402 = vmatprep.subr.mxu0 0.0
    %2403 = vmatpush2.msra.mxu0 0.0
    %2404 = vmatprep.subr.mxu0 0.0
    %2405 = vmatpush2.msra.mxu0 0.0
    %2406 = vmatprep.subr.mxu0 0.0
    %2407 = vmatpush2.msra.mxu0 0.0
    %2408 = vmatprep.subr.mxu0 0.0
    %2409 = vmatpush2.msra.mxu0 0.0
    %2410 = vmatprep.subr.mxu0 0.0
    %2411 = vmatpush2.msra.mxu0 0.0
    %2412 = vmatprep.subr.mxu0 0.0
    %2413 = vmatpush2.msra.mxu0 0.0
    %2414 = vmatprep.mubr.f32.mxu0 0.0
    %2415 = vmatmul.mubr.f32.gmra.mxu0 %v781
    %v2416 = vpop.f32.mrf.mxu0
    %v2417 = vadd.f32 %v766, %v2416
    %v2418 = vpop.f32.mrf.mxu0
    %v2419 = vadd.f32 %v766, %v2418
    %2420 = vmatprep.mubr.f32.mxu0 0.0
    %2421 = vmatmul.mubr.f32.gmra.mxu0 %v784
    %v2422 = vpop.f32.mrf.mxu0
    %v2423 = vpop.f32.mrf.mxu0
    %2424 = vmatprep.mubr.f32.mxu0 0.0
    %2425 = vmatmul.mubr.f32.gmra.mxu0 %v787
    %v2426 = vpop.f32.mrf.mxu0
    %v2427 = vpop.f32.mrf.mxu0
    %2428 = vmatprep.mubr.f32.mxu0 0.0
    %2429 = vmatmul.mubr.f32.gmra.mxu0 %v790
    %v2430 = vpop.f32.mrf.mxu0
    %v2431 = vpop.f32.mrf.mxu0
    %2432 = vdwg.mxu0
    %2433 = vmatprep.subr.mxu0 0.0
    %2434 = vmatpush1.msra.mxu0 0.0
    %2435 = vmatprep.subr.mxu0 0.0
    %2436 = vmatpush1.msra.mxu0 0.0
    %2437 = vmatprep.subr.mxu0 0.0
    %2438 = vmatpush1.msra.mxu0 0.0
    %2439 = vmatprep.subr.mxu0 0.0
    %2440 = vmatpush1.msra.mxu0 0.0
    %2441 = vmatprep.subr.mxu0 0.0
    %2442 = vmatpush1.msra.mxu0 0.0
    %2443 = vmatprep.subr.mxu0 0.0
    %2444 = vmatpush1.msra.mxu0 0.0
    %2445 = vmatprep.subr.mxu0 0.0
    %2446 = vmatpush1.msra.mxu0 0.0
    %2447 = vmatprep.subr.mxu0 0.0
    %2448 = vmatpush1.msra.mxu0 0.0
    %2449 = vmatprep.subr.mxu0 0.0
    %2450 = vmatpush1.msra.mxu0 0.0
    %2451 = vmatprep.subr.mxu0 0.0
    %2452 = vmatpush1.msra.mxu0 0.0
    %2453 = vmatprep.subr.mxu0 0.0
    %2454 = vmatpush1.msra.mxu0 0.0
    %2455 = vmatprep.subr.mxu0 0.0
    %2456 = vmatpush1.msra.mxu0 0.0
    %2457 = vmatprep.subr.mxu0 %v2349
    %2458 = vmatpush1.msra.mxu0 %v2348
    %2459 = vmatprep.subr.mxu0 %v2345
    %2460 = vmatpush1.msra.mxu0 %v2344
    %2461 = vmatprep.subr.mxu0 %v2341
    %2462 = vmatpush1.msra.mxu0 %v2340
    %2463 = vmatprep.subr.mxu0 %v2337
    %2464 = vmatpush1.msra.mxu0 %v2336
    %2465 = vmatprep.subr.mxu0 0.0
    %2466 = vmatpush2.msra.mxu0 0.0
    %2467 = vmatprep.subr.mxu0 0.0
    %2468 = vmatpush2.msra.mxu0 0.0
    %2469 = vmatprep.subr.mxu0 0.0
    %2470 = vmatpush2.msra.mxu0 0.0
    %2471 = vmatprep.subr.mxu0 0.0
    %2472 = vmatpush2.msra.mxu0 0.0
    %2473 = vmatprep.subr.mxu0 0.0
    %2474 = vmatpush2.msra.mxu0 0.0
    %2475 = vmatprep.subr.mxu0 0.0
    %2476 = vmatpush2.msra.mxu0 0.0
    %2477 = vmatprep.subr.mxu0 0.0
    %2478 = vmatpush2.msra.mxu0 0.0
    %2479 = vmatprep.subr.mxu0 0.0
    %2480 = vmatpush2.msra.mxu0 0.0
    %2481 = vmatprep.subr.mxu0 0.0
    %2482 = vmatpush2.msra.mxu0 0.0
    %2483 = vmatprep.subr.mxu0 0.0
    %2484 = vmatpush2.msra.mxu0 0.0
    %2485 = vmatprep.subr.mxu0 0.0
    %2486 = vmatpush2.msra.mxu0 0.0
    %2487 = vmatprep.subr.mxu0 0.0
    %2488 = vmatpush2.msra.mxu0 0.0
    %2489 = vmatprep.subr.mxu0 0.0
    %2490 = vmatpush2.msra.mxu0 0.0
    %2491 = vmatprep.subr.mxu0 0.0
    %2492 = vmatpush2.msra.mxu0 0.0
    %2493 = vmatprep.subr.mxu0 0.0
    %2494 = vmatpush2.msra.mxu0 0.0
    %2495 = vmatprep.subr.mxu0 0.0
    %2496 = vmatpush2.msra.mxu0 0.0
    %2497 = vmatprep.mubr.f32.mxu0 0.0
    %2498 = vmatmul.mubr.f32.gmra.mxu0 %v781
    %v2499 = vpop.f32.mrf.mxu0
    %v2500 = vadd.f32 %v766, %v2499
    %v2501 = vpop.f32.mrf.mxu0
    %v2502 = vadd.f32 %v766, %v2501
    %2503 = vmatprep.mubr.f32.mxu0 0.0
    %2504 = vmatmul.mubr.f32.gmra.mxu0 %v784
    %v2505 = vpop.f32.mrf.mxu0
    %v2506 = vpop.f32.mrf.mxu0
    %2507 = vmatprep.mubr.f32.mxu0 0.0
    %2508 = vmatmul.mubr.f32.gmra.mxu0 %v787
    %v2509 = vpop.f32.mrf.mxu0
    %v2510 = vpop.f32.mrf.mxu0
    %2511 = vmatprep.mubr.f32.mxu0 0.0
    %2512 = vmatmul.mubr.f32.gmra.mxu0 %v790
    %v2513 = vpop.f32.mrf.mxu0
    %v2514 = vpop.f32.mrf.mxu0
    %2515 = vdwg.mxu0
    %2516 = vst [vmem:[#allocation2 + $0x40] sm:$0xff] %v2417
    %2517 = vst [vmem:[#allocation2 + $0x48] sm:$0xff] %v2419
    %2518 = vst [vmem:[#allocation2 + $0x50] sm:$0xff] %v2500
    %2519 = vst [vmem:[#allocation2 + $0x58] sm:$0xff] %v2502
    %v2520 = vld [vmem:[%s0 + $0x18] sm:$0xff]
    %v2522 = vcombine.high %v2520, %v2520
    %v2524 = vunpack.c.l.s4 1983009808
    %v2525 = vunpack.c.0.s8 %v2524
    %v2526 = vlaneseq
    %v2527 = vshrl.u32 %v2526, 7
    %v2528 = vsub.s32 %v2525, %v2527
    %v2529 = vrot.slane %v2520, %v2528
    %v2531 = vunpack.c.l.s4 1983009808
    %v2532 = vunpack.c.0.s8 %v2531
    %v2533 = vlaneseq
    %v2534 = vshrl.u32 %v2533, 7
    %v2535 = vsub.s32 %v2532, %v2534
    %v2536 = vrot.slane %v2522, %v2535
    %v2537 = vcombine.high %v2529, %v2529
    %v2538 = vcombine.high %v2536, %v2536
    %v2539 = vsel %vm107, %v2529, 0
    %v2541 = vsel %vm107, %v2537, 0
    %v2543 = vsel %vm107, %v2536, 0
    %v2545 = vsel %vm107, %v2538, 0
    %2547 = vmatprep.subr.mxu0 0.0
    %2548 = vmatpush1.msra.mxu0 0.0
    %2549 = vmatprep.subr.mxu0 0.0
    %2550 = vmatpush1.msra.mxu0 0.0
    %2551 = vmatprep.subr.mxu0 0.0
    %2552 = vmatpush1.msra.mxu0 0.0
    %2553 = vmatprep.subr.mxu0 0.0
    %2554 = vmatpush1.msra.mxu0 0.0
    %2555 = vmatprep.subr.mxu0 0.0
    %2556 = vmatpush1.msra.mxu0 0.0
    %2557 = vmatprep.subr.mxu0 0.0
    %2558 = vmatpush1.msra.mxu0 0.0
    %2559 = vmatprep.subr.mxu0 0.0
    %2560 = vmatpush1.msra.mxu0 0.0
    %2561 = vmatprep.subr.mxu0 0.0
    %2562 = vmatpush1.msra.mxu0 0.0
    %2563 = vmatprep.subr.mxu0 0.0
    %2564 = vmatpush1.msra.mxu0 0.0
    %2565 = vmatprep.subr.mxu0 0.0
    %2566 = vmatpush1.msra.mxu0 0.0
    %2567 = vmatprep.subr.mxu0 0.0
    %2568 = vmatpush1.msra.mxu0 0.0
    %2569 = vmatprep.subr.mxu0 0.0
    %2570 = vmatpush1.msra.mxu0 0.0
    %2571 = vmatprep.subr.mxu0 0.0
    %2572 = vmatpush1.msra.mxu0 0.0
    %2573 = vmatprep.subr.mxu0 0.0
    %2574 = vmatpush1.msra.mxu0 0.0
    %2575 = vmatprep.subr.mxu0 0.0
    %2576 = vmatpush1.msra.mxu0 0.0
    %2577 = vmatprep.subr.mxu0 %v2541
    %2578 = vmatpush1.msra.mxu0 %v2539
    %2579 = vmatprep.subr.mxu0 0.0
    %2580 = vmatpush2.msra.mxu0 0.0
    %2581 = vmatprep.subr.mxu0 0.0
    %2582 = vmatpush2.msra.mxu0 0.0
    %2583 = vmatprep.subr.mxu0 0.0
    %2584 = vmatpush2.msra.mxu0 0.0
    %2585 = vmatprep.subr.mxu0 0.0
    %2586 = vmatpush2.msra.mxu0 0.0
    %2587 = vmatprep.subr.mxu0 0.0
    %2588 = vmatpush2.msra.mxu0 0.0
    %2589 = vmatprep.subr.mxu0 0.0
    %2590 = vmatpush2.msra.mxu0 0.0
    %2591 = vmatprep.subr.mxu0 0.0
    %2592 = vmatpush2.msra.mxu0 0.0
    %2593 = vmatprep.subr.mxu0 0.0
    %2594 = vmatpush2.msra.mxu0 0.0
    %2595 = vmatprep.subr.mxu0 0.0
    %2596 = vmatpush2.msra.mxu0 0.0
    %2597 = vmatprep.subr.mxu0 0.0
    %2598 = vmatpush2.msra.mxu0 0.0
    %2599 = vmatprep.subr.mxu0 0.0
    %2600 = vmatpush2.msra.mxu0 0.0
    %2601 = vmatprep.subr.mxu0 0.0
    %2602 = vmatpush2.msra.mxu0 0.0
    %2603 = vmatprep.subr.mxu0 0.0
    %2604 = vmatpush2.msra.mxu0 0.0
    %2605 = vmatprep.subr.mxu0 0.0
    %2606 = vmatpush2.msra.mxu0 0.0
    %2607 = vmatprep.subr.mxu0 0.0
    %2608 = vmatpush2.msra.mxu0 0.0
    %2609 = vmatprep.subr.mxu0 0.0
    %2610 = vmatpush2.msra.mxu0 0.0
    %2611 = vmatprep.mubr.f32.mxu0 0.0
    %2612 = vmatmul.mubr.f32.gmra.mxu0 %v96
    %v2613 = vpop.f32.mrf.mxu0
    %v2614 = vadd.f32 %v59, %v2613
    %v2615 = vpop.f32.mrf.mxu0
    %v2616 = vadd.f32 %v59, %v2615
    %2617 = vmatprep.mubr.f32.mxu0 0.0
    %2618 = vmatmul.mubr.f32.gmra.mxu0 %v99
    %v2619 = vpop.f32.mrf.mxu0
    %v2620 = vadd.f32 %v64, %v2619
    %v2621 = vpop.f32.mrf.mxu0
    %v2622 = vadd.f32 %v64, %v2621
    %2623 = vmatprep.mubr.f32.mxu0 0.0
    %2624 = vmatmul.mubr.f32.gmra.mxu0 %v102
    %v2625 = vpop.f32.mrf.mxu0
    %v2626 = vadd.f32 %v69, %v2625
    %v2627 = vpop.f32.mrf.mxu0
    %v2628 = vadd.f32 %v69, %v2627
    %2629 = vmatprep.mubr.f32.mxu0 0.0
    %2630 = vmatmul.mubr.f32.gmra.mxu0 %v105
    %v2631 = vpop.f32.mrf.mxu0
    %v2632 = vadd.f32 %v74, %v2631
    %v2633 = vpop.f32.mrf.mxu0
    %v2634 = vadd.f32 %v74, %v2633
    %2635 = vdwg.mxu0
    %2636 = vmatprep.subr.mxu0 0.0
    %2637 = vmatpush1.msra.mxu0 0.0
    %2638 = vmatprep.subr.mxu0 0.0
    %2639 = vmatpush1.msra.mxu0 0.0
    %2640 = vmatprep.subr.mxu0 0.0
    %2641 = vmatpush1.msra.mxu0 0.0
    %2642 = vmatprep.subr.mxu0 0.0
    %2643 = vmatpush1.msra.mxu0 0.0
    %2644 = vmatprep.subr.mxu0 0.0
    %2645 = vmatpush1.msra.mxu0 0.0
    %2646 = vmatprep.subr.mxu0 0.0
    %2647 = vmatpush1.msra.mxu0 0.0
    %2648 = vmatprep.subr.mxu0 0.0
    %2649 = vmatpush1.msra.mxu0 0.0
    %2650 = vmatprep.subr.mxu0 0.0
    %2651 = vmatpush1.msra.mxu0 0.0
    %2652 = vmatprep.subr.mxu0 0.0
    %2653 = vmatpush1.msra.mxu0 0.0
    %2654 = vmatprep.subr.mxu0 0.0
    %2655 = vmatpush1.msra.mxu0 0.0
    %2656 = vmatprep.subr.mxu0 0.0
    %2657 = vmatpush1.msra.mxu0 0.0
    %2658 = vmatprep.subr.mxu0 0.0
    %2659 = vmatpush1.msra.mxu0 0.0
    %2660 = vmatprep.subr.mxu0 0.0
    %2661 = vmatpush1.msra.mxu0 0.0
    %2662 = vmatprep.subr.mxu0 0.0
    %2663 = vmatpush1.msra.mxu0 0.0
    %2664 = vmatprep.subr.mxu0 0.0
    %2665 = vmatpush1.msra.mxu0 0.0
    %2666 = vmatprep.subr.mxu0 %v2545
    %2667 = vmatpush1.msra.mxu0 %v2543
    %2668 = vmatprep.subr.mxu0 0.0
    %2669 = vmatpush2.msra.mxu0 0.0
    %2670 = vmatprep.subr.mxu0 0.0
    %2671 = vmatpush2.msra.mxu0 0.0
    %2672 = vmatprep.subr.mxu0 0.0
    %2673 = vmatpush2.msra.mxu0 0.0
    %2674 = vmatprep.subr.mxu0 0.0
    %2675 = vmatpush2.msra.mxu0 0.0
    %2676 = vmatprep.subr.mxu0 0.0
    %2677 = vmatpush2.msra.mxu0 0.0
    %2678 = vmatprep.subr.mxu0 0.0
    %2679 = vmatpush2.msra.mxu0 0.0
    %2680 = vmatprep.subr.mxu0 0.0
    %2681 = vmatpush2.msra.mxu0 0.0
    %2682 = vmatprep.subr.mxu0 0.0
    %2683 = vmatpush2.msra.mxu0 0.0
    %2684 = vmatprep.subr.mxu0 0.0
    %2685 = vmatpush2.msra.mxu0 0.0
    %2686 = vmatprep.subr.mxu0 0.0
    %2687 = vmatpush2.msra.mxu0 0.0
    %2688 = vmatprep.subr.mxu0 0.0
    %2689 = vmatpush2.msra.mxu0 0.0
    %2690 = vmatprep.subr.mxu0 0.0
    %2691 = vmatpush2.msra.mxu0 0.0
    %2692 = vmatprep.subr.mxu0 0.0
    %2693 = vmatpush2.msra.mxu0 0.0
    %2694 = vmatprep.subr.mxu0 0.0
    %2695 = vmatpush2.msra.mxu0 0.0
    %2696 = vmatprep.subr.mxu0 0.0
    %2697 = vmatpush2.msra.mxu0 0.0
    %2698 = vmatprep.subr.mxu0 0.0
    %2699 = vmatpush2.msra.mxu0 0.0
    %2700 = vmatprep.mubr.f32.mxu0 0.0
    %2701 = vmatmul.mubr.f32.gmra.mxu0 %v96
    %v2702 = vpop.f32.mrf.mxu0
    %v2703 = vadd.f32 %v59, %v2702
    %v2704 = vpop.f32.mrf.mxu0
    %v2705 = vadd.f32 %v59, %v2704
    %2706 = vmatprep.mubr.f32.mxu0 0.0
    %2707 = vmatmul.mubr.f32.gmra.mxu0 %v99
    %v2708 = vpop.f32.mrf.mxu0
    %v2709 = vadd.f32 %v64, %v2708
    %v2710 = vpop.f32.mrf.mxu0
    %v2711 = vadd.f32 %v64, %v2710
    %2712 = vmatprep.mubr.f32.mxu0 0.0
    %2713 = vmatmul.mubr.f32.gmra.mxu0 %v102
    %v2714 = vpop.f32.mrf.mxu0
    %v2715 = vadd.f32 %v69, %v2714
    %v2716 = vpop.f32.mrf.mxu0
    %v2717 = vadd.f32 %v69, %v2716
    %2718 = vmatprep.mubr.f32.mxu0 0.0
    %2719 = vmatmul.mubr.f32.gmra.mxu0 %v105
    %v2720 = vpop.f32.mrf.mxu0
    %v2721 = vadd.f32 %v74, %v2720
    %v2722 = vpop.f32.mrf.mxu0
    %v2723 = vadd.f32 %v74, %v2722
    %2724 = vdwg.mxu0
    %v2725 = vtanh.pop %v2614
    %v2726 = vtanh.pop %v2616
    %v2727 = vtanh.pop %v2703
    %v2728 = vtanh.pop %v2705
    %v2729 = vtanh.pop %v2620
    %v2730 = vtanh.pop %v2622
    %v2731 = vtanh.pop %v2709
    %v2732 = vtanh.pop %v2711
    %v2733 = vtanh.pop %v2626
    %v2734 = vtanh.pop %v2628
    %v2735 = vtanh.pop %v2715
    %v2736 = vtanh.pop %v2717
    %v2737 = vtanh.pop %v2632
    %v2738 = vtanh.pop %v2634
    %v2739 = vtanh.pop %v2721
    %v2740 = vtanh.pop %v2723
    %2741 = vmatprep.subr.mxu0 0.0
    %2742 = vmatpush1.msra.mxu0 0.0
    %2743 = vmatprep.subr.mxu0 0.0
    %2744 = vmatpush1.msra.mxu0 0.0
    %2745 = vmatprep.subr.mxu0 0.0
    %2746 = vmatpush1.msra.mxu0 0.0
    %2747 = vmatprep.subr.mxu0 0.0
    %2748 = vmatpush1.msra.mxu0 0.0
    %2749 = vmatprep.subr.mxu0 0.0
    %2750 = vmatpush1.msra.mxu0 0.0
    %2751 = vmatprep.subr.mxu0 0.0
    %2752 = vmatpush1.msra.mxu0 0.0
    %2753 = vmatprep.subr.mxu0 0.0
    %2754 = vmatpush1.msra.mxu0 0.0
    %2755 = vmatprep.subr.mxu0 0.0
    %2756 = vmatpush1.msra.mxu0 0.0
    %2757 = vmatprep.subr.mxu0 0.0
    %2758 = vmatpush1.msra.mxu0 0.0
    %2759 = vmatprep.subr.mxu0 0.0
    %2760 = vmatpush1.msra.mxu0 0.0
    %2761 = vmatprep.subr.mxu0 0.0
    %2762 = vmatpush1.msra.mxu0 0.0
    %2763 = vmatprep.subr.mxu0 0.0
    %2764 = vmatpush1.msra.mxu0 0.0
    %2765 = vmatprep.subr.mxu0 %v2738
    %2766 = vmatpush1.msra.mxu0 %v2737
    %2767 = vmatprep.subr.mxu0 %v2734
    %2768 = vmatpush1.msra.mxu0 %v2733
    %2769 = vmatprep.subr.mxu0 %v2730
    %2770 = vmatpush1.msra.mxu0 %v2729
    %2771 = vmatprep.subr.mxu0 %v2726
    %2772 = vmatpush1.msra.mxu0 %v2725
    %2773 = vmatprep.subr.mxu0 0.0
    %2774 = vmatpush2.msra.mxu0 0.0
    %2775 = vmatprep.subr.mxu0 0.0
    %2776 = vmatpush2.msra.mxu0 0.0
    %2777 = vmatprep.subr.mxu0 0.0
    %2778 = vmatpush2.msra.mxu0 0.0
    %2779 = vmatprep.subr.mxu0 0.0
    %2780 = vmatpush2.msra.mxu0 0.0
    %2781 = vmatprep.subr.mxu0 0.0
    %2782 = vmatpush2.msra.mxu0 0.0
    %2783 = vmatprep.subr.mxu0 0.0
    %2784 = vmatpush2.msra.mxu0 0.0
    %2785 = vmatprep.subr.mxu0 0.0
    %2786 = vmatpush2.msra.mxu0 0.0
    %2787 = vmatprep.subr.mxu0 0.0
    %2788 = vmatpush2.msra.mxu0 0.0
    %2789 = vmatprep.subr.mxu0 0.0
    %2790 = vmatpush2.msra.mxu0 0.0
    %2791 = vmatprep.subr.mxu0 0.0
    %2792 = vmatpush2.msra.mxu0 0.0
    %2793 = vmatprep.subr.mxu0 0.0
    %2794 = vmatpush2.msra.mxu0 0.0
    %2795 = vmatprep.subr.mxu0 0.0
    %2796 = vmatpush2.msra.mxu0 0.0
    %2797 = vmatprep.subr.mxu0 0.0
    %2798 = vmatpush2.msra.mxu0 0.0
    %2799 = vmatprep.subr.mxu0 0.0
    %2800 = vmatpush2.msra.mxu0 0.0
    %2801 = vmatprep.subr.mxu0 0.0
    %2802 = vmatpush2.msra.mxu0 0.0
    %2803 = vmatprep.subr.mxu0 0.0
    %2804 = vmatpush2.msra.mxu0 0.0
    %2805 = vmatprep.mubr.f32.mxu0 0.0
    %2806 = vmatmul.mubr.f32.gmra.mxu0 %v332
    %v2807 = vpop.f32.mrf.mxu0
    %v2808 = vadd.f32 %v313, %v2807
    %v2809 = vpop.f32.mrf.mxu0
    %v2810 = vadd.f32 %v313, %v2809
    %2811 = vmatprep.mubr.f32.mxu0 0.0
    %2812 = vmatmul.mubr.f32.gmra.mxu0 %v335
    %v2813 = vpop.f32.mrf.mxu0
    %v2814 = vadd.f32 %v318, %v2813
    %v2815 = vpop.f32.mrf.mxu0
    %v2816 = vadd.f32 %v318, %v2815
    %2817 = vmatprep.mubr.f32.mxu0 0.0
    %2818 = vmatmul.mubr.f32.gmra.mxu0 %v338
    %v2819 = vpop.f32.mrf.mxu0
    %v2820 = vadd.f32 %v323, %v2819
    %v2821 = vpop.f32.mrf.mxu0
    %v2822 = vadd.f32 %v323, %v2821
    %2823 = vmatprep.mubr.f32.mxu0 0.0
    %2824 = vmatmul.mubr.f32.gmra.mxu0 %v341
    %v2825 = vpop.f32.mrf.mxu0
    %v2826 = vadd.f32 %v328, %v2825
    %v2827 = vpop.f32.mrf.mxu0
    %v2828 = vadd.f32 %v328, %v2827
    %2829 = vdwg.mxu0
    %2830 = vmatprep.subr.mxu0 0.0
    %2831 = vmatpush1.msra.mxu0 0.0
    %2832 = vmatprep.subr.mxu0 0.0
    %2833 = vmatpush1.msra.mxu0 0.0
    %2834 = vmatprep.subr.mxu0 0.0
    %2835 = vmatpush1.msra.mxu0 0.0
    %2836 = vmatprep.subr.mxu0 0.0
    %2837 = vmatpush1.msra.mxu0 0.0
    %2838 = vmatprep.subr.mxu0 0.0
    %2839 = vmatpush1.msra.mxu0 0.0
    %2840 = vmatprep.subr.mxu0 0.0
    %2841 = vmatpush1.msra.mxu0 0.0
    %2842 = vmatprep.subr.mxu0 0.0
    %2843 = vmatpush1.msra.mxu0 0.0
    %2844 = vmatprep.subr.mxu0 0.0
    %2845 = vmatpush1.msra.mxu0 0.0
    %2846 = vmatprep.subr.mxu0 0.0
    %2847 = vmatpush1.msra.mxu0 0.0
    %2848 = vmatprep.subr.mxu0 0.0
    %2849 = vmatpush1.msra.mxu0 0.0
    %2850 = vmatprep.subr.mxu0 0.0
    %2851 = vmatpush1.msra.mxu0 0.0
    %2852 = vmatprep.subr.mxu0 0.0
    %2853 = vmatpush1.msra.mxu0 0.0
    %2854 = vmatprep.subr.mxu0 %v2740
    %2855 = vmatpush1.msra.mxu0 %v2739
    %2856 = vmatprep.subr.mxu0 %v2736
    %2857 = vmatpush1.msra.mxu0 %v2735
    %2858 = vmatprep.subr.mxu0 %v2732
    %2859 = vmatpush1.msra.mxu0 %v2731
    %2860 = vmatprep.subr.mxu0 %v2728
    %2861 = vmatpush1.msra.mxu0 %v2727
    %2862 = vmatprep.subr.mxu0 0.0
    %2863 = vmatpush2.msra.mxu0 0.0
    %2864 = vmatprep.subr.mxu0 0.0
    %2865 = vmatpush2.msra.mxu0 0.0
    %2866 = vmatprep.subr.mxu0 0.0
    %2867 = vmatpush2.msra.mxu0 0.0
    %2868 = vmatprep.subr.mxu0 0.0
    %2869 = vmatpush2.msra.mxu0 0.0
    %2870 = vmatprep.subr.mxu0 0.0
    %2871 = vmatpush2.msra.mxu0 0.0
    %2872 = vmatprep.subr.mxu0 0.0
    %2873 = vmatpush2.msra.mxu0 0.0
    %2874 = vmatprep.subr.mxu0 0.0
    %2875 = vmatpush2.msra.mxu0 0.0
    %2876 = vmatprep.subr.mxu0 0.0
    %2877 = vmatpush2.msra.mxu0 0.0
    %2878 = vmatprep.subr.mxu0 0.0
    %2879 = vmatpush2.msra.mxu0 0.0
    %2880 = vmatprep.subr.mxu0 0.0
    %2881 = vmatpush2.msra.mxu0 0.0
    %2882 = vmatprep.subr.mxu0 0.0
    %2883 = vmatpush2.msra.mxu0 0.0
    %2884 = vmatprep.subr.mxu0 0.0
    %2885 = vmatpush2.msra.mxu0 0.0
    %2886 = vmatprep.subr.mxu0 0.0
    %2887 = vmatpush2.msra.mxu0 0.0
    %2888 = vmatprep.subr.mxu0 0.0
    %2889 = vmatpush2.msra.mxu0 0.0
    %2890 = vmatprep.subr.mxu0 0.0
    %2891 = vmatpush2.msra.mxu0 0.0
    %2892 = vmatprep.subr.mxu0 0.0
    %2893 = vmatpush2.msra.mxu0 0.0
    %2894 = vmatprep.mubr.f32.mxu0 0.0
    %2895 = vmatmul.mubr.f32.gmra.mxu0 %v332
    %v2896 = vpop.f32.mrf.mxu0
    %v2897 = vadd.f32 %v313, %v2896
    %v2898 = vpop.f32.mrf.mxu0
    %v2899 = vadd.f32 %v313, %v2898
    %2900 = vmatprep.mubr.f32.mxu0 0.0
    %2901 = vmatmul.mubr.f32.gmra.mxu0 %v335
    %v2902 = vpop.f32.mrf.mxu0
    %v2903 = vadd.f32 %v318, %v2902
    %v2904 = vpop.f32.mrf.mxu0
    %v2905 = vadd.f32 %v318, %v2904
    %2906 = vmatprep.mubr.f32.mxu0 0.0
    %2907 = vmatmul.mubr.f32.gmra.mxu0 %v338
    %v2908 = vpop.f32.mrf.mxu0
    %v2909 = vadd.f32 %v323, %v2908
    %v2910 = vpop.f32.mrf.mxu0
    %v2911 = vadd.f32 %v323, %v2910
    %2912 = vmatprep.mubr.f32.mxu0 0.0
    %2913 = vmatmul.mubr.f32.gmra.mxu0 %v341
    %v2914 = vpop.f32.mrf.mxu0
    %v2915 = vadd.f32 %v328, %v2914
    %v2916 = vpop.f32.mrf.mxu0
    %v2917 = vadd.f32 %v328, %v2916
    %2918 = vdwg.mxu0
    %v2919 = vtanh.pop %v2808
    %v2920 = vtanh.pop %v2810
    %v2921 = vtanh.pop %v2897
    %v2922 = vtanh.pop %v2899
    %v2923 = vtanh.pop %v2814
    %v2924 = vtanh.pop %v2816
    %v2925 = vtanh.pop %v2903
    %v2926 = vtanh.pop %v2905
    %v2927 = vtanh.pop %v2820
    %v2928 = vtanh.pop %v2822
    %v2929 = vtanh.pop %v2909
    %v2930 = vtanh.pop %v2911
    %v2931 = vtanh.pop %v2826
    %v2932 = vtanh.pop %v2828
    %v2933 = vtanh.pop %v2915
    %v2934 = vtanh.pop %v2917
    %2935 = vmatprep.subr.mxu0 0.0
    %2936 = vmatpush1.msra.mxu0 0.0
    %2937 = vmatprep.subr.mxu0 0.0
    %2938 = vmatpush1.msra.mxu0 0.0
    %2939 = vmatprep.subr.mxu0 0.0
    %2940 = vmatpush1.msra.mxu0 0.0
    %2941 = vmatprep.subr.mxu0 0.0
    %2942 = vmatpush1.msra.mxu0 0.0
    %2943 = vmatprep.subr.mxu0 0.0
    %2944 = vmatpush1.msra.mxu0 0.0
    %2945 = vmatprep.subr.mxu0 0.0
    %2946 = vmatpush1.msra.mxu0 0.0
    %2947 = vmatprep.subr.mxu0 0.0
    %2948 = vmatpush1.msra.mxu0 0.0
    %2949 = vmatprep.subr.mxu0 0.0
    %2950 = vmatpush1.msra.mxu0 0.0
    %2951 = vmatprep.subr.mxu0 0.0
    %2952 = vmatpush1.msra.mxu0 0.0
    %2953 = vmatprep.subr.mxu0 0.0
    %2954 = vmatpush1.msra.mxu0 0.0
    %2955 = vmatprep.subr.mxu0 0.0
    %2956 = vmatpush1.msra.mxu0 0.0
    %2957 = vmatprep.subr.mxu0 0.0
    %2958 = vmatpush1.msra.mxu0 0.0
    %2959 = vmatprep.subr.mxu0 %v2932
    %2960 = vmatpush1.msra.mxu0 %v2931
    %2961 = vmatprep.subr.mxu0 %v2928
    %2962 = vmatpush1.msra.mxu0 %v2927
    %2963 = vmatprep.subr.mxu0 %v2924
    %2964 = vmatpush1.msra.mxu0 %v2923
    %2965 = vmatprep.subr.mxu0 %v2920
    %2966 = vmatpush1.msra.mxu0 %v2919
    %2967 = vmatprep.subr.mxu0 0.0
    %2968 = vmatpush2.msra.mxu0 0.0
    %2969 = vmatprep.subr.mxu0 0.0
    %2970 = vmatpush2.msra.mxu0 0.0
    %2971 = vmatprep.subr.mxu0 0.0
    %2972 = vmatpush2.msra.mxu0 0.0
    %2973 = vmatprep.subr.mxu0 0.0
    %2974 = vmatpush2.msra.mxu0 0.0
    %2975 = vmatprep.subr.mxu0 0.0
    %2976 = vmatpush2.msra.mxu0 0.0
    %2977 = vmatprep.subr.mxu0 0.0
    %2978 = vmatpush2.msra.mxu0 0.0
    %2979 = vmatprep.subr.mxu0 0.0
    %2980 = vmatpush2.msra.mxu0 0.0
    %2981 = vmatprep.subr.mxu0 0.0
    %2982 = vmatpush2.msra.mxu0 0.0
    %2983 = vmatprep.subr.mxu0 0.0
    %2984 = vmatpush2.msra.mxu0 0.0
    %2985 = vmatprep.subr.mxu0 0.0
    %2986 = vmatpush2.msra.mxu0 0.0
    %2987 = vmatprep.subr.mxu0 0.0
    %2988 = vmatpush2.msra.mxu0 0.0
    %2989 = vmatprep.subr.mxu0 0.0
    %2990 = vmatpush2.msra.mxu0 0.0
    %2991 = vmatprep.subr.mxu0 0.0
    %2992 = vmatpush2.msra.mxu0 0.0
    %2993 = vmatprep.subr.mxu0 0.0
    %2994 = vmatpush2.msra.mxu0 0.0
    %2995 = vmatprep.subr.mxu0 0.0
    %2996 = vmatpush2.msra.mxu0 0.0
    %2997 = vmatprep.subr.mxu0 0.0
    %2998 = vmatpush2.msra.mxu0 0.0
    %2999 = vmatprep.mubr.f32.mxu0 0.0
    %3000 = vmatmul.mubr.f32.gmra.mxu0 %v558
    %v3001 = vpop.f32.mrf.mxu0
    %v3002 = vadd.f32 %v540, %v3001
    %v3003 = vpop.f32.mrf.mxu0
    %v3004 = vadd.f32 %v540, %v3003
    %3005 = vmatprep.mubr.f32.mxu0 0.0
    %3006 = vmatmul.mubr.f32.gmra.mxu0 %v561
    %v3007 = vpop.f32.mrf.mxu0
    %v3008 = vadd.f32 %v545, %v3007
    %v3009 = vpop.f32.mrf.mxu0
    %v3010 = vadd.f32 %v545, %v3009
    %3011 = vmatprep.mubr.f32.mxu0 0.0
    %3012 = vmatmul.mubr.f32.gmra.mxu0 %v564
    %v3013 = vpop.f32.mrf.mxu0
    %v3014 = vadd.f32 %v550, %v3013
    %v3015 = vpop.f32.mrf.mxu0
    %v3016 = vadd.f32 %v550, %v3015
    %3017 = vmatprep.mubr.f32.mxu0 0.0
    %3018 = vmatmul.mubr.f32.gmra.mxu0 %v567
    %v3019 = vpop.f32.mrf.mxu0
    %v3020 = vadd.f32 %v555, %v3019
    %v3021 = vpop.f32.mrf.mxu0
    %v3022 = vadd.f32 %v555, %v3021
    %3023 = vdwg.mxu0
    %3024 = vmatprep.subr.mxu0 0.0
    %3025 = vmatpush1.msra.mxu0 0.0
    %3026 = vmatprep.subr.mxu0 0.0
    %3027 = vmatpush1.msra.mxu0 0.0
    %3028 = vmatprep.subr.mxu0 0.0
    %3029 = vmatpush1.msra.mxu0 0.0
    %3030 = vmatprep.subr.mxu0 0.0
    %3031 = vmatpush1.msra.mxu0 0.0
    %3032 = vmatprep.subr.mxu0 0.0
    %3033 = vmatpush1.msra.mxu0 0.0
    %3034 = vmatprep.subr.mxu0 0.0
    %3035 = vmatpush1.msra.mxu0 0.0
    %3036 = vmatprep.subr.mxu0 0.0
    %3037 = vmatpush1.msra.mxu0 0.0
    %3038 = vmatprep.subr.mxu0 0.0
    %3039 = vmatpush1.msra.mxu0 0.0
    %3040 = vmatprep.subr.mxu0 0.0
    %3041 = vmatpush1.msra.mxu0 0.0
    %3042 = vmatprep.subr.mxu0 0.0
    %3043 = vmatpush1.msra.mxu0 0.0
    %3044 = vmatprep.subr.mxu0 0.0
    %3045 = vmatpush1.msra.mxu0 0.0
    %3046 = vmatprep.subr.mxu0 0.0
    %3047 = vmatpush1.msra.mxu0 0.0
    %3048 = vmatprep.subr.mxu0 %v2934
    %3049 = vmatpush1.msra.mxu0 %v2933
    %3050 = vmatprep.subr.mxu0 %v2930
    %3051 = vmatpush1.msra.mxu0 %v2929
    %3052 = vmatprep.subr.mxu0 %v2926
    %3053 = vmatpush1.msra.mxu0 %v2925
    %3054 = vmatprep.subr.mxu0 %v2922
    %3055 = vmatpush1.msra.mxu0 %v2921
    %3056 = vmatprep.subr.mxu0 0.0
    %3057 = vmatpush2.msra.mxu0 0.0
    %3058 = vmatprep.subr.mxu0 0.0
    %3059 = vmatpush2.msra.mxu0 0.0
    %3060 = vmatprep.subr.mxu0 0.0
    %3061 = vmatpush2.msra.mxu0 0.0
    %3062 = vmatprep.subr.mxu0 0.0
    %3063 = vmatpush2.msra.mxu0 0.0
    %3064 = vmatprep.subr.mxu0 0.0
    %3065 = vmatpush2.msra.mxu0 0.0
    %3066 = vmatprep.subr.mxu0 0.0
    %3067 = vmatpush2.msra.mxu0 0.0
    %3068 = vmatprep.subr.mxu0 0.0
    %3069 = vmatpush2.msra.mxu0 0.0
    %3070 = vmatprep.subr.mxu0 0.0
    %3071 = vmatpush2.msra.mxu0 0.0
    %3072 = vmatprep.subr.mxu0 0.0
    %3073 = vmatpush2.msra.mxu0 0.0
    %3074 = vmatprep.subr.mxu0 0.0
    %3075 = vmatpush2.msra.mxu0 0.0
    %3076 = vmatprep.subr.mxu0 0.0
    %3077 = vmatpush2.msra.mxu0 0.0
    %3078 = vmatprep.subr.mxu0 0.0
    %3079 = vmatpush2.msra.mxu0 0.0
    %3080 = vmatprep.subr.mxu0 0.0
    %3081 = vmatpush2.msra.mxu0 0.0
    %3082 = vmatprep.subr.mxu0 0.0
    %3083 = vmatpush2.msra.mxu0 0.0
    %3084 = vmatprep.subr.mxu0 0.0
    %3085 = vmatpush2.msra.mxu0 0.0
    %3086 = vmatprep.subr.mxu0 0.0
    %3087 = vmatpush2.msra.mxu0 0.0
    %3088 = vmatprep.mubr.f32.mxu0 0.0
    %3089 = vmatmul.mubr.f32.gmra.mxu0 %v558
    %v3090 = vpop.f32.mrf.mxu0
    %v3091 = vadd.f32 %v540, %v3090
    %v3092 = vpop.f32.mrf.mxu0
    %v3093 = vadd.f32 %v540, %v3092
    %3094 = vmatprep.mubr.f32.mxu0 0.0
    %3095 = vmatmul.mubr.f32.gmra.mxu0 %v561
    %v3096 = vpop.f32.mrf.mxu0
    %v3097 = vadd.f32 %v545, %v3096
    %v3098 = vpop.f32.mrf.mxu0
    %v3099 = vadd.f32 %v545, %v3098
    %3100 = vmatprep.mubr.f32.mxu0 0.0
    %3101 = vmatmul.mubr.f32.gmra.mxu0 %v564
    %v3102 = vpop.f32.mrf.mxu0
    %v3103 = vadd.f32 %v550, %v3102
    %v3104 = vpop.f32.mrf.mxu0
    %v3105 = vadd.f32 %v550, %v3104
    %3106 = vmatprep.mubr.f32.mxu0 0.0
    %3107 = vmatmul.mubr.f32.gmra.mxu0 %v567
    %v3108 = vpop.f32.mrf.mxu0
    %v3109 = vadd.f32 %v555, %v3108
    %v3110 = vpop.f32.mrf.mxu0
    %v3111 = vadd.f32 %v555, %v3110
    %3112 = vdwg.mxu0
    %v3113 = vtanh.pop %v3002
    %v3114 = vtanh.pop %v3004
    %v3115 = vtanh.pop %v3091
    %v3116 = vtanh.pop %v3093
    %v3117 = vtanh.pop %v3008
    %v3118 = vtanh.pop %v3010
    %v3119 = vtanh.pop %v3097
    %v3120 = vtanh.pop %v3099
    %v3121 = vtanh.pop %v3014
    %v3122 = vtanh.pop %v3016
    %v3123 = vtanh.pop %v3103
    %v3124 = vtanh.pop %v3105
    %v3125 = vtanh.pop %v3020
    %v3126 = vtanh.pop %v3022
    %v3127 = vtanh.pop %v3109
    %v3128 = vtanh.pop %v3111
    %3129 = vmatprep.subr.mxu0 0.0
    %3130 = vmatpush1.msra.mxu0 0.0
    %3131 = vmatprep.subr.mxu0 0.0
    %3132 = vmatpush1.msra.mxu0 0.0
    %3133 = vmatprep.subr.mxu0 0.0
    %3134 = vmatpush1.msra.mxu0 0.0
    %3135 = vmatprep.subr.mxu0 0.0
    %3136 = vmatpush1.msra.mxu0 0.0
    %3137 = vmatprep.subr.mxu0 0.0
    %3138 = vmatpush1.msra.mxu0 0.0
    %3139 = vmatprep.subr.mxu0 0.0
    %3140 = vmatpush1.msra.mxu0 0.0
    %3141 = vmatprep.subr.mxu0 0.0
    %3142 = vmatpush1.msra.mxu0 0.0
    %3143 = vmatprep.subr.mxu0 0.0
    %3144 = vmatpush1.msra.mxu0 0.0
    %3145 = vmatprep.subr.mxu0 0.0
    %3146 = vmatpush1.msra.mxu0 0.0
    %3147 = vmatprep.subr.mxu0 0.0
    %3148 = vmatpush1.msra.mxu0 0.0
    %3149 = vmatprep.subr.mxu0 0.0
    %3150 = vmatpush1.msra.mxu0 0.0
    %3151 = vmatprep.subr.mxu0 0.0
    %3152 = vmatpush1.msra.mxu0 0.0
    %3153 = vmatprep.subr.mxu0 %v3126
    %3154 = vmatpush1.msra.mxu0 %v3125
    %3155 = vmatprep.subr.mxu0 %v3122
    %3156 = vmatpush1.msra.mxu0 %v3121
    %3157 = vmatprep.subr.mxu0 %v3118
    %3158 = vmatpush1.msra.mxu0 %v3117
    %3159 = vmatprep.subr.mxu0 %v3114
    %3160 = vmatpush1.msra.mxu0 %v3113
    %3161 = vmatprep.subr.mxu0 0.0
    %3162 = vmatpush2.msra.mxu0 0.0
    %3163 = vmatprep.subr.mxu0 0.0
    %3164 = vmatpush2.msra.mxu0 0.0
    %3165 = vmatprep.subr.mxu0 0.0
    %3166 = vmatpush2.msra.mxu0 0.0
    %3167 = vmatprep.subr.mxu0 0.0
    %3168 = vmatpush2.msra.mxu0 0.0
    %3169 = vmatprep.subr.mxu0 0.0
    %3170 = vmatpush2.msra.mxu0 0.0
    %3171 = vmatprep.subr.mxu0 0.0
    %3172 = vmatpush2.msra.mxu0 0.0
    %3173 = vmatprep.subr.mxu0 0.0
    %3174 = vmatpush2.msra.mxu0 0.0
    %3175 = vmatprep.subr.mxu0 0.0
    %3176 = vmatpush2.msra.mxu0 0.0
    %3177 = vmatprep.subr.mxu0 0.0
    %3178 = vmatpush2.msra.mxu0 0.0
    %3179 = vmatprep.subr.mxu0 0.0
    %3180 = vmatpush2.msra.mxu0 0.0
    %3181 = vmatprep.subr.mxu0 0.0
    %3182 = vmatpush2.msra.mxu0 0.0
    %3183 = vmatprep.subr.mxu0 0.0
    %3184 = vmatpush2.msra.mxu0 0.0
    %3185 = vmatprep.subr.mxu0 0.0
    %3186 = vmatpush2.msra.mxu0 0.0
    %3187 = vmatprep.subr.mxu0 0.0
    %3188 = vmatpush2.msra.mxu0 0.0
    %3189 = vmatprep.subr.mxu0 0.0
    %3190 = vmatpush2.msra.mxu0 0.0
    %3191 = vmatprep.subr.mxu0 0.0
    %3192 = vmatpush2.msra.mxu0 0.0
    %3193 = vmatprep.mubr.f32.mxu0 0.0
    %3194 = vmatmul.mubr.f32.gmra.mxu0 %v781
    %v3195 = vpop.f32.mrf.mxu0
    %v3196 = vadd.f32 %v766, %v3195
    %v3197 = vpop.f32.mrf.mxu0
    %v3198 = vadd.f32 %v766, %v3197
    %3199 = vmatprep.mubr.f32.mxu0 0.0
    %3200 = vmatmul.mubr.f32.gmra.mxu0 %v784
    %v3201 = vpop.f32.mrf.mxu0
    %v3202 = vpop.f32.mrf.mxu0
    %3203 = vmatprep.mubr.f32.mxu0 0.0
    %3204 = vmatmul.mubr.f32.gmra.mxu0 %v787
    %v3205 = vpop.f32.mrf.mxu0
    %v3206 = vpop.f32.mrf.mxu0
    %3207 = vmatprep.mubr.f32.mxu0 0.0
    %3208 = vmatmul.mubr.f32.gmra.mxu0 %v790
    %v3209 = vpop.f32.mrf.mxu0
    %v3210 = vpop.f32.mrf.mxu0
    %3211 = vdwg.mxu0
    %3212 = vmatprep.subr.mxu0 0.0
    %3213 = vmatpush1.msra.mxu0 0.0
    %3214 = vmatprep.subr.mxu0 0.0
    %3215 = vmatpush1.msra.mxu0 0.0
    %3216 = vmatprep.subr.mxu0 0.0
    %3217 = vmatpush1.msra.mxu0 0.0
    %3218 = vmatprep.subr.mxu0 0.0
    %3219 = vmatpush1.msra.mxu0 0.0
    %3220 = vmatprep.subr.mxu0 0.0
    %3221 = vmatpush1.msra.mxu0 0.0
    %3222 = vmatprep.subr.mxu0 0.0
    %3223 = vmatpush1.msra.mxu0 0.0
    %3224 = vmatprep.subr.mxu0 0.0
    %3225 = vmatpush1.msra.mxu0 0.0
    %3226 = vmatprep.subr.mxu0 0.0
    %3227 = vmatpush1.msra.mxu0 0.0
    %3228 = vmatprep.subr.mxu0 0.0
    %3229 = vmatpush1.msra.mxu0 0.0
    %3230 = vmatprep.subr.mxu0 0.0
    %3231 = vmatpush1.msra.mxu0 0.0
    %3232 = vmatprep.subr.mxu0 0.0
    %3233 = vmatpush1.msra.mxu0 0.0
    %3234 = vmatprep.subr.mxu0 0.0
    %3235 = vmatpush1.msra.mxu0 0.0
    %3236 = vmatprep.subr.mxu0 %v3128
    %3237 = vmatpush1.msra.mxu0 %v3127
    %3238 = vmatprep.subr.mxu0 %v3124
    %3239 = vmatpush1.msra.mxu0 %v3123
    %3240 = vmatprep.subr.mxu0 %v3120
    %3241 = vmatpush1.msra.mxu0 %v3119
    %3242 = vmatprep.subr.mxu0 %v3116
    %3243 = vmatpush1.msra.mxu0 %v3115
    %3244 = vmatprep.subr.mxu0 0.0
    %3245 = vmatpush2.msra.mxu0 0.0
    %3246 = vmatprep.subr.mxu0 0.0
    %3247 = vmatpush2.msra.mxu0 0.0
    %3248 = vmatprep.subr.mxu0 0.0
    %3249 = vmatpush2.msra.mxu0 0.0
    %3250 = vmatprep.subr.mxu0 0.0
    %3251 = vmatpush2.msra.mxu0 0.0
    %3252 = vmatprep.subr.mxu0 0.0
    %3253 = vmatpush2.msra.mxu0 0.0
    %3254 = vmatprep.subr.mxu0 0.0
    %3255 = vmatpush2.msra.mxu0 0.0
    %3256 = vmatprep.subr.mxu0 0.0
    %3257 = vmatpush2.msra.mxu0 0.0
    %3258 = vmatprep.subr.mxu0 0.0
    %3259 = vmatpush2.msra.mxu0 0.0
    %3260 = vmatprep.subr.mxu0 0.0
    %3261 = vmatpush2.msra.mxu0 0.0
    %3262 = vmatprep.subr.mxu0 0.0
    %3263 = vmatpush2.msra.mxu0 0.0
    %3264 = vmatprep.subr.mxu0 0.0
    %3265 = vmatpush2.msra.mxu0 0.0
    %3266 = vmatprep.subr.mxu0 0.0
    %3267 = vmatpush2.msra.mxu0 0.0
    %3268 = vmatprep.subr.mxu0 0.0
    %3269 = vmatpush2.msra.mxu0 0.0
    %3270 = vmatprep.subr.mxu0 0.0
    %3271 = vmatpush2.msra.mxu0 0.0
    %3272 = vmatprep.subr.mxu0 0.0
    %3273 = vmatpush2.msra.mxu0 0.0
    %3274 = vmatprep.subr.mxu0 0.0
    %3275 = vmatpush2.msra.mxu0 0.0
    %3276 = vmatprep.mubr.f32.mxu0 0.0
    %3277 = vmatmul.mubr.f32.gmra.mxu0 %v781
    %v3278 = vpop.f32.mrf.mxu0
    %v3279 = vadd.f32 %v766, %v3278
    %v3280 = vpop.f32.mrf.mxu0
    %v3281 = vadd.f32 %v766, %v3280
    %3282 = vmatprep.mubr.f32.mxu0 0.0
    %3283 = vmatmul.mubr.f32.gmra.mxu0 %v784
    %v3284 = vpop.f32.mrf.mxu0
    %v3285 = vpop.f32.mrf.mxu0
    %3286 = vmatprep.mubr.f32.mxu0 0.0
    %3287 = vmatmul.mubr.f32.gmra.mxu0 %v787
    %v3288 = vpop.f32.mrf.mxu0
    %v3289 = vpop.f32.mrf.mxu0
    %3290 = vmatprep.mubr.f32.mxu0 0.0
    %3291 = vmatmul.mubr.f32.gmra.mxu0 %v790
    %v3292 = vpop.f32.mrf.mxu0
    %v3293 = vpop.f32.mrf.mxu0
    %3294 = vdwg.mxu0
    %3295 = vst [vmem:[#allocation2 + $0x60] sm:$0xff] %v3196
    %3296 = vst [vmem:[#allocation2 + $0x68] sm:$0xff] %v3198
    %3297 = vst [vmem:[#allocation2 + $0x70] sm:$0xff] %v3279
    %3298 = vst [vmem:[#allocation2 + $0x78] sm:$0xff] %v3281
    // Predicated region
    $region18: #{tpu_custom_call.1} parent=1 // pred_check
      _
    $region19: #{tpu_custom_call.1} parent=1 // pred_check_branch
      %3300 = sbr.rel (0) target = $region21
    $region20: #{tpu_custom_call.1} parent=1 // pred_region
      %s3302 = ssub.s32 2048, 2048
      %3303 = vsyncadd [#allocation3], %s3302
      %s3305 = sshll.u32 [#allocation2], 4
      %s3306 = int_to_ptr.vmem [resolvable:$true] %s3305
      %3308 = dma.vmem_to_hbm [thread:$0]  %s3306, 2048, %s4, [#allocation3]
    $region21: #{tpu_custom_call.1} parent=1 // pred_fallthru
      _
    // Predicated region
    $region22: #{tpu_custom_call.1} parent=1 // pred_check
      _
    $region23: #{tpu_custom_call.1} parent=1 // pred_check_branch
      %3310 = sbr.rel (0) target = $region25
    $region24: #{tpu_custom_call.1} parent=1 // pred_region
      %3311 = dma.done [#allocation3], 2048
    $region25: #{tpu_custom_call.1} parent=1 // pred_fallthru
      _
    %3312 = vsyncpa [#allocation3], 1

</llo_original>
